<compile_context>
chip_gen: v5e
topology: v5e:2x2
jax: 0.10.0
libtpu: 0.0.40
codegen_flags: <defaults>
</compile_context>

<pallas_src>
import math

import jax
import jax.numpy as jnp
from jax import lax
from jax.experimental import pallas as pl

# ----------------------------- small config ---------------------------------
B, S = 2, 8            # batch, sequence length
H = 256                # hidden size     (768 in roberta-base)  - multiple of 128
NH, HD = 2, 128        # heads, head dim (12 x 64 real); HD=128 -> vreg-aligned
FFN = 512              # intermediate    (3072 real)            - multiple of 128
LAYERS = 2             # encoder layers  (12 real)
VOCAB = 128            # vocab           (50265 real)
PROJ = 256             # projector size  (256 real)             - multiple of 128
M = B * S              # flattened token rows (multiple of 8)
NEG_INF = -1e9

assert NH * HD == H and M % 8 == 0


# ---------------- shared math (used inside the kernel AND by the reference) --
def _dot_bf16(a, b):
    """bf16 MXU inputs, f32 accumulation."""
    return jnp.dot(a.astype(jnp.bfloat16), b.astype(jnp.bfloat16),
                   preferred_element_type=jnp.float32)


def _layer_norm(x, g, b, eps=1e-5):
    m = jnp.mean(x, axis=-1, keepdims=True)
    v = jnp.mean((x - m) ** 2, axis=-1, keepdims=True)
    return (x - m) * lax.rsqrt(v + eps) * g + b


def _gelu_tanh(x):
    c = math.sqrt(2.0 / math.pi)
    return 0.5 * x * (1.0 + jnp.tanh(c * (x + 0.044715 * x * x * x)))


def _encoder_layer_math(x, attn_bias, wqkv, bqkv, wo, bo,
                        ln1_g, ln1_b, w1, b1, w2, b2, ln2_g, ln2_b, recip):
    """One transformer encoder layer on the flattened [M, H] activation (f32).

    Heads are handled as a batch dimension of size NH*B: one batched QK^T,
    one softmax, one batched P.V, and one fused output-projection matmul.
    """
    x_bf = x.astype(jnp.bfloat16)                                 # cast once
    qkv = jnp.dot(x_bf, wqkv, preferred_element_type=jnp.float32) + bqkv  # [M,3H]
    scale = 1.0 / math.sqrt(HD)

    def split_heads(t):
        # [M, H] -> [NH*B, S, HD] (head-major batch); only 128-aligned lane
        # slices + leading-dim reshapes/concats -> no cross-lane permutes.
        return jnp.concatenate(
            [t[:, h * HD:(h + 1) * HD].reshape(B, S, HD) for h in range(NH)],
            axis=0)

    q = split_heads(qkv[:, 0 * H:1 * H] * scale).astype(jnp.bfloat16)
    k = split_heads(qkv[:, 1 * H:2 * H]).astype(jnp.bfloat16)
    v = split_heads(qkv[:, 2 * H:3 * H]).astype(jnp.bfloat16)

    # one batched QK^T / softmax / P.V over all heads (batch = NH*B)
    s = jnp.einsum("bqd,bkd->bqk", q, k,
                   preferred_element_type=jnp.float32) + attn_bias   # [NH*B,S,S]
    s = s - jnp.max(s, axis=-1, keepdims=True)                       # f32 softmax
    p = jnp.exp(s)
    p = p * recip(jnp.sum(p, axis=-1, keepdims=True))
    ctx = jnp.einsum("bqk,bkd->bqd", p.astype(jnp.bfloat16), v,
                     preferred_element_type=jnp.float32)             # [NH*B,S,HD]

    # merge heads along lanes (128-aligned) -> ONE output-projection matmul
    ctx2d = jnp.concatenate(
        [ctx[h * B:(h + 1) * B].reshape(M, HD) for h in range(NH)], axis=-1)
    attn_out = _dot_bf16(ctx2d, wo) + bo

    x1 = _layer_norm(x + attn_out, ln1_g, ln1_b)                     # residual+LN
    h_mid = _gelu_tanh(_dot_bf16(x1, w1) + b1)                       # FFN up+GELU
    x2 = _layer_norm(x1 + _dot_bf16(h_mid, w2) + b2, ln2_g, ln2_b)
    return x2


def _pool_project_math(x2d, pool_sel, wp, recip):
    """Masked mean over the sequence + bias-free projection (F.linear)."""
    pooled_sum = _dot_bf16(pool_sel, x2d)                            # [B, H]
    valid = jnp.sum(pool_sel, axis=1, keepdims=True)                 # [B, 1]
    pooled = pooled_sum * recip(jnp.maximum(valid, 1.0))             # guard len==0
    return _dot_bf16(pooled, wp)                                     # [B, PROJ]


# ------------------------------- the kernel ----------------------------------
def _lmodel_kernel(x0_ref, bias_ref, sel_ref, eg_ref, eb_ref,
                   wqkv_ref, bqkv_ref, wo_ref, bo_ref, ln1g_ref, ln1b_ref,
                   w1_ref, b1_ref, w2_ref, b2_ref, ln2g_ref, ln2b_ref,
                   wp_ref, out_ref):
    recip = lambda t: pl.reciprocal(t, approx=True)                  # EUP divide

    # embedding LayerNorm (gather was done by XLA in the wrapper)
    x = _layer_norm(x0_ref[...], eg_ref[...], eb_ref[...])
    attn_bias = bias_ref[...]                                        # precomputed

    # statically unrolled encoder layers; all layer weights resident in VMEM
    for l in range(LAYERS):
        x = _encoder_layer_math(
            x, attn_bias,
            wqkv_ref[l], bqkv_ref[l], wo_ref[l], bo_ref[l],
            ln1g_ref[l], ln1b_ref[l],
            w1_ref[l], b1_ref[l], w2_ref[l], b2_ref[l],
            ln2g_ref[l], ln2b_ref[l],
            recip)

    # masked mean over the sequence + bias-free projector
    out_ref[...] = _pool_project_math(x, sel_ref[...], wp_ref[...], recip)


# -------------------------------- wrappers -----------------------------------
def _prep_inputs(params, input_ids, attention_mask):
    """Embedding gather + tiny mask layout prep (XLA, outside the kernel)."""
    ids = input_ids.reshape(M).astype(jnp.int32)
    pos = jnp.tile(jnp.arange(S, dtype=jnp.int32), B)                # [M]
    x0 = (jnp.take(params["word_emb"], ids, axis=0).astype(jnp.float32)
          + jnp.take(params["pos_emb"], pos, axis=0).astype(jnp.float32))  # [M, H]

    mask_f = attention_mask.astype(jnp.float32).reshape(B, S)
    # additive attention bias, already expanded per head (head-major batch)
    bias = ((1.0 - mask_f) * NEG_INF).reshape(1, B, 1, S)
    attn_bias = jnp.tile(bias, (NH, 1, 1, 1)).reshape(NH * B, 1, S)  # [NH*B,1,S]

    # pool_sel[b, m] = mask[b, s] if row m belongs to batch b (m = b*S+s) else 0
    row_batch = (jnp.arange(M, dtype=jnp.int32) // S)[None, :]
    pool_sel = jnp.where(row_batch == jnp.arange(B, dtype=jnp.int32)[:, None],
                         mask_f.reshape(1, M), 0.0).astype(jnp.float32)    # [B, M]
    return x0, attn_bias, pool_sel


def lmodel_forward_pallas(params, input_ids, attention_mask):
    x0, attn_bias, pool_sel = _prep_inputs(params, input_ids, attention_mask)
    return pl.pallas_call(
        _lmodel_kernel,
        out_shape=jax.ShapeDtypeStruct((B, PROJ), jnp.float32),
        # No grid: single invocation, every operand is a whole-array VMEM block
        # (~2.3 MiB of bf16 weights at this toy size -> fits any TPU's VMEM).
        # For the real 12-layer / H=768 model, re-introduce grid=(LAYERS,) with
        # per-layer BlockSpec index maps (streamed, double-buffered weights), a
        # >=128/256-row token-tile axis marked "parallel" (uses v7x's second
        # TensorCore), and pltpu.CompilerParams(vmem_limit_bytes=...) sized to
        # the per-layer weight stream (review items #4/#5/#10).
    )(x0, attn_bias, pool_sel,
      params["emb_ln_g"], params["emb_ln_b"],
      params["wqkv"], params["bqkv"], params["wo"], params["bo"],
      params["ln1_g"], params["ln1_b"], params["w1"], params["b1"],
      params["w2"], params["b2"], params["ln2_g"], params["ln2_b"],
      params["proj_w_t"])


# ----------------------- pure-JAX reference (same math) ----------------------
def lmodel_forward_ref(params, input_ids, attention_mask):
    x0, attn_bias, pool_sel = _prep_inputs(params, input_ids, attention_mask)
    exact = lambda t: 1.0 / t
    x = _layer_norm(x0, params["emb_ln_g"], params["emb_ln_b"])
    for l in range(LAYERS):
        x = _encoder_layer_math(
            x, attn_bias,
            params["wqkv"][l], params["bqkv"][l], params["wo"][l], params["bo"][l],
            params["ln1_g"][l], params["ln1_b"][l],
            params["w1"][l], params["b1"][l], params["w2"][l], params["b2"][l],
            params["ln2_g"][l], params["ln2_b"][l],
            exact)
    return _pool_project_math(x, pool_sel, params["proj_w_t"], exact)


# ----------------------------- parameter init ---------------------------------
def init_params(key):
    scale = 0.02
    ks = iter(jax.random.split(key, 20))

    def nrm(shape, dtype=jnp.bfloat16):
        # matmul weights pre-cast to bf16 once; biases / LN params stay f32
        return (scale * jax.random.normal(next(ks), shape, jnp.float32)).astype(dtype)

    params = {
        "word_emb": nrm((VOCAB, H)),                 # used only by the XLA gather
        "pos_emb": nrm((S, H)),
        "emb_ln_g": jnp.ones((1, H), jnp.float32),
        "emb_ln_b": jnp.zeros((1, H), jnp.float32),
        # stacked per-layer weights [LAYERS, ...]
        "wqkv": nrm((LAYERS, H, 3 * H)),
        "bqkv": nrm((LAYERS, 1, 3 * H), jnp.float32),
        "wo": nrm((LAYERS, H, H)),
        "bo": nrm((LAYERS, 1, H), jnp.float32),
        "ln1_g": jnp.ones((LAYERS, 1, H), jnp.float32),
        "ln1_b": jnp.zeros((LAYERS, 1, H), jnp.float32),
        "w1": nrm((LAYERS, H, FFN)),
        "b1": nrm((LAYERS, 1, FFN), jnp.float32),
        "w2": nrm((LAYERS, FFN, H)),
        "b2": nrm((LAYERS, 1, H), jnp.float32),
        "ln2_g": jnp.ones((LAYERS, 1, H), jnp.float32),
        "ln2_b": jnp.zeros((LAYERS, 1, H), jnp.float32),
    }
    proj_w = nrm((PROJ, H))                          # nn.Linear(H, P, bias=False).weight
    params["proj_w_t"] = jnp.transpose(proj_w)       # [H, P], transposed once at init
    return params


# ---------------------------------- main --------------------------------------
if __name__ == "__main__":
    root = jax.random.PRNGKey(0)
    k_param, k_ids = jax.random.split(root)

    params = init_params(k_param)

    # "sentence" dict: input_ids + attention_mask (1 = attend, 0 = pad)
    input_ids = jax.random.randint(k_ids, (B, S), 0, VOCAB, dtype=jnp.int32)
    attention_mask = jnp.array(
        [[1, 1, 1, 1, 1, 1, 0, 0],
         [1, 1, 1, 1, 1, 1, 1, 1]], dtype=jnp.int32)

    out = jax.jit(lmodel_forward_pallas)(params, input_ids, attention_mask)
    out = jax.block_until_ready(out)

    ref = jax.jit(lmodel_forward_ref)(params, input_ids, attention_mask)
    ref = jax.block_until_ready(ref)

    assert out.shape == (B, PROJ), out.shape
    max_err = jnp.max(jnp.abs(out - ref))
    assert jnp.allclose(out, ref, atol=1e-2, rtol=1e-2), f"max abs err {max_err}"

    print("KERNEL_OK")
</pallas_src>

<mosaic_0001>
module attributes {stable_mosaic.version = 11 : i64} {
  func.func @_lmodel_kernel(%arg0: memref<16x256xf32, #tpu.memory_space<vmem>>, %arg1: memref<4x1x8xf32, #tpu.memory_space<vmem>>, %arg2: memref<2x16xf32, #tpu.memory_space<vmem>>, %arg3: memref<1x256xf32, #tpu.memory_space<vmem>>, %arg4: memref<1x256xf32, #tpu.memory_space<vmem>>, %arg5: memref<2x256x768xbf16, #tpu.memory_space<vmem>>, %arg6: memref<2x1x768xf32, #tpu.memory_space<vmem>>, %arg7: memref<2x256x256xbf16, #tpu.memory_space<vmem>>, %arg8: memref<2x1x256xf32, #tpu.memory_space<vmem>>, %arg9: memref<2x1x256xf32, #tpu.memory_space<vmem>>, %arg10: memref<2x1x256xf32, #tpu.memory_space<vmem>>, %arg11: memref<2x256x512xbf16, #tpu.memory_space<vmem>>, %arg12: memref<2x1x512xf32, #tpu.memory_space<vmem>>, %arg13: memref<2x512x256xbf16, #tpu.memory_space<vmem>>, %arg14: memref<2x1x256xf32, #tpu.memory_space<vmem>>, %arg15: memref<2x1x256xf32, #tpu.memory_space<vmem>>, %arg16: memref<2x1x256xf32, #tpu.memory_space<vmem>>, %arg17: memref<256x256xbf16, #tpu.memory_space<vmem>>, %arg18: memref<2x256xf32, #tpu.memory_space<vmem>>) attributes {dimension_semantics = [], scalar_prefetch = 0 : i64, scratch_operands = 0 : i64, tpu.core_type = #tpu.core_type<tc>} {
    %c0 = arith.constant 0 : index
    %c0_0 = arith.constant 0 : index
    %0 = vector.load %arg0[%c0, %c0_0] : memref<16x256xf32, #tpu.memory_space<vmem>>, vector<16x256xf32>
    %c0_1 = arith.constant 0 : index
    %c0_2 = arith.constant 0 : index
    %1 = vector.load %arg3[%c0_1, %c0_2] : memref<1x256xf32, #tpu.memory_space<vmem>>, vector<1x256xf32>
    %c0_3 = arith.constant 0 : index
    %c0_4 = arith.constant 0 : index
    %2 = vector.load %arg4[%c0_3, %c0_4] : memref<1x256xf32, #tpu.memory_space<vmem>>, vector<1x256xf32>
    %cst = arith.constant dense<0.000000e+00> : vector<16xf32>
    %3 = vector.multi_reduction <add>, %0, %cst [1] : vector<16x256xf32> to vector<16xf32>
    %4 = vector.shape_cast %3 : vector<16xf32> to vector<16x1xf32>
    %cst_5 = arith.constant 2.560000e+02 : f32
    %5 = vector.broadcast %cst_5 : f32 to vector<16x1xf32>
    %6 = arith.divf %4, %5 : vector<16x1xf32>
    %7 = vector.broadcast %6 : vector<16x1xf32> to vector<16x256xf32>
    %8 = arith.subf %0, %7 : vector<16x256xf32>
    %9 = arith.mulf %8, %8 : vector<16x256xf32>
    %cst_6 = arith.constant dense<0.000000e+00> : vector<16xf32>
    %10 = vector.multi_reduction <add>, %9, %cst_6 [1] : vector<16x256xf32> to vector<16xf32>
    %11 = vector.shape_cast %10 : vector<16xf32> to vector<16x1xf32>
    %cst_7 = arith.constant 2.560000e+02 : f32
    %12 = vector.broadcast %cst_7 : f32 to vector<16x1xf32>
    %13 = arith.divf %11, %12 : vector<16x1xf32>
    %14 = vector.broadcast %6 : vector<16x1xf32> to vector<16x256xf32>
    %15 = arith.subf %0, %14 : vector<16x256xf32>
    %cst_8 = arith.constant 9.99999974E-6 : f32
    %16 = vector.broadcast %cst_8 : f32 to vector<16x1xf32>
    %17 = arith.addf %13, %16 : vector<16x1xf32>
    %18 = math.rsqrt %17 : vector<16x1xf32>
    %19 = vector.broadcast %18 : vector<16x1xf32> to vector<16x256xf32>
    %20 = arith.mulf %15, %19 : vector<16x256xf32>
    %21 = vector.broadcast %1 : vector<1x256xf32> to vector<16x256xf32>
    %22 = arith.mulf %20, %21 : vector<16x256xf32>
    %23 = vector.broadcast %2 : vector<1x256xf32> to vector<16x256xf32>
    %24 = arith.addf %22, %23 : vector<16x256xf32>
    %c0_9 = arith.constant 0 : index
    %c0_10 = arith.constant 0 : index
    %c0_11 = arith.constant 0 : index
    %25 = vector.load %arg1[%c0_9, %c0_10, %c0_11] : memref<4x1x8xf32, #tpu.memory_space<vmem>>, vector<4x1x8xf32>
    %c0_12 = arith.constant 0 : index
    %c0_13 = arith.constant 0 : index
    %c0_14 = arith.constant 0 : index
    %26 = vector.load %arg5[%c0_12, %c0_13, %c0_14] : memref<2x256x768xbf16, #tpu.memory_space<vmem>>, vector<1x256x768xbf16>
    %27 = vector.shape_cast %26 : vector<1x256x768xbf16> to vector<256x768xbf16>
    %c0_15 = arith.constant 0 : index
    %c0_16 = arith.constant 0 : index
    %c0_17 = arith.constant 0 : index
    %28 = vector.load %arg6[%c0_15, %c0_16, %c0_17] : memref<2x1x768xf32, #tpu.memory_space<vmem>>, vector<1x1x768xf32>
    %29 = vector.shape_cast %28 : vector<1x1x768xf32> to vector<1x768xf32>
    %c0_18 = arith.constant 0 : index
    %c0_19 = arith.constant 0 : index
    %c0_20 = arith.constant 0 : index
    %30 = vector.load %arg7[%c0_18, %c0_19, %c0_20] : memref<2x256x256xbf16, #tpu.memory_space<vmem>>, vector<1x256x256xbf16>
    %31 = vector.shape_cast %30 : vector<1x256x256xbf16> to vector<256x256xbf16>
    %c0_21 = arith.constant 0 : index
    %c0_22 = arith.constant 0 : index
    %c0_23 = arith.constant 0 : index
    %32 = vector.load %arg8[%c0_21, %c0_22, %c0_23] : memref<2x1x256xf32, #tpu.memory_space<vmem>>, vector<1x1x256xf32>
    %33 = vector.shape_cast %32 : vector<1x1x256xf32> to vector<1x256xf32>
    %c0_24 = arith.constant 0 : index
    %c0_25 = arith.constant 0 : index
    %c0_26 = arith.constant 0 : index
    %34 = vector.load %arg9[%c0_24, %c0_25, %c0_26] : memref<2x1x256xf32, #tpu.memory_space<vmem>>, vector<1x1x256xf32>
    %35 = vector.shape_cast %34 : vector<1x1x256xf32> to vector<1x256xf32>
    %c0_27 = arith.constant 0 : index
    %c0_28 = arith.constant 0 : index
    %c0_29 = arith.constant 0 : index
    %36 = vector.load %arg10[%c0_27, %c0_28, %c0_29] : memref<2x1x256xf32, #tpu.memory_space<vmem>>, vector<1x1x256xf32>
    %37 = vector.shape_cast %36 : vector<1x1x256xf32> to vector<1x256xf32>
    %c0_30 = arith.constant 0 : index
    %c0_31 = arith.constant 0 : index
    %c0_32 = arith.constant 0 : index
    %38 = vector.load %arg11[%c0_30, %c0_31, %c0_32] : memref<2x256x512xbf16, #tpu.memory_space<vmem>>, vector<1x256x512xbf16>
    %39 = vector.shape_cast %38 : vector<1x256x512xbf16> to vector<256x512xbf16>
    %c0_33 = arith.constant 0 : index
    %c0_34 = arith.constant 0 : index
    %c0_35 = arith.constant 0 : index
    %40 = vector.load %arg12[%c0_33, %c0_34, %c0_35] : memref<2x1x512xf32, #tpu.memory_space<vmem>>, vector<1x1x512xf32>
    %41 = vector.shape_cast %40 : vector<1x1x512xf32> to vector<1x512xf32>
    %c0_36 = arith.constant 0 : index
    %c0_37 = arith.constant 0 : index
    %c0_38 = arith.constant 0 : index
    %42 = vector.load %arg13[%c0_36, %c0_37, %c0_38] : memref<2x512x256xbf16, #tpu.memory_space<vmem>>, vector<1x512x256xbf16>
    %43 = vector.shape_cast %42 : vector<1x512x256xbf16> to vector<512x256xbf16>
    %c0_39 = arith.constant 0 : index
    %c0_40 = arith.constant 0 : index
    %c0_41 = arith.constant 0 : index
    %44 = vector.load %arg14[%c0_39, %c0_40, %c0_41] : memref<2x1x256xf32, #tpu.memory_space<vmem>>, vector<1x1x256xf32>
    %45 = vector.shape_cast %44 : vector<1x1x256xf32> to vector<1x256xf32>
    %c0_42 = arith.constant 0 : index
    %c0_43 = arith.constant 0 : index
    %c0_44 = arith.constant 0 : index
    %46 = vector.load %arg15[%c0_42, %c0_43, %c0_44] : memref<2x1x256xf32, #tpu.memory_space<vmem>>, vector<1x1x256xf32>
    %47 = vector.shape_cast %46 : vector<1x1x256xf32> to vector<1x256xf32>
    %c0_45 = arith.constant 0 : index
    %c0_46 = arith.constant 0 : index
    %c0_47 = arith.constant 0 : index
    %48 = vector.load %arg16[%c0_45, %c0_46, %c0_47] : memref<2x1x256xf32, #tpu.memory_space<vmem>>, vector<1x1x256xf32>
    %49 = vector.shape_cast %48 : vector<1x1x256xf32> to vector<1x256xf32>
    %50 = arith.truncf %24 : vector<16x256xf32> to vector<16x256xbf16>
    %cst_48 = arith.constant dense<0.000000e+00> : vector<16x768xf32>
    %51 = tpu.matmul %50, %27, %cst_48 {dimension_numbers = #tpu.dot_dimension_numbers<[1], [0], [0], [1], [0, 0, 1, 1], [], []>} : vector<16x256xbf16>, vector<256x768xbf16>, vector<16x768xf32> -> vector<16x768xf32>
    %52 = vector.broadcast %29 : vector<1x768xf32> to vector<16x768xf32>
    %53 = arith.addf %51, %52 : vector<16x768xf32>
    %54 = vector.extract_strided_slice %53 {offsets = [0, 0], sizes = [16, 256], strides = [1, 1]} : vector<16x768xf32> to vector<16x256xf32>
    %cst_49 = arith.constant 0.0883883461 : f32
    %55 = vector.broadcast %cst_49 : f32 to vector<16x256xf32>
    %56 = arith.mulf %54, %55 : vector<16x256xf32>
    %57 = vector.extract_strided_slice %56 {offsets = [0, 0], sizes = [16, 128], strides = [1, 1]} : vector<16x256xf32> to vector<16x128xf32>
    %58 = vector.shape_cast %57 : vector<16x128xf32> to vector<2x8x128xf32>
    %59 = vector.extract_strided_slice %56 {offsets = [0, 128], sizes = [16, 128], strides = [1, 1]} : vector<16x256xf32> to vector<16x128xf32>
    %60 = vector.shape_cast %59 : vector<16x128xf32> to vector<2x8x128xf32>
    %61 = tpu.concatenate %58, %60 in 0 : vector<2x8x128xf32>, vector<2x8x128xf32> -> vector<4x8x128xf32>
    %62 = arith.truncf %61 : vector<4x8x128xf32> to vector<4x8x128xbf16>
    %63 = vector.extract_strided_slice %53 {offsets = [0, 256], sizes = [16, 256], strides = [1, 1]} : vector<16x768xf32> to vector<16x256xf32>
    %64 = vector.extract_strided_slice %63 {offsets = [0, 0], sizes = [16, 128], strides = [1, 1]} : vector<16x256xf32> to vector<16x128xf32>
    %65 = vector.shape_cast %64 : vector<16x128xf32> to vector<2x8x128xf32>
    %66 = vector.extract_strided_slice %63 {offsets = [0, 128], sizes = [16, 128], strides = [1, 1]} : vector<16x256xf32> to vector<16x128xf32>
    %67 = vector.shape_cast %66 : vector<16x128xf32> to vector<2x8x128xf32>
    %68 = tpu.concatenate %65, %67 in 0 : vector<2x8x128xf32>, vector<2x8x128xf32> -> vector<4x8x128xf32>
    %69 = arith.truncf %68 : vector<4x8x128xf32> to vector<4x8x128xbf16>
    %70 = vector.extract_strided_slice %53 {offsets = [0, 512], sizes = [16, 256], strides = [1, 1]} : vector<16x768xf32> to vector<16x256xf32>
    %71 = vector.extract_strided_slice %70 {offsets = [0, 0], sizes = [16, 128], strides = [1, 1]} : vector<16x256xf32> to vector<16x128xf32>
    %72 = vector.shape_cast %71 : vector<16x128xf32> to vector<2x8x128xf32>
    %73 = vector.extract_strided_slice %70 {offsets = [0, 128], sizes = [16, 128], strides = [1, 1]} : vector<16x256xf32> to vector<16x128xf32>
    %74 = vector.shape_cast %73 : vector<16x128xf32> to vector<2x8x128xf32>
    %75 = tpu.concatenate %72, %74 in 0 : vector<2x8x128xf32>, vector<2x8x128xf32> -> vector<4x8x128xf32>
    %76 = arith.truncf %75 : vector<4x8x128xf32> to vector<4x8x128xbf16>
    "tpu.trace_start"() <{level = 10 : i32, message = "bqd,bkd->bqk"}> : () -> ()
    %cst_50 = arith.constant dense<0.000000e+00> : vector<4x8x8xf32>
    %77 = tpu.matmul %62, %69, %cst_50 {dimension_numbers = #tpu.dot_dimension_numbers<[2], [2], [1], [1], [0, 0, 0, 1, 1, 1], [0], [0]>} : vector<4x8x128xbf16>, vector<4x8x128xbf16>, vector<4x8x8xf32> -> vector<4x8x8xf32>
    "tpu.trace_stop"() : () -> ()
    %78 = vector.broadcast %25 : vector<4x1x8xf32> to vector<4x8x8xf32>
    %79 = arith.addf %77, %78 : vector<4x8x8xf32>
    %cst_51 = arith.constant dense<0xFF800000> : vector<4x8xf32>
    %80 = vector.multi_reduction <maximumf>, %79, %cst_51 [2] : vector<4x8x8xf32> to vector<4x8xf32>
    %81 = vector.shape_cast %80 : vector<4x8xf32> to vector<4x8x1xf32>
    %82 = vector.broadcast %81 : vector<4x8x1xf32> to vector<4x8x8xf32>
    %83 = arith.subf %79, %82 : vector<4x8x8xf32>
    %84 = math.exp %83 : vector<4x8x8xf32>
    %cst_52 = arith.constant dense<0.000000e+00> : vector<4x8xf32>
    %85 = vector.multi_reduction <add>, %84, %cst_52 [2] : vector<4x8x8xf32> to vector<4x8xf32>
    %86 = vector.shape_cast %85 : vector<4x8xf32> to vector<4x8x1xf32>
    %87 = tpu.reciprocal %86 {approx = true} : vector<4x8x1xf32> -> vector<4x8x1xf32>
    %88 = vector.broadcast %87 : vector<4x8x1xf32> to vector<4x8x8xf32>
    %89 = arith.mulf %84, %88 : vector<4x8x8xf32>
    %90 = arith.truncf %89 : vector<4x8x8xf32> to vector<4x8x8xbf16>
    "tpu.trace_start"() <{level = 10 : i32, message = "bqk,bkd->bqd"}> : () -> ()
    %cst_53 = arith.constant dense<0.000000e+00> : vector<4x8x128xf32>
    %91 = tpu.matmul %90, %76, %cst_53 {dimension_numbers = #tpu.dot_dimension_numbers<[2], [1], [1], [2], [0, 0, 0, 1, 1, 2], [0], [0]>} : vector<4x8x8xbf16>, vector<4x8x128xbf16>, vector<4x8x128xf32> -> vector<4x8x128xf32>
    "tpu.trace_stop"() : () -> ()
    %92 = vector.extract_strided_slice %91 {offsets = [0, 0, 0], sizes = [2, 8, 128], strides = [1, 1, 1]} : vector<4x8x128xf32> to vector<2x8x128xf32>
    %93 = vector.shape_cast %92 : vector<2x8x128xf32> to vector<16x128xf32>
    %94 = vector.extract_strided_slice %91 {offsets = [2, 0, 0], sizes = [2, 8, 128], strides = [1, 1, 1]} : vector<4x8x128xf32> to vector<2x8x128xf32>
    %95 = vector.shape_cast %94 : vector<2x8x128xf32> to vector<16x128xf32>
    %96 = tpu.concatenate %93, %95 in 1 : vector<16x128xf32>, vector<16x128xf32> -> vector<16x256xf32>
    %97 = arith.truncf %96 : vector<16x256xf32> to vector<16x256xbf16>
    %cst_54 = arith.constant dense<0.000000e+00> : vector<16x256xf32>
    %98 = tpu.matmul %97, %31, %cst_54 {dimension_numbers = #tpu.dot_dimension_numbers<[1], [0], [0], [1], [0, 0, 1, 1], [], []>} : vector<16x256xbf16>, vector<256x256xbf16>, vector<16x256xf32> -> vector<16x256xf32>
    %99 = vector.broadcast %33 : vector<1x256xf32> to vector<16x256xf32>
    %100 = arith.addf %98, %99 : vector<16x256xf32>
    %101 = arith.addf %24, %100 : vector<16x256xf32>
    %cst_55 = arith.constant dense<0.000000e+00> : vector<16xf32>
    %102 = vector.multi_reduction <add>, %101, %cst_55 [1] : vector<16x256xf32> to vector<16xf32>
    %103 = vector.shape_cast %102 : vector<16xf32> to vector<16x1xf32>
    %cst_56 = arith.constant 2.560000e+02 : f32
    %104 = vector.broadcast %cst_56 : f32 to vector<16x1xf32>
    %105 = arith.divf %103, %104 : vector<16x1xf32>
    %106 = vector.broadcast %105 : vector<16x1xf32> to vector<16x256xf32>
    %107 = arith.subf %101, %106 : vector<16x256xf32>
    %108 = arith.mulf %107, %107 : vector<16x256xf32>
    %cst_57 = arith.constant dense<0.000000e+00> : vector<16xf32>
    %109 = vector.multi_reduction <add>, %108, %cst_57 [1] : vector<16x256xf32> to vector<16xf32>
    %110 = vector.shape_cast %109 : vector<16xf32> to vector<16x1xf32>
    %cst_58 = arith.constant 2.560000e+02 : f32
    %111 = vector.broadcast %cst_58 : f32 to vector<16x1xf32>
    %112 = arith.divf %110, %111 : vector<16x1xf32>
    %113 = vector.broadcast %105 : vector<16x1xf32> to vector<16x256xf32>
    %114 = arith.subf %101, %113 : vector<16x256xf32>
    %cst_59 = arith.constant 9.99999974E-6 : f32
    %115 = vector.broadcast %cst_59 : f32 to vector<16x1xf32>
    %116 = arith.addf %112, %115 : vector<16x1xf32>
    %117 = math.rsqrt %116 : vector<16x1xf32>
    %118 = vector.broadcast %117 : vector<16x1xf32> to vector<16x256xf32>
    %119 = arith.mulf %114, %118 : vector<16x256xf32>
    %120 = vector.broadcast %35 : vector<1x256xf32> to vector<16x256xf32>
    %121 = arith.mulf %119, %120 : vector<16x256xf32>
    %122 = vector.broadcast %37 : vector<1x256xf32> to vector<16x256xf32>
    %123 = arith.addf %121, %122 : vector<16x256xf32>
    %124 = arith.truncf %123 : vector<16x256xf32> to vector<16x256xbf16>
    %cst_60 = arith.constant dense<0.000000e+00> : vector<16x512xf32>
    %125 = tpu.matmul %124, %39, %cst_60 {dimension_numbers = #tpu.dot_dimension_numbers<[1], [0], [0], [1], [0, 0, 1, 1], [], []>} : vector<16x256xbf16>, vector<256x512xbf16>, vector<16x512xf32> -> vector<16x512xf32>
    %126 = vector.broadcast %41 : vector<1x512xf32> to vector<16x512xf32>
    %127 = arith.addf %125, %126 : vector<16x512xf32>
    %cst_61 = arith.constant 5.000000e-01 : f32
    %128 = vector.broadcast %cst_61 : f32 to vector<16x512xf32>
    %129 = arith.mulf %128, %127 : vector<16x512xf32>
    %cst_62 = arith.constant 4.471500e-02 : f32
    %130 = vector.broadcast %cst_62 : f32 to vector<16x512xf32>
    %131 = arith.mulf %130, %127 : vector<16x512xf32>
    %132 = arith.mulf %131, %127 : vector<16x512xf32>
    %133 = arith.mulf %132, %127 : vector<16x512xf32>
    %134 = arith.addf %127, %133 : vector<16x512xf32>
    %cst_63 = arith.constant 0.797884583 : f32
    %135 = vector.broadcast %cst_63 : f32 to vector<16x512xf32>
    %136 = arith.mulf %135, %134 : vector<16x512xf32>
    %137 = math.tanh %136 : vector<16x512xf32>
    %cst_64 = arith.constant 1.000000e+00 : f32
    %138 = vector.broadcast %cst_64 : f32 to vector<16x512xf32>
    %139 = arith.addf %138, %137 : vector<16x512xf32>
    %140 = arith.mulf %129, %139 : vector<16x512xf32>
    %141 = arith.truncf %140 : vector<16x512xf32> to vector<16x512xbf16>
    %cst_65 = arith.constant dense<0.000000e+00> : vector<16x256xf32>
    %142 = tpu.matmul %141, %43, %cst_65 {dimension_numbers = #tpu.dot_dimension_numbers<[1], [0], [0], [1], [0, 0, 1, 1], [], []>} : vector<16x512xbf16>, vector<512x256xbf16>, vector<16x256xf32> -> vector<16x256xf32>
    %143 = arith.addf %123, %142 : vector<16x256xf32>
    %144 = vector.broadcast %45 : vector<1x256xf32> to vector<16x256xf32>
    %145 = arith.addf %143, %144 : vector<16x256xf32>
    %cst_66 = arith.constant dense<0.000000e+00> : vector<16xf32>
    %146 = vector.multi_reduction <add>, %145, %cst_66 [1] : vector<16x256xf32> to vector<16xf32>
    %147 = vector.shape_cast %146 : vector<16xf32> to vector<16x1xf32>
    %cst_67 = arith.constant 2.560000e+02 : f32
    %148 = vector.broadcast %cst_67 : f32 to vector<16x1xf32>
    %149 = arith.divf %147, %148 : vector<16x1xf32>
    %150 = vector.broadcast %149 : vector<16x1xf32> to vector<16x256xf32>
    %151 = arith.subf %145, %150 : vector<16x256xf32>
    %152 = arith.mulf %151, %151 : vector<16x256xf32>
    %cst_68 = arith.constant dense<0.000000e+00> : vector<16xf32>
    %153 = vector.multi_reduction <add>, %152, %cst_68 [1] : vector<16x256xf32> to vector<16xf32>
    %154 = vector.shape_cast %153 : vector<16xf32> to vector<16x1xf32>
    %cst_69 = arith.constant 2.560000e+02 : f32
    %155 = vector.broadcast %cst_69 : f32 to vector<16x1xf32>
    %156 = arith.divf %154, %155 : vector<16x1xf32>
    %157 = vector.broadcast %149 : vector<16x1xf32> to vector<16x256xf32>
    %158 = arith.subf %145, %157 : vector<16x256xf32>
    %cst_70 = arith.constant 9.99999974E-6 : f32
    %159 = vector.broadcast %cst_70 : f32 to vector<16x1xf32>
    %160 = arith.addf %156, %159 : vector<16x1xf32>
    %161 = math.rsqrt %160 : vector<16x1xf32>
    %162 = vector.broadcast %161 : vector<16x1xf32> to vector<16x256xf32>
    %163 = arith.mulf %158, %162 : vector<16x256xf32>
    %164 = vector.broadcast %47 : vector<1x256xf32> to vector<16x256xf32>
    %165 = arith.mulf %163, %164 : vector<16x256xf32>
    %166 = vector.broadcast %49 : vector<1x256xf32> to vector<16x256xf32>
    %167 = arith.addf %165, %166 : vector<16x256xf32>
    %c1 = arith.constant 1 : index
    %c0_71 = arith.constant 0 : index
    %c0_72 = arith.constant 0 : index
    %168 = vector.load %arg5[%c1, %c0_71, %c0_72] : memref<2x256x768xbf16, #tpu.memory_space<vmem>>, vector<1x256x768xbf16>
    %169 = vector.shape_cast %168 : vector<1x256x768xbf16> to vector<256x768xbf16>
    %c1_73 = arith.constant 1 : index
    %c0_74 = arith.constant 0 : index
    %c0_75 = arith.constant 0 : index
    %170 = vector.load %arg6[%c1_73, %c0_74, %c0_75] : memref<2x1x768xf32, #tpu.memory_space<vmem>>, vector<1x1x768xf32>
    %171 = vector.shape_cast %170 : vector<1x1x768xf32> to vector<1x768xf32>
    %c1_76 = arith.constant 1 : index
    %c0_77 = arith.constant 0 : index
    %c0_78 = arith.constant 0 : index
    %172 = vector.load %arg7[%c1_76, %c0_77, %c0_78] : memref<2x256x256xbf16, #tpu.memory_space<vmem>>, vector<1x256x256xbf16>
    %173 = vector.shape_cast %172 : vector<1x256x256xbf16> to vector<256x256xbf16>
    %c1_79 = arith.constant 1 : index
    %c0_80 = arith.constant 0 : index
    %c0_81 = arith.constant 0 : index
    %174 = vector.load %arg8[%c1_79, %c0_80, %c0_81] : memref<2x1x256xf32, #tpu.memory_space<vmem>>, vector<1x1x256xf32>
    %175 = vector.shape_cast %174 : vector<1x1x256xf32> to vector<1x256xf32>
    %c1_82 = arith.constant 1 : index
    %c0_83 = arith.constant 0 : index
    %c0_84 = arith.constant 0 : index
    %176 = vector.load %arg9[%c1_82, %c0_83, %c0_84] : memref<2x1x256xf32, #tpu.memory_space<vmem>>, vector<1x1x256xf32>
    %177 = vector.shape_cast %176 : vector<1x1x256xf32> to vector<1x256xf32>
    %c1_85 = arith.constant 1 : index
    %c0_86 = arith.constant 0 : index
    %c0_87 = arith.constant 0 : index
    %178 = vector.load %arg10[%c1_85, %c0_86, %c0_87] : memref<2x1x256xf32, #tpu.memory_space<vmem>>, vector<1x1x256xf32>
    %179 = vector.shape_cast %178 : vector<1x1x256xf32> to vector<1x256xf32>
    %c1_88 = arith.constant 1 : index
    %c0_89 = arith.constant 0 : index
    %c0_90 = arith.constant 0 : index
    %180 = vector.load %arg11[%c1_88, %c0_89, %c0_90] : memref<2x256x512xbf16, #tpu.memory_space<vmem>>, vector<1x256x512xbf16>
    %181 = vector.shape_cast %180 : vector<1x256x512xbf16> to vector<256x512xbf16>
    %c1_91 = arith.constant 1 : index
    %c0_92 = arith.constant 0 : index
    %c0_93 = arith.constant 0 : index
    %182 = vector.load %arg12[%c1_91, %c0_92, %c0_93] : memref<2x1x512xf32, #tpu.memory_space<vmem>>, vector<1x1x512xf32>
    %183 = vector.shape_cast %182 : vector<1x1x512xf32> to vector<1x512xf32>
    %c1_94 = arith.constant 1 : index
    %c0_95 = arith.constant 0 : index
    %c0_96 = arith.constant 0 : index
    %184 = vector.load %arg13[%c1_94, %c0_95, %c0_96] : memref<2x512x256xbf16, #tpu.memory_space<vmem>>, vector<1x512x256xbf16>
    %185 = vector.shape_cast %184 : vector<1x512x256xbf16> to vector<512x256xbf16>
    %c1_97 = arith.constant 1 : index
    %c0_98 = arith.constant 0 : index
    %c0_99 = arith.constant 0 : index
    %186 = vector.load %arg14[%c1_97, %c0_98, %c0_99] : memref<2x1x256xf32, #tpu.memory_space<vmem>>, vector<1x1x256xf32>
    %187 = vector.shape_cast %186 : vector<1x1x256xf32> to vector<1x256xf32>
    %c1_100 = arith.constant 1 : index
    %c0_101 = arith.constant 0 : index
    %c0_102 = arith.constant 0 : index
    %188 = vector.load %arg15[%c1_100, %c0_101, %c0_102] : memref<2x1x256xf32, #tpu.memory_space<vmem>>, vector<1x1x256xf32>
    %189 = vector.shape_cast %188 : vector<1x1x256xf32> to vector<1x256xf32>
    %c1_103 = arith.constant 1 : index
    %c0_104 = arith.constant 0 : index
    %c0_105 = arith.constant 0 : index
    %190 = vector.load %arg16[%c1_103, %c0_104, %c0_105] : memref<2x1x256xf32, #tpu.memory_space<vmem>>, vector<1x1x256xf32>
    %191 = vector.shape_cast %190 : vector<1x1x256xf32> to vector<1x256xf32>
    %192 = arith.truncf %167 : vector<16x256xf32> to vector<16x256xbf16>
    %cst_106 = arith.constant dense<0.000000e+00> : vector<16x768xf32>
    %193 = tpu.matmul %192, %169, %cst_106 {dimension_numbers = #tpu.dot_dimension_numbers<[1], [0], [0], [1], [0, 0, 1, 1], [], []>} : vector<16x256xbf16>, vector<256x768xbf16>, vector<16x768xf32> -> vector<16x768xf32>
    %194 = vector.broadcast %171 : vector<1x768xf32> to vector<16x768xf32>
    %195 = arith.addf %193, %194 : vector<16x768xf32>
    %196 = vector.extract_strided_slice %195 {offsets = [0, 0], sizes = [16, 256], strides = [1, 1]} : vector<16x768xf32> to vector<16x256xf32>
    %cst_107 = arith.constant 0.0883883461 : f32
    %197 = vector.broadcast %cst_107 : f32 to vector<16x256xf32>
    %198 = arith.mulf %196, %197 : vector<16x256xf32>
    %199 = vector.extract_strided_slice %198 {offsets = [0, 0], sizes = [16, 128], strides = [1, 1]} : vector<16x256xf32> to vector<16x128xf32>
    %200 = vector.shape_cast %199 : vector<16x128xf32> to vector<2x8x128xf32>
    %201 = vector.extract_strided_slice %198 {offsets = [0, 128], sizes = [16, 128], strides = [1, 1]} : vector<16x256xf32> to vector<16x128xf32>
    %202 = vector.shape_cast %201 : vector<16x128xf32> to vector<2x8x128xf32>
    %203 = tpu.concatenate %200, %202 in 0 : vector<2x8x128xf32>, vector<2x8x128xf32> -> vector<4x8x128xf32>
    %204 = arith.truncf %203 : vector<4x8x128xf32> to vector<4x8x128xbf16>
    %205 = vector.extract_strided_slice %195 {offsets = [0, 256], sizes = [16, 256], strides = [1, 1]} : vector<16x768xf32> to vector<16x256xf32>
    %206 = vector.extract_strided_slice %205 {offsets = [0, 0], sizes = [16, 128], strides = [1, 1]} : vector<16x256xf32> to vector<16x128xf32>
    %207 = vector.shape_cast %206 : vector<16x128xf32> to vector<2x8x128xf32>
    %208 = vector.extract_strided_slice %205 {offsets = [0, 128], sizes = [16, 128], strides = [1, 1]} : vector<16x256xf32> to vector<16x128xf32>
    %209 = vector.shape_cast %208 : vector<16x128xf32> to vector<2x8x128xf32>
    %210 = tpu.concatenate %207, %209 in 0 : vector<2x8x128xf32>, vector<2x8x128xf32> -> vector<4x8x128xf32>
    %211 = arith.truncf %210 : vector<4x8x128xf32> to vector<4x8x128xbf16>
    %212 = vector.extract_strided_slice %195 {offsets = [0, 512], sizes = [16, 256], strides = [1, 1]} : vector<16x768xf32> to vector<16x256xf32>
    %213 = vector.extract_strided_slice %212 {offsets = [0, 0], sizes = [16, 128], strides = [1, 1]} : vector<16x256xf32> to vector<16x128xf32>
    %214 = vector.shape_cast %213 : vector<16x128xf32> to vector<2x8x128xf32>
    %215 = vector.extract_strided_slice %212 {offsets = [0, 128], sizes = [16, 128], strides = [1, 1]} : vector<16x256xf32> to vector<16x128xf32>
    %216 = vector.shape_cast %215 : vector<16x128xf32> to vector<2x8x128xf32>
    %217 = tpu.concatenate %214, %216 in 0 : vector<2x8x128xf32>, vector<2x8x128xf32> -> vector<4x8x128xf32>
    %218 = arith.truncf %217 : vector<4x8x128xf32> to vector<4x8x128xbf16>
    "tpu.trace_start"() <{level = 10 : i32, message = "bqd,bkd->bqk"}> : () -> ()
    %cst_108 = arith.constant dense<0.000000e+00> : vector<4x8x8xf32>
    %219 = tpu.matmul %204, %211, %cst_108 {dimension_numbers = #tpu.dot_dimension_numbers<[2], [2], [1], [1], [0, 0, 0, 1, 1, 1], [0], [0]>} : vector<4x8x128xbf16>, vector<4x8x128xbf16>, vector<4x8x8xf32> -> vector<4x8x8xf32>
    "tpu.trace_stop"() : () -> ()
    %220 = vector.broadcast %25 : vector<4x1x8xf32> to vector<4x8x8xf32>
    %221 = arith.addf %219, %220 : vector<4x8x8xf32>
    %cst_109 = arith.constant dense<0xFF800000> : vector<4x8xf32>
    %222 = vector.multi_reduction <maximumf>, %221, %cst_109 [2] : vector<4x8x8xf32> to vector<4x8xf32>
    %223 = vector.shape_cast %222 : vector<4x8xf32> to vector<4x8x1xf32>
    %224 = vector.broadcast %223 : vector<4x8x1xf32> to vector<4x8x8xf32>
    %225 = arith.subf %221, %224 : vector<4x8x8xf32>
    %226 = math.exp %225 : vector<4x8x8xf32>
    %cst_110 = arith.constant dense<0.000000e+00> : vector<4x8xf32>
    %227 = vector.multi_reduction <add>, %226, %cst_110 [2] : vector<4x8x8xf32> to vector<4x8xf32>
    %228 = vector.shape_cast %227 : vector<4x8xf32> to vector<4x8x1xf32>
    %229 = tpu.reciprocal %228 {approx = true} : vector<4x8x1xf32> -> vector<4x8x1xf32>
    %230 = vector.broadcast %229 : vector<4x8x1xf32> to vector<4x8x8xf32>
    %231 = arith.mulf %226, %230 : vector<4x8x8xf32>
    %232 = arith.truncf %231 : vector<4x8x8xf32> to vector<4x8x8xbf16>
    "tpu.trace_start"() <{level = 10 : i32, message = "bqk,bkd->bqd"}> : () -> ()
    %cst_111 = arith.constant dense<0.000000e+00> : vector<4x8x128xf32>
    %233 = tpu.matmul %232, %218, %cst_111 {dimension_numbers = #tpu.dot_dimension_numbers<[2], [1], [1], [2], [0, 0, 0, 1, 1, 2], [0], [0]>} : vector<4x8x8xbf16>, vector<4x8x128xbf16>, vector<4x8x128xf32> -> vector<4x8x128xf32>
    "tpu.trace_stop"() : () -> ()
    %234 = vector.extract_strided_slice %233 {offsets = [0, 0, 0], sizes = [2, 8, 128], strides = [1, 1, 1]} : vector<4x8x128xf32> to vector<2x8x128xf32>
    %235 = vector.shape_cast %234 : vector<2x8x128xf32> to vector<16x128xf32>
    %236 = vector.extract_strided_slice %233 {offsets = [2, 0, 0], sizes = [2, 8, 128], strides = [1, 1, 1]} : vector<4x8x128xf32> to vector<2x8x128xf32>
    %237 = vector.shape_cast %236 : vector<2x8x128xf32> to vector<16x128xf32>
    %238 = tpu.concatenate %235, %237 in 1 : vector<16x128xf32>, vector<16x128xf32> -> vector<16x256xf32>
    %239 = arith.truncf %238 : vector<16x256xf32> to vector<16x256xbf16>
    %cst_112 = arith.constant dense<0.000000e+00> : vector<16x256xf32>
    %240 = tpu.matmul %239, %173, %cst_112 {dimension_numbers = #tpu.dot_dimension_numbers<[1], [0], [0], [1], [0, 0, 1, 1], [], []>} : vector<16x256xbf16>, vector<256x256xbf16>, vector<16x256xf32> -> vector<16x256xf32>
    %241 = vector.broadcast %175 : vector<1x256xf32> to vector<16x256xf32>
    %242 = arith.addf %240, %241 : vector<16x256xf32>
    %243 = arith.addf %167, %242 : vector<16x256xf32>
    %cst_113 = arith.constant dense<0.000000e+00> : vector<16xf32>
    %244 = vector.multi_reduction <add>, %243, %cst_113 [1] : vector<16x256xf32> to vector<16xf32>
    %245 = vector.shape_cast %244 : vector<16xf32> to vector<16x1xf32>
    %cst_114 = arith.constant 2.560000e+02 : f32
    %246 = vector.broadcast %cst_114 : f32 to vector<16x1xf32>
    %247 = arith.divf %245, %246 : vector<16x1xf32>
    %248 = vector.broadcast %247 : vector<16x1xf32> to vector<16x256xf32>
    %249 = arith.subf %243, %248 : vector<16x256xf32>
    %250 = arith.mulf %249, %249 : vector<16x256xf32>
    %cst_115 = arith.constant dense<0.000000e+00> : vector<16xf32>
    %251 = vector.multi_reduction <add>, %250, %cst_115 [1] : vector<16x256xf32> to vector<16xf32>
    %252 = vector.shape_cast %251 : vector<16xf32> to vector<16x1xf32>
    %cst_116 = arith.constant 2.560000e+02 : f32
    %253 = vector.broadcast %cst_116 : f32 to vector<16x1xf32>
    %254 = arith.divf %252, %253 : vector<16x1xf32>
    %255 = vector.broadcast %247 : vector<16x1xf32> to vector<16x256xf32>
    %256 = arith.subf %243, %255 : vector<16x256xf32>
    %cst_117 = arith.constant 9.99999974E-6 : f32
    %257 = vector.broadcast %cst_117 : f32 to vector<16x1xf32>
    %258 = arith.addf %254, %257 : vector<16x1xf32>
    %259 = math.rsqrt %258 : vector<16x1xf32>
    %260 = vector.broadcast %259 : vector<16x1xf32> to vector<16x256xf32>
    %261 = arith.mulf %256, %260 : vector<16x256xf32>
    %262 = vector.broadcast %177 : vector<1x256xf32> to vector<16x256xf32>
    %263 = arith.mulf %261, %262 : vector<16x256xf32>
    %264 = vector.broadcast %179 : vector<1x256xf32> to vector<16x256xf32>
    %265 = arith.addf %263, %264 : vector<16x256xf32>
    %266 = arith.truncf %265 : vector<16x256xf32> to vector<16x256xbf16>
    %cst_118 = arith.constant dense<0.000000e+00> : vector<16x512xf32>
    %267 = tpu.matmul %266, %181, %cst_118 {dimension_numbers = #tpu.dot_dimension_numbers<[1], [0], [0], [1], [0, 0, 1, 1], [], []>} : vector<16x256xbf16>, vector<256x512xbf16>, vector<16x512xf32> -> vector<16x512xf32>
    %268 = vector.broadcast %183 : vector<1x512xf32> to vector<16x512xf32>
    %269 = arith.addf %267, %268 : vector<16x512xf32>
    %cst_119 = arith.constant 5.000000e-01 : f32
    %270 = vector.broadcast %cst_119 : f32 to vector<16x512xf32>
    %271 = arith.mulf %270, %269 : vector<16x512xf32>
    %cst_120 = arith.constant 4.471500e-02 : f32
    %272 = vector.broadcast %cst_120 : f32 to vector<16x512xf32>
    %273 = arith.mulf %272, %269 : vector<16x512xf32>
    %274 = arith.mulf %273, %269 : vector<16x512xf32>
    %275 = arith.mulf %274, %269 : vector<16x512xf32>
    %276 = arith.addf %269, %275 : vector<16x512xf32>
    %cst_121 = arith.constant 0.797884583 : f32
    %277 = vector.broadcast %cst_121 : f32 to vector<16x512xf32>
    %278 = arith.mulf %277, %276 : vector<16x512xf32>
    %279 = math.tanh %278 : vector<16x512xf32>
    %cst_122 = arith.constant 1.000000e+00 : f32
    %280 = vector.broadcast %cst_122 : f32 to vector<16x512xf32>
    %281 = arith.addf %280, %279 : vector<16x512xf32>
    %282 = arith.mulf %271, %281 : vector<16x512xf32>
    %283 = arith.truncf %282 : vector<16x512xf32> to vector<16x512xbf16>
    %cst_123 = arith.constant dense<0.000000e+00> : vector<16x256xf32>
    %284 = tpu.matmul %283, %185, %cst_123 {dimension_numbers = #tpu.dot_dimension_numbers<[1], [0], [0], [1], [0, 0, 1, 1], [], []>} : vector<16x512xbf16>, vector<512x256xbf16>, vector<16x256xf32> -> vector<16x256xf32>
    %285 = arith.addf %265, %284 : vector<16x256xf32>
    %286 = vector.broadcast %187 : vector<1x256xf32> to vector<16x256xf32>
    %287 = arith.addf %285, %286 : vector<16x256xf32>
    %cst_124 = arith.constant dense<0.000000e+00> : vector<16xf32>
    %288 = vector.multi_reduction <add>, %287, %cst_124 [1] : vector<16x256xf32> to vector<16xf32>
    %289 = vector.shape_cast %288 : vector<16xf32> to vector<16x1xf32>
    %cst_125 = arith.constant 2.560000e+02 : f32
    %290 = vector.broadcast %cst_125 : f32 to vector<16x1xf32>
    %291 = arith.divf %289, %290 : vector<16x1xf32>
    %292 = vector.broadcast %291 : vector<16x1xf32> to vector<16x256xf32>
    %293 = arith.subf %287, %292 : vector<16x256xf32>
    %294 = arith.mulf %293, %293 : vector<16x256xf32>
    %cst_126 = arith.constant dense<0.000000e+00> : vector<16xf32>
    %295 = vector.multi_reduction <add>, %294, %cst_126 [1] : vector<16x256xf32> to vector<16xf32>
    %296 = vector.shape_cast %295 : vector<16xf32> to vector<16x1xf32>
    %cst_127 = arith.constant 2.560000e+02 : f32
    %297 = vector.broadcast %cst_127 : f32 to vector<16x1xf32>
    %298 = arith.divf %296, %297 : vector<16x1xf32>
    %299 = vector.broadcast %291 : vector<16x1xf32> to vector<16x256xf32>
    %300 = arith.subf %287, %299 : vector<16x256xf32>
    %cst_128 = arith.constant 9.99999974E-6 : f32
    %301 = vector.broadcast %cst_128 : f32 to vector<16x1xf32>
    %302 = arith.addf %298, %301 : vector<16x1xf32>
    %303 = math.rsqrt %302 : vector<16x1xf32>
    %304 = vector.broadcast %303 : vector<16x1xf32> to vector<16x256xf32>
    %305 = arith.mulf %300, %304 : vector<16x256xf32>
    %306 = vector.broadcast %189 : vector<1x256xf32> to vector<16x256xf32>
    %307 = arith.mulf %305, %306 : vector<16x256xf32>
    %308 = vector.broadcast %191 : vector<1x256xf32> to vector<16x256xf32>
    %309 = arith.addf %307, %308 : vector<16x256xf32>
    %c0_129 = arith.constant 0 : index
    %c0_130 = arith.constant 0 : index
    %310 = vector.load %arg2[%c0_129, %c0_130] : memref<2x16xf32, #tpu.memory_space<vmem>>, vector<2x16xf32>
    %c0_131 = arith.constant 0 : index
    %c0_132 = arith.constant 0 : index
    %311 = vector.load %arg17[%c0_131, %c0_132] : memref<256x256xbf16, #tpu.memory_space<vmem>>, vector<256x256xbf16>
    %312 = arith.truncf %310 : vector<2x16xf32> to vector<2x16xbf16>
    %313 = arith.truncf %309 : vector<16x256xf32> to vector<16x256xbf16>
    %cst_133 = arith.constant dense<0.000000e+00> : vector<2x256xf32>
    %314 = tpu.matmul %312, %313, %cst_133 {dimension_numbers = #tpu.dot_dimension_numbers<[1], [0], [0], [1], [0, 0, 1, 1], [], []>} : vector<2x16xbf16>, vector<16x256xbf16>, vector<2x256xf32> -> vector<2x256xf32>
    %cst_134 = arith.constant dense<0.000000e+00> : vector<2xf32>
    %315 = vector.multi_reduction <add>, %310, %cst_134 [1] : vector<2x16xf32> to vector<2xf32>
    %316 = vector.shape_cast %315 : vector<2xf32> to vector<2x1xf32>
    %cst_135 = arith.constant 1.000000e+00 : f32
    %317 = vector.broadcast %cst_135 : f32 to vector<2x1xf32>
    %318 = arith.maximumf %316, %317 : vector<2x1xf32>
    %319 = tpu.reciprocal %318 {approx = true} : vector<2x1xf32> -> vector<2x1xf32>
    %320 = vector.broadcast %319 : vector<2x1xf32> to vector<2x256xf32>
    %321 = arith.mulf %314, %320 : vector<2x256xf32>
    %322 = arith.truncf %321 : vector<2x256xf32> to vector<2x256xbf16>
    %cst_136 = arith.constant dense<0.000000e+00> : vector<2x256xf32>
    %323 = tpu.matmul %322, %311, %cst_136 {dimension_numbers = #tpu.dot_dimension_numbers<[1], [0], [0], [1], [0, 0, 1, 1], [], []>} : vector<2x256xbf16>, vector<256x256xbf16>, vector<2x256xf32> -> vector<2x256xf32>
    %c0_137 = arith.constant 0 : index
    %c0_138 = arith.constant 0 : index
    %324 = vector.load %arg18[%c0_137, %c0_138] : memref<2x256xf32, #tpu.memory_space<vmem>>, vector<2x256xf32>
    tpu.vector_store %arg18[%c0_137, %c0_138], %323 {strides = array<i32>} : memref<2x256xf32, #tpu.memory_space<vmem>>, vector<2x256xf32>,
    return
  }
}

</mosaic_0001>

<llo_original>
// kernel: lmodel_forward_pallas.1
$region0: #{lmodel_forward_pallas.1}
  #allocation0 [shape = 'u32[]', space=smem, size = 0x4, offset = 0x4, fixed_abs, tag = 'smem constant byte address 0x4 - core index']
  #allocation1 [shape = 'u32[72,128]{1,0:T(1,128)}', space=vmem, size = 0x9000, scoped, tag = 'internal scratch']
  %s0 = inlined_call_operand.vmem [shape: f32[16,256], index: 0, kind: input, shape index: {}]
  %s1 = inlined_call_operand.vmem [shape: f32[4,1,8], index: 1, kind: input, shape index: {}]
  %s2 = inlined_call_operand.vmem [shape: f32[2,16], index: 2, kind: input, shape index: {}]
  %s3 = inlined_call_operand.vmem [shape: f32[1,256], index: 3, kind: input, shape index: {}]
  %s4 = inlined_call_operand.vmem [shape: f32[1,256], index: 4, kind: input, shape index: {}]
  %s5 = inlined_call_operand.hbm [shape: bf16[2,256,768], index: 5, kind: input, shape index: {}]
  %s6 = inlined_call_operand.vmem [shape: f32[2,1,768], index: 6, kind: input, shape index: {}]
  %s7 = inlined_call_operand.hbm [shape: bf16[2,256,256], index: 7, kind: input, shape index: {}]
  %s8 = inlined_call_operand.vmem [shape: f32[2,1,256], index: 8, kind: input, shape index: {}]
  %s9 = inlined_call_operand.vmem [shape: f32[2,1,256], index: 9, kind: input, shape index: {}]
  %s10 = inlined_call_operand.vmem [shape: f32[2,1,256], index: 10, kind: input, shape index: {}]
  %s11 = inlined_call_operand.hbm [shape: bf16[2,256,512], index: 11, kind: input, shape index: {}]
  %s12 = inlined_call_operand.vmem [shape: f32[2,1,512], index: 12, kind: input, shape index: {}]
  %s13 = inlined_call_operand.hbm [shape: bf16[2,512,256], index: 13, kind: input, shape index: {}]
  %s14 = inlined_call_operand.vmem [shape: f32[2,1,256], index: 14, kind: input, shape index: {}]
  %s15 = inlined_call_operand.vmem [shape: f32[2,1,256], index: 15, kind: input, shape index: {}]
  %s16 = inlined_call_operand.vmem [shape: f32[2,1,256], index: 16, kind: input, shape index: {}]
  %s17 = inlined_call_operand.hbm [shape: bf16[256,256], index: 17, kind: input, shape index: {}]
  %s18 = inlined_call_operand.hbm [shape: f32[2,256], index: 18, kind: output, shape index: {}]
  %s19 = sld [smem:[#allocation0]]
  $region102: #{lmodel_forward_pallas.1} parent=0
    _
  %s21 = ssub.s32 1, %s19
  %s22 = scalar_select 0, %s21, %s19
  $region1: #{lmodel_forward_pallas.1} parent=0
    #allocation2 [shape = 'u8[786432]{0}', space=vmem, size = 0xc0000, scoped, tag = 'input window, operand 5, single buffered']
    #allocation3 [shape = 's32[1]{0}', space=sflag, size = 0x4, scoped, tag = 'scoped memory for lmodel_forward_pallas.1']
    #allocation4 [shape = 's32[1]{0}', space=sflag, size = 0x4, scoped, tag = 'scoped memory for lmodel_forward_pallas.1']
    #allocation5 [shape = 'u8[262144]{0}', space=vmem, size = 0x40000, scoped, tag = 'input window, operand 7, single buffered']
    #allocation6 [shape = 's32[1]{0}', space=sflag, size = 0x4, scoped, tag = 'scoped memory for lmodel_forward_pallas.1']
    #allocation7 [shape = 'u8[524288]{0}', space=vmem, size = 0x80000, scoped, tag = 'input window, operand 11, single buffered']
    #allocation8 [shape = 'u8[524288]{0}', space=vmem, size = 0x80000, scoped, tag = 'input window, operand 13, single buffered']
    #allocation9 [shape = 's32[1]{0}', space=sflag, size = 0x4, scoped, tag = 'scoped memory for lmodel_forward_pallas.1']
    #allocation10 [shape = 'u8[131072]{0}', space=vmem, size = 0x20000, scoped, tag = 'input window, operand 17, single buffered']
    #allocation11 [shape = 'u8[2048]{0}', space=vmem, size = 0x800, scoped, tag = 'output window, operand 0, single buffered']
    %23 = vsyncpa [#allocation3], 0
    %24 = vsyncpa [#allocation6], 0
    %25 = vsyncpa [#allocation9], 0
    %26 = vsyncpa [#allocation4], 0
    // Predicated region
    $region2: #{lmodel_forward_pallas.1} parent=1 // pred_check
      _
    $region3: #{lmodel_forward_pallas.1} parent=1 // pred_check_branch
      %28 = sbr.rel (0) target = $region5
    $region4: #{lmodel_forward_pallas.1} parent=1 // pred_region
      _
    $region5: #{lmodel_forward_pallas.1} parent=1 // pred_fallthru
      _
    // Predicated region
    $region6: #{lmodel_forward_pallas.1} parent=1 // pred_check
      _
    $region7: #{lmodel_forward_pallas.1} parent=1 // pred_check_branch
      %30 = sbr.rel (0) target = $region9
    $region8: #{lmodel_forward_pallas.1} parent=1 // pred_region
      _
    $region9: #{lmodel_forward_pallas.1} parent=1 // pred_fallthru
      _
    // Predicated region
    $region10: #{lmodel_forward_pallas.1} parent=1 // pred_check
      _
    $region11: #{lmodel_forward_pallas.1} parent=1 // pred_check_branch
      %32 = sbr.rel (0) target = $region13
    $region12: #{lmodel_forward_pallas.1} parent=1 // pred_region
      _
    $region13: #{lmodel_forward_pallas.1} parent=1 // pred_fallthru
      _
    // Predicated region
    $region14: #{lmodel_forward_pallas.1} parent=1 // pred_check
      _
    $region15: #{lmodel_forward_pallas.1} parent=1 // pred_check_branch
      %34 = sbr.rel (0) target = $region17
    $region16: #{lmodel_forward_pallas.1} parent=1 // pred_region
      _
    $region17: #{lmodel_forward_pallas.1} parent=1 // pred_fallthru
      _
    // Predicated region
    $region18: #{lmodel_forward_pallas.1} parent=1 // pred_check
      _
    $region19: #{lmodel_forward_pallas.1} parent=1 // pred_check_branch
      %36 = sbr.rel (0) target = $region21
    $region20: #{lmodel_forward_pallas.1} parent=1 // pred_region
      _
    $region21: #{lmodel_forward_pallas.1} parent=1 // pred_fallthru
      _
    // Predicated region
    $region22: #{lmodel_forward_pallas.1} parent=1 // pred_check
      _
    $region23: #{lmodel_forward_pallas.1} parent=1 // pred_check_branch
      %38 = sbr.rel (0) target = $region25
    $region24: #{lmodel_forward_pallas.1} parent=1 // pred_region
      %40 = vsyncadd [#allocation3], 0
      %s41 = sshll.u32 %s5, 4
      %s42 = int_to_ptr.hbm [resolvable:$true] %s41
      %s43 = sshll.u32 [#allocation2], 4
      %s44 = int_to_ptr.vmem [resolvable:$true] %s43
      %49 = dma.hbm_to_vmem [thread:$0]  %s42, 24576, %s44, [#allocation3], 384, 384, 24
    $region25: #{lmodel_forward_pallas.1} parent=1 // pred_fallthru
      _
    // Predicated region
    $region26: #{lmodel_forward_pallas.1} parent=1 // pred_check
      _
    $region27: #{lmodel_forward_pallas.1} parent=1 // pred_check_branch
      %51 = sbr.rel (0) target = $region29
    $region28: #{lmodel_forward_pallas.1} parent=1 // pred_region
      _
    $region29: #{lmodel_forward_pallas.1} parent=1 // pred_fallthru
      _
    // Predicated region
    $region30: #{lmodel_forward_pallas.1} parent=1 // pred_check
      _
    $region31: #{lmodel_forward_pallas.1} parent=1 // pred_check_branch
      %53 = sbr.rel (0) target = $region33
    $region32: #{lmodel_forward_pallas.1} parent=1 // pred_region
      %55 = vsyncadd [#allocation6], 0
      %s56 = sshll.u32 %s7, 4
      %s57 = int_to_ptr.hbm [resolvable:$true] %s56
      %s58 = sshll.u32 [#allocation5], 4
      %s59 = int_to_ptr.vmem [resolvable:$true] %s58
      %64 = dma.hbm_to_vmem [thread:$0]  %s57, 8192, %s59, [#allocation6], 128, 128, 8
    $region33: #{lmodel_forward_pallas.1} parent=1 // pred_fallthru
      _
    // Predicated region
    $region34: #{lmodel_forward_pallas.1} parent=1 // pred_check
      _
    $region35: #{lmodel_forward_pallas.1} parent=1 // pred_check_branch
      %66 = sbr.rel (0) target = $region37
    $region36: #{lmodel_forward_pallas.1} parent=1 // pred_region
      _
    $region37: #{lmodel_forward_pallas.1} parent=1 // pred_fallthru
      _
    // Predicated region
    $region38: #{lmodel_forward_pallas.1} parent=1 // pred_check
      _
    $region39: #{lmodel_forward_pallas.1} parent=1 // pred_check_branch
      %68 = sbr.rel (0) target = $region41
    $region40: #{lmodel_forward_pallas.1} parent=1 // pred_region
      _
    $region41: #{lmodel_forward_pallas.1} parent=1 // pred_fallthru
      _
    // Predicated region
    $region42: #{lmodel_forward_pallas.1} parent=1 // pred_check
      _
    $region43: #{lmodel_forward_pallas.1} parent=1 // pred_check_branch
      %70 = sbr.rel (0) target = $region45
    $region44: #{lmodel_forward_pallas.1} parent=1 // pred_region
      _
    $region45: #{lmodel_forward_pallas.1} parent=1 // pred_fallthru
      _
    // Predicated region
    $region46: #{lmodel_forward_pallas.1} parent=1 // pred_check
      _
    $region47: #{lmodel_forward_pallas.1} parent=1 // pred_check_branch
      %72 = sbr.rel (0) target = $region49
    $region48: #{lmodel_forward_pallas.1} parent=1 // pred_region
      %74 = vsyncadd [#allocation6], 0
      %s75 = sshll.u32 %s11, 4
      %s76 = int_to_ptr.hbm [resolvable:$true] %s75
      %s77 = sshll.u32 [#allocation7], 4
      %s78 = int_to_ptr.vmem [resolvable:$true] %s77
      %83 = dma.hbm_to_vmem [thread:$0]  %s76, 16384, %s78, [#allocation6], 256, 256, 16
    $region49: #{lmodel_forward_pallas.1} parent=1 // pred_fallthru
      _
    // Predicated region
    $region50: #{lmodel_forward_pallas.1} parent=1 // pred_check
      _
    $region51: #{lmodel_forward_pallas.1} parent=1 // pred_check_branch
      %85 = sbr.rel (0) target = $region53
    $region52: #{lmodel_forward_pallas.1} parent=1 // pred_region
      _
    $region53: #{lmodel_forward_pallas.1} parent=1 // pred_fallthru
      _
    // Predicated region
    $region54: #{lmodel_forward_pallas.1} parent=1 // pred_check
      _
    $region55: #{lmodel_forward_pallas.1} parent=1 // pred_check_branch
      %87 = sbr.rel (0) target = $region57
    $region56: #{lmodel_forward_pallas.1} parent=1 // pred_region
      %89 = vsyncadd [#allocation9], 0
      %s90 = sshll.u32 %s13, 4
      %s91 = int_to_ptr.hbm [resolvable:$true] %s90
      %s92 = sshll.u32 [#allocation8], 4
      %s93 = int_to_ptr.vmem [resolvable:$true] %s92
      %98 = dma.hbm_to_vmem [thread:$0]  %s91, 16384, %s93, [#allocation9], 128, 128, 8
    $region57: #{lmodel_forward_pallas.1} parent=1 // pred_fallthru
      _
    // Predicated region
    $region58: #{lmodel_forward_pallas.1} parent=1 // pred_check
      _
    $region59: #{lmodel_forward_pallas.1} parent=1 // pred_check_branch
      %100 = sbr.rel (0) target = $region61
    $region60: #{lmodel_forward_pallas.1} parent=1 // pred_region
      _
    $region61: #{lmodel_forward_pallas.1} parent=1 // pred_fallthru
      _
    // Predicated region
    $region62: #{lmodel_forward_pallas.1} parent=1 // pred_check
      _
    $region63: #{lmodel_forward_pallas.1} parent=1 // pred_check_branch
      %102 = sbr.rel (0) target = $region65
    $region64: #{lmodel_forward_pallas.1} parent=1 // pred_region
      _
    $region65: #{lmodel_forward_pallas.1} parent=1 // pred_fallthru
      _
    // Predicated region
    $region66: #{lmodel_forward_pallas.1} parent=1 // pred_check
      _
    $region67: #{lmodel_forward_pallas.1} parent=1 // pred_check_branch
      %104 = sbr.rel (0) target = $region69
    $region68: #{lmodel_forward_pallas.1} parent=1 // pred_region
      _
    $region69: #{lmodel_forward_pallas.1} parent=1 // pred_fallthru
      _
    // Predicated region
    $region70: #{lmodel_forward_pallas.1} parent=1 // pred_check
      _
    $region71: #{lmodel_forward_pallas.1} parent=1 // pred_check_branch
      %106 = sbr.rel (0) target = $region73
    $region72: #{lmodel_forward_pallas.1} parent=1 // pred_region
      %108 = vsyncadd [#allocation9], 0
      %s109 = sshll.u32 %s17, 4
      %s110 = int_to_ptr.hbm [resolvable:$true] %s109
      %s111 = sshll.u32 [#allocation10], 4
      %s112 = int_to_ptr.vmem [resolvable:$true] %s111
      %117 = dma.hbm_to_vmem [thread:$0]  %s110, 4096, %s112, [#allocation9], 128, 128, 8
    $region73: #{lmodel_forward_pallas.1} parent=1 // pred_fallthru
      _
    // Predicated region
    $region74: #{lmodel_forward_pallas.1} parent=1 // pred_check
      _
    $region75: #{lmodel_forward_pallas.1} parent=1 // pred_check_branch
      %119 = sbr.rel (0) target = $region77
    $region76: #{lmodel_forward_pallas.1} parent=1 // pred_region
      %121 = dma.done [#allocation3], 24576
    $region77: #{lmodel_forward_pallas.1} parent=1 // pred_fallthru
      _
    // Predicated region
    $region78: #{lmodel_forward_pallas.1} parent=1 // pred_check
      _
    $region79: #{lmodel_forward_pallas.1} parent=1 // pred_check_branch
      %123 = sbr.rel (0) target = $region81
    $region80: #{lmodel_forward_pallas.1} parent=1 // pred_region
      %125 = dma.done [#allocation6], 8192
    $region81: #{lmodel_forward_pallas.1} parent=1 // pred_fallthru
      _
    // Predicated region
    $region82: #{lmodel_forward_pallas.1} parent=1 // pred_check
      _
    $region83: #{lmodel_forward_pallas.1} parent=1 // pred_check_branch
      %127 = sbr.rel (0) target = $region85
    $region84: #{lmodel_forward_pallas.1} parent=1 // pred_region
      %129 = dma.done [#allocation6], 16384
    $region85: #{lmodel_forward_pallas.1} parent=1 // pred_fallthru
      _
    // Predicated region
    $region86: #{lmodel_forward_pallas.1} parent=1 // pred_check
      _
    $region87: #{lmodel_forward_pallas.1} parent=1 // pred_check_branch
      %131 = sbr.rel (0) target = $region89
    $region88: #{lmodel_forward_pallas.1} parent=1 // pred_region
      %133 = dma.done [#allocation9], 16384
    $region89: #{lmodel_forward_pallas.1} parent=1 // pred_fallthru
      _
    // Predicated region
    $region90: #{lmodel_forward_pallas.1} parent=1 // pred_check
      _
    $region91: #{lmodel_forward_pallas.1} parent=1 // pred_check_branch
      %135 = sbr.rel (0) target = $region93
    $region92: #{lmodel_forward_pallas.1} parent=1 // pred_region
      %137 = dma.done [#allocation9], 4096
    $region93: #{lmodel_forward_pallas.1} parent=1 // pred_fallthru
      _
    %v139 = vld [vmem:[%s0] sm:$0xff]
    %v140 = vld [vmem:[%s0 + $0x8] sm:$0xff]
    %v141 = vld [vmem:[%s0 + $0x10] sm:$0xff]
    %v142 = vld [vmem:[%s0 + $0x18] sm:$0xff]
    %v143 = vld [vmem:[%s3] sm:$0x3]
    %v144 = vld [vmem:[%s4] sm:$0x3]
    %v145 = vadd.f32 %v139, %v140
    %146 = vadd.xlane.f32.xlu0 %v145
    %v147 = vpop.xlane.xlu0 %146
    %v148 = vadd.f32 %v141, %v142
    %149 = vadd.xlane.f32.xlu0 %v148
    %v150 = vpop.xlane.xlu0 %149
    %v151 = vrcp.pop 256.0
    %v152 = vmul.f32 256.0, %v151
    %v153 = vsub.f32 1.0, %v152
    %v154 = vmul.f32 %v151, %v153
    %v155 = vadd.f32 %v151, %v154
    %vm156 = vweird.f32 %v151
    %v157 = vsel %vm156, %v151, %v155
    %v158 = vmul.f32 %v147, %v157
    %v159 = vmul.f32 %v150, %v157
    %v160 = vsub.f32 %v139, %v158
    %v161 = vsub.f32 %v140, %v158
    %v162 = vsub.f32 %v141, %v159
    %v163 = vsub.f32 %v142, %v159
    %v164 = vmul.f32 %v160, %v160
    %v165 = vmul.f32 %v161, %v161
    %v166 = vmul.f32 %v162, %v162
    %v167 = vmul.f32 %v163, %v163
    %v168 = vadd.f32 %v164, %v165
    %169 = vadd.xlane.f32.xlu0 %v168
    %v170 = vpop.xlane.xlu0 %169
    %v171 = vadd.f32 %v166, %v167
    %172 = vadd.xlane.f32.xlu0 %v171
    %v173 = vpop.xlane.xlu0 %172
    %v174 = vmul.f32 %v170, %v157
    %v175 = vmul.f32 %v173, %v157
    %v176 = vadd.f32 %v174, 1e-05
    %v177 = vadd.f32 %v175, 1e-05
    %v178 = vrsqrt.pop %v176
    %v179 = vmul.f32 %v178, %v176
    %v180 = vmul.f32 %v179, %v178
    %v181 = vmul.f32 0.5, %v180
    %v182 = vsub.f32 1.5, %v181
    %v183 = vmul.f32 %v178, %v182
    %vm184 = vweird.f32 %v176
    %vm185 = vweird.f32 %v178
    %vm186 = vmor %vm184, %vm185
    %v187 = vsel %vm186, %v178, %v183
    %v188 = vrsqrt.pop %v177
    %v189 = vmul.f32 %v188, %v177
    %v190 = vmul.f32 %v189, %v188
    %v191 = vmul.f32 0.5, %v190
    %v192 = vsub.f32 1.5, %v191
    %v193 = vmul.f32 %v188, %v192
    %vm194 = vweird.f32 %v177
    %vm195 = vweird.f32 %v188
    %vm196 = vmor %vm194, %vm195
    %v197 = vsel %vm196, %v188, %v193
    %v198 = vmul.f32 %v160, %v187
    %v199 = vmul.f32 %v161, %v187
    %v200 = vmul.f32 %v162, %v197
    %v201 = vmul.f32 %v163, %v197
    %v203 = vperm.slane %v143, 0
    %v204 = vperm.slane %v143, 1
    %v207 = vmul.f32 %v198, %v203
    %v208 = vmul.f32 %v199, %v204
    %v209 = vmul.f32 %v200, %v203
    %v210 = vmul.f32 %v201, %v204
    %v212 = vperm.slane %v144, 0
    %v213 = vperm.slane %v144, 1
    %v216 = vadd.f32 %v207, %v212
    %v217 = vadd.f32 %v208, %v213
    %v218 = vadd.f32 %v209, %v212
    %v219 = vadd.f32 %v210, %v213
    %v220 = vld [vmem:[%s1] sm:$0x1]
    %v221 = vld [vmem:[%s1 + $0x1] sm:$0x1]
    %v222 = vld [vmem:[%s1 + $0x2] sm:$0x1]
    %v223 = vld [vmem:[%s1 + $0x3] sm:$0x1]
    %v224 = vld [vmem:[#allocation2] sm:$0xff]
    %v225 = vld [vmem:[#allocation2 + $0x8] sm:$0xff]
    %v226 = vld [vmem:[#allocation2 + $0x10] sm:$0xff]
    %v227 = vld [vmem:[#allocation2 + $0x18] sm:$0xff]
    %v228 = vld [vmem:[#allocation2 + $0x20] sm:$0xff]
    %v229 = vld [vmem:[#allocation2 + $0x28] sm:$0xff]
    %v230 = vld [vmem:[#allocation2 + $0x30] sm:$0xff]
    %v231 = vld [vmem:[#allocation2 + $0x38] sm:$0xff]
    %v232 = vld [vmem:[#allocation2 + $0x40] sm:$0xff]
    %v233 = vld [vmem:[#allocation2 + $0x48] sm:$0xff]
    %v234 = vld [vmem:[#allocation2 + $0x50] sm:$0xff]
    %v235 = vld [vmem:[#allocation2 + $0x58] sm:$0xff]
    %v236 = vld [vmem:[#allocation2 + $0x60] sm:$0xff]
    %v237 = vld [vmem:[#allocation2 + $0x68] sm:$0xff]
    %v238 = vld [vmem:[#allocation2 + $0x70] sm:$0xff]
    %v239 = vld [vmem:[#allocation2 + $0x78] sm:$0xff]
    %v240 = vld [vmem:[#allocation2 + $0x80] sm:$0xff]
    %v241 = vld [vmem:[#allocation2 + $0x88] sm:$0xff]
    %v242 = vld [vmem:[#allocation2 + $0x90] sm:$0xff]
    %v243 = vld [vmem:[#allocation2 + $0x98] sm:$0xff]
    %v244 = vld [vmem:[#allocation2 + $0xa0] sm:$0xff]
    %v245 = vld [vmem:[#allocation2 + $0xa8] sm:$0xff]
    %v246 = vld [vmem:[#allocation2 + $0xb0] sm:$0xff]
    %v247 = vld [vmem:[#allocation2 + $0xb8] sm:$0xff]
    %v248 = vld [vmem:[#allocation2 + $0xc0] sm:$0xff]
    %v249 = vld [vmem:[#allocation2 + $0xc8] sm:$0xff]
    %v250 = vld [vmem:[#allocation2 + $0xd0] sm:$0xff]
    %v251 = vld [vmem:[#allocation2 + $0xd8] sm:$0xff]
    %v252 = vld [vmem:[#allocation2 + $0xe0] sm:$0xff]
    %v253 = vld [vmem:[#allocation2 + $0xe8] sm:$0xff]
    %v254 = vld [vmem:[#allocation2 + $0xf0] sm:$0xff]
    %v255 = vld [vmem:[#allocation2 + $0xf8] sm:$0xff]
    %v256 = vld [vmem:[#allocation2 + $0x100] sm:$0xff]
    %v257 = vld [vmem:[#allocation2 + $0x108] sm:$0xff]
    %v258 = vld [vmem:[#allocation2 + $0x110] sm:$0xff]
    %v259 = vld [vmem:[#allocation2 + $0x118] sm:$0xff]
    %v260 = vld [vmem:[#allocation2 + $0x120] sm:$0xff]
    %v261 = vld [vmem:[#allocation2 + $0x128] sm:$0xff]
    %v262 = vld [vmem:[#allocation2 + $0x130] sm:$0xff]
    %v263 = vld [vmem:[#allocation2 + $0x138] sm:$0xff]
    %v264 = vld [vmem:[#allocation2 + $0x140] sm:$0xff]
    %v265 = vld [vmem:[#allocation2 + $0x148] sm:$0xff]
    %v266 = vld [vmem:[#allocation2 + $0x150] sm:$0xff]
    %v267 = vld [vmem:[#allocation2 + $0x158] sm:$0xff]
    %v268 = vld [vmem:[#allocation2 + $0x160] sm:$0xff]
    %v269 = vld [vmem:[#allocation2 + $0x168] sm:$0xff]
    %v270 = vld [vmem:[#allocation2 + $0x170] sm:$0xff]
    %v271 = vld [vmem:[#allocation2 + $0x178] sm:$0xff]
    %v272 = vld [vmem:[#allocation2 + $0x180] sm:$0xff]
    %v273 = vld [vmem:[#allocation2 + $0x188] sm:$0xff]
    %v274 = vld [vmem:[#allocation2 + $0x190] sm:$0xff]
    %v275 = vld [vmem:[#allocation2 + $0x198] sm:$0xff]
    %v276 = vld [vmem:[#allocation2 + $0x1a0] sm:$0xff]
    %v277 = vld [vmem:[#allocation2 + $0x1a8] sm:$0xff]
    %v278 = vld [vmem:[#allocation2 + $0x1b0] sm:$0xff]
    %v279 = vld [vmem:[#allocation2 + $0x1b8] sm:$0xff]
    %v280 = vld [vmem:[#allocation2 + $0x1c0] sm:$0xff]
    %v281 = vld [vmem:[#allocation2 + $0x1c8] sm:$0xff]
    %v282 = vld [vmem:[#allocation2 + $0x1d0] sm:$0xff]
    %v283 = vld [vmem:[#allocation2 + $0x1d8] sm:$0xff]
    %v284 = vld [vmem:[#allocation2 + $0x1e0] sm:$0xff]
    %v285 = vld [vmem:[#allocation2 + $0x1e8] sm:$0xff]
    %v286 = vld [vmem:[#allocation2 + $0x1f0] sm:$0xff]
    %v287 = vld [vmem:[#allocation2 + $0x1f8] sm:$0xff]
    %v288 = vld [vmem:[#allocation2 + $0x200] sm:$0xff]
    %v289 = vld [vmem:[#allocation2 + $0x208] sm:$0xff]
    %v290 = vld [vmem:[#allocation2 + $0x210] sm:$0xff]
    %v291 = vld [vmem:[#allocation2 + $0x218] sm:$0xff]
    %v292 = vld [vmem:[#allocation2 + $0x220] sm:$0xff]
    %v293 = vld [vmem:[#allocation2 + $0x228] sm:$0xff]
    %v294 = vld [vmem:[#allocation2 + $0x230] sm:$0xff]
    %v295 = vld [vmem:[#allocation2 + $0x238] sm:$0xff]
    %v296 = vld [vmem:[#allocation2 + $0x240] sm:$0xff]
    %v297 = vld [vmem:[#allocation2 + $0x248] sm:$0xff]
    %v298 = vld [vmem:[#allocation2 + $0x250] sm:$0xff]
    %v299 = vld [vmem:[#allocation2 + $0x258] sm:$0xff]
    %v300 = vld [vmem:[#allocation2 + $0x260] sm:$0xff]
    %v301 = vld [vmem:[#allocation2 + $0x268] sm:$0xff]
    %v302 = vld [vmem:[#allocation2 + $0x270] sm:$0xff]
    %v303 = vld [vmem:[#allocation2 + $0x278] sm:$0xff]
    %v304 = vld [vmem:[#allocation2 + $0x280] sm:$0xff]
    %v305 = vld [vmem:[#allocation2 + $0x288] sm:$0xff]
    %v306 = vld [vmem:[#allocation2 + $0x290] sm:$0xff]
    %v307 = vld [vmem:[#allocation2 + $0x298] sm:$0xff]
    %v308 = vld [vmem:[#allocation2 + $0x2a0] sm:$0xff]
    %v309 = vld [vmem:[#allocation2 + $0x2a8] sm:$0xff]
    %v310 = vld [vmem:[#allocation2 + $0x2b0] sm:$0xff]
    %v311 = vld [vmem:[#allocation2 + $0x2b8] sm:$0xff]
    %v312 = vld [vmem:[#allocation2 + $0x2c0] sm:$0xff]
    %v313 = vld [vmem:[#allocation2 + $0x2c8] sm:$0xff]
    %v314 = vld [vmem:[#allocation2 + $0x2d0] sm:$0xff]
    %v315 = vld [vmem:[#allocation2 + $0x2d8] sm:$0xff]
    %v316 = vld [vmem:[#allocation2 + $0x2e0] sm:$0xff]
    %v317 = vld [vmem:[#allocation2 + $0x2e8] sm:$0xff]
    %v318 = vld [vmem:[#allocation2 + $0x2f0] sm:$0xff]
    %v319 = vld [vmem:[#allocation2 + $0x2f8] sm:$0xff]
    %v320 = vld [vmem:[%s6] sm:$0x3f]
    %v321 = vld [vmem:[#allocation5] sm:$0xff]
    %v322 = vld [vmem:[#allocation5 + $0x8] sm:$0xff]
    %v323 = vld [vmem:[#allocation5 + $0x10] sm:$0xff]
    %v324 = vld [vmem:[#allocation5 + $0x18] sm:$0xff]
    %v325 = vld [vmem:[#allocation5 + $0x20] sm:$0xff]
    %v326 = vld [vmem:[#allocation5 + $0x28] sm:$0xff]
    %v327 = vld [vmem:[#allocation5 + $0x30] sm:$0xff]
    %v328 = vld [vmem:[#allocation5 + $0x38] sm:$0xff]
    %v329 = vld [vmem:[#allocation5 + $0x40] sm:$0xff]
    %v330 = vld [vmem:[#allocation5 + $0x48] sm:$0xff]
    %v331 = vld [vmem:[#allocation5 + $0x50] sm:$0xff]
    %v332 = vld [vmem:[#allocation5 + $0x58] sm:$0xff]
    %v333 = vld [vmem:[#allocation5 + $0x60] sm:$0xff]
    %v334 = vld [vmem:[#allocation5 + $0x68] sm:$0xff]
    %v335 = vld [vmem:[#allocation5 + $0x70] sm:$0xff]
    %v336 = vld [vmem:[#allocation5 + $0x78] sm:$0xff]
    %v337 = vld [vmem:[#allocation5 + $0x80] sm:$0xff]
    %v338 = vld [vmem:[#allocation5 + $0x88] sm:$0xff]
    %v339 = vld [vmem:[#allocation5 + $0x90] sm:$0xff]
    %v340 = vld [vmem:[#allocation5 + $0x98] sm:$0xff]
    %v341 = vld [vmem:[#allocation5 + $0xa0] sm:$0xff]
    %v342 = vld [vmem:[#allocation5 + $0xa8] sm:$0xff]
    %v343 = vld [vmem:[#allocation5 + $0xb0] sm:$0xff]
    %v344 = vld [vmem:[#allocation5 + $0xb8] sm:$0xff]
    %v345 = vld [vmem:[#allocation5 + $0xc0] sm:$0xff]
    %v346 = vld [vmem:[#allocation5 + $0xc8] sm:$0xff]
    %v347 = vld [vmem:[#allocation5 + $0xd0] sm:$0xff]
    %v348 = vld [vmem:[#allocation5 + $0xd8] sm:$0xff]
    %v349 = vld [vmem:[#allocation5 + $0xe0] sm:$0xff]
    %v350 = vld [vmem:[#allocation5 + $0xe8] sm:$0xff]
    %v351 = vld [vmem:[#allocation5 + $0xf0] sm:$0xff]
    %v352 = vld [vmem:[#allocation5 + $0xf8] sm:$0xff]
    %v353 = vld [vmem:[%s8] sm:$0x3]
    %v354 = vld [vmem:[%s9] sm:$0x3]
    %v355 = vld [vmem:[%s10] sm:$0x3]
    %v356 = vld [vmem:[#allocation7] sm:$0xff]
    %v357 = vld [vmem:[#allocation7 + $0x8] sm:$0xff]
    %v358 = vld [vmem:[#allocation7 + $0x10] sm:$0xff]
    %v359 = vld [vmem:[#allocation7 + $0x18] sm:$0xff]
    %v360 = vld [vmem:[#allocation7 + $0x20] sm:$0xff]
    %v361 = vld [vmem:[#allocation7 + $0x28] sm:$0xff]
    %v362 = vld [vmem:[#allocation7 + $0x30] sm:$0xff]
    %v363 = vld [vmem:[#allocation7 + $0x38] sm:$0xff]
    %v364 = vld [vmem:[#allocation7 + $0x40] sm:$0xff]
    %v365 = vld [vmem:[#allocation7 + $0x48] sm:$0xff]
    %v366 = vld [vmem:[#allocation7 + $0x50] sm:$0xff]
    %v367 = vld [vmem:[#allocation7 + $0x58] sm:$0xff]
    %v368 = vld [vmem:[#allocation7 + $0x60] sm:$0xff]
    %v369 = vld [vmem:[#allocation7 + $0x68] sm:$0xff]
    %v370 = vld [vmem:[#allocation7 + $0x70] sm:$0xff]
    %v371 = vld [vmem:[#allocation7 + $0x78] sm:$0xff]
    %v372 = vld [vmem:[#allocation7 + $0x80] sm:$0xff]
    %v373 = vld [vmem:[#allocation7 + $0x88] sm:$0xff]
    %v374 = vld [vmem:[#allocation7 + $0x90] sm:$0xff]
    %v375 = vld [vmem:[#allocation7 + $0x98] sm:$0xff]
    %v376 = vld [vmem:[#allocation7 + $0xa0] sm:$0xff]
    %v377 = vld [vmem:[#allocation7 + $0xa8] sm:$0xff]
    %v378 = vld [vmem:[#allocation7 + $0xb0] sm:$0xff]
    %v379 = vld [vmem:[#allocation7 + $0xb8] sm:$0xff]
    %v380 = vld [vmem:[#allocation7 + $0xc0] sm:$0xff]
    %v381 = vld [vmem:[#allocation7 + $0xc8] sm:$0xff]
    %v382 = vld [vmem:[#allocation7 + $0xd0] sm:$0xff]
    %v383 = vld [vmem:[#allocation7 + $0xd8] sm:$0xff]
    %v384 = vld [vmem:[#allocation7 + $0xe0] sm:$0xff]
    %v385 = vld [vmem:[#allocation7 + $0xe8] sm:$0xff]
    %v386 = vld [vmem:[#allocation7 + $0xf0] sm:$0xff]
    %v387 = vld [vmem:[#allocation7 + $0xf8] sm:$0xff]
    %v388 = vld [vmem:[#allocation7 + $0x100] sm:$0xff]
    %v389 = vld [vmem:[#allocation7 + $0x108] sm:$0xff]
    %v390 = vld [vmem:[#allocation7 + $0x110] sm:$0xff]
    %v391 = vld [vmem:[#allocation7 + $0x118] sm:$0xff]
    %v392 = vld [vmem:[#allocation7 + $0x120] sm:$0xff]
    %v393 = vld [vmem:[#allocation7 + $0x128] sm:$0xff]
    %v394 = vld [vmem:[#allocation7 + $0x130] sm:$0xff]
    %v395 = vld [vmem:[#allocation7 + $0x138] sm:$0xff]
    %v396 = vld [vmem:[#allocation7 + $0x140] sm:$0xff]
    %v397 = vld [vmem:[#allocation7 + $0x148] sm:$0xff]
    %v398 = vld [vmem:[#allocation7 + $0x150] sm:$0xff]
    %v399 = vld [vmem:[#allocation7 + $0x158] sm:$0xff]
    %v400 = vld [vmem:[#allocation7 + $0x160] sm:$0xff]
    %v401 = vld [vmem:[#allocation7 + $0x168] sm:$0xff]
    %v402 = vld [vmem:[#allocation7 + $0x170] sm:$0xff]
    %v403 = vld [vmem:[#allocation7 + $0x178] sm:$0xff]
    %v404 = vld [vmem:[#allocation7 + $0x180] sm:$0xff]
    %v405 = vld [vmem:[#allocation7 + $0x188] sm:$0xff]
    %v406 = vld [vmem:[#allocation7 + $0x190] sm:$0xff]
    %v407 = vld [vmem:[#allocation7 + $0x198] sm:$0xff]
    %v408 = vld [vmem:[#allocation7 + $0x1a0] sm:$0xff]
    %v409 = vld [vmem:[#allocation7 + $0x1a8] sm:$0xff]
    %v410 = vld [vmem:[#allocation7 + $0x1b0] sm:$0xff]
    %v411 = vld [vmem:[#allocation7 + $0x1b8] sm:$0xff]
    %v412 = vld [vmem:[#allocation7 + $0x1c0] sm:$0xff]
    %v413 = vld [vmem:[#allocation7 + $0x1c8] sm:$0xff]
    %v414 = vld [vmem:[#allocation7 + $0x1d0] sm:$0xff]
    %v415 = vld [vmem:[#allocation7 + $0x1d8] sm:$0xff]
    %v416 = vld [vmem:[#allocation7 + $0x1e0] sm:$0xff]
    %v417 = vld [vmem:[#allocation7 + $0x1e8] sm:$0xff]
    %v418 = vld [vmem:[#allocation7 + $0x1f0] sm:$0xff]
    %v419 = vld [vmem:[#allocation7 + $0x1f8] sm:$0xff]
    %v420 = vld [vmem:[%s12] sm:$0xf]
    %v421 = vld [vmem:[#allocation8] sm:$0xff]
    %v422 = vld [vmem:[#allocation8 + $0x8] sm:$0xff]
    %v423 = vld [vmem:[#allocation8 + $0x10] sm:$0xff]
    %v424 = vld [vmem:[#allocation8 + $0x18] sm:$0xff]
    %v425 = vld [vmem:[#allocation8 + $0x20] sm:$0xff]
    %v426 = vld [vmem:[#allocation8 + $0x28] sm:$0xff]
    %v427 = vld [vmem:[#allocation8 + $0x30] sm:$0xff]
    %v428 = vld [vmem:[#allocation8 + $0x38] sm:$0xff]
    %v429 = vld [vmem:[#allocation8 + $0x40] sm:$0xff]
    %v430 = vld [vmem:[#allocation8 + $0x48] sm:$0xff]
    %v431 = vld [vmem:[#allocation8 + $0x50] sm:$0xff]
    %v432 = vld [vmem:[#allocation8 + $0x58] sm:$0xff]
    %v433 = vld [vmem:[#allocation8 + $0x60] sm:$0xff]
    %v434 = vld [vmem:[#allocation8 + $0x68] sm:$0xff]
    %v435 = vld [vmem:[#allocation8 + $0x70] sm:$0xff]
    %v436 = vld [vmem:[#allocation8 + $0x78] sm:$0xff]
    %v437 = vld [vmem:[#allocation8 + $0x80] sm:$0xff]
    %v438 = vld [vmem:[#allocation8 + $0x88] sm:$0xff]
    %v439 = vld [vmem:[#allocation8 + $0x90] sm:$0xff]
    %v440 = vld [vmem:[#allocation8 + $0x98] sm:$0xff]
    %v441 = vld [vmem:[#allocation8 + $0xa0] sm:$0xff]
    %v442 = vld [vmem:[#allocation8 + $0xa8] sm:$0xff]
    %v443 = vld [vmem:[#allocation8 + $0xb0] sm:$0xff]
    %v444 = vld [vmem:[#allocation8 + $0xb8] sm:$0xff]
    %v445 = vld [vmem:[#allocation8 + $0xc0] sm:$0xff]
    %v446 = vld [vmem:[#allocation8 + $0xc8] sm:$0xff]
    %v447 = vld [vmem:[#allocation8 + $0xd0] sm:$0xff]
    %v448 = vld [vmem:[#allocation8 + $0xd8] sm:$0xff]
    %v449 = vld [vmem:[#allocation8 + $0xe0] sm:$0xff]
    %v450 = vld [vmem:[#allocation8 + $0xe8] sm:$0xff]
    %v451 = vld [vmem:[#allocation8 + $0xf0] sm:$0xff]
    %v452 = vld [vmem:[#allocation8 + $0xf8] sm:$0xff]
    %v453 = vld [vmem:[#allocation8 + $0x100] sm:$0xff]
    %v454 = vld [vmem:[#allocation8 + $0x108] sm:$0xff]
    %v455 = vld [vmem:[#allocation8 + $0x110] sm:$0xff]
    %v456 = vld [vmem:[#allocation8 + $0x118] sm:$0xff]
    %v457 = vld [vmem:[#allocation8 + $0x120] sm:$0xff]
    %v458 = vld [vmem:[#allocation8 + $0x128] sm:$0xff]
    %v459 = vld [vmem:[#allocation8 + $0x130] sm:$0xff]
    %v460 = vld [vmem:[#allocation8 + $0x138] sm:$0xff]
    %v461 = vld [vmem:[#allocation8 + $0x140] sm:$0xff]
    %v462 = vld [vmem:[#allocation8 + $0x148] sm:$0xff]
    %v463 = vld [vmem:[#allocation8 + $0x150] sm:$0xff]
    %v464 = vld [vmem:[#allocation8 + $0x158] sm:$0xff]
    %v465 = vld [vmem:[#allocation8 + $0x160] sm:$0xff]
    %v466 = vld [vmem:[#allocation8 + $0x168] sm:$0xff]
    %v467 = vld [vmem:[#allocation8 + $0x170] sm:$0xff]
    %v468 = vld [vmem:[#allocation8 + $0x178] sm:$0xff]
    %v469 = vld [vmem:[#allocation8 + $0x180] sm:$0xff]
    %v470 = vld [vmem:[#allocation8 + $0x188] sm:$0xff]
    %v471 = vld [vmem:[#allocation8 + $0x190] sm:$0xff]
    %v472 = vld [vmem:[#allocation8 + $0x198] sm:$0xff]
    %v473 = vld [vmem:[#allocation8 + $0x1a0] sm:$0xff]
    %v474 = vld [vmem:[#allocation8 + $0x1a8] sm:$0xff]
    %v475 = vld [vmem:[#allocation8 + $0x1b0] sm:$0xff]
    %v476 = vld [vmem:[#allocation8 + $0x1b8] sm:$0xff]
    %v477 = vld [vmem:[#allocation8 + $0x1c0] sm:$0xff]
    %v478 = vld [vmem:[#allocation8 + $0x1c8] sm:$0xff]
    %v479 = vld [vmem:[#allocation8 + $0x1d0] sm:$0xff]
    %v480 = vld [vmem:[#allocation8 + $0x1d8] sm:$0xff]
    %v481 = vld [vmem:[#allocation8 + $0x1e0] sm:$0xff]
    %v482 = vld [vmem:[#allocation8 + $0x1e8] sm:$0xff]
    %v483 = vld [vmem:[#allocation8 + $0x1f0] sm:$0xff]
    %v484 = vld [vmem:[#allocation8 + $0x1f8] sm:$0xff]
    %v485 = vld [vmem:[%s14] sm:$0x3]
    %v486 = vld [vmem:[%s15] sm:$0x3]
    %v487 = vld [vmem:[%s16] sm:$0x3]
    %v488 = vpack.c.bf16 %v218, %v216
    %v489 = vpack.c.bf16 %v219, %v217
    %v491 = vperm.slane %v320, 0
    %v492 = vperm.slane %v320, 1
    %v493 = vperm.slane %v320, 2
    %v494 = vperm.slane %v320, 3
    %v495 = vperm.slane %v320, 4
    %v496 = vperm.slane %v320, 5
    %v599 = vunpack.c.l.b16 %v224
    %v600 = vunpack.c.h.b16 %v224
    %v601 = vunpack.c.l.b16 %v225
    %v602 = vunpack.c.h.b16 %v225
    %v603 = vunpack.c.l.b16 %v226
    %v604 = vunpack.c.h.b16 %v226
    %v605 = vunpack.c.l.b16 %v227
    %v606 = vunpack.c.h.b16 %v227
    %v607 = vunpack.c.l.b16 %v228
    %v608 = vunpack.c.h.b16 %v228
    %v609 = vunpack.c.l.b16 %v229
    %v610 = vunpack.c.h.b16 %v229
    %v611 = vunpack.c.l.b16 %v230
    %v612 = vunpack.c.h.b16 %v230
    %v613 = vunpack.c.l.b16 %v231
    %v614 = vunpack.c.h.b16 %v231
    %v615 = vunpack.c.l.b16 %v232
    %v616 = vunpack.c.h.b16 %v232
    %v617 = vunpack.c.l.b16 %v233
    %v618 = vunpack.c.h.b16 %v233
    %v619 = vunpack.c.l.b16 %v234
    %v620 = vunpack.c.h.b16 %v234
    %v621 = vunpack.c.l.b16 %v235
    %v622 = vunpack.c.h.b16 %v235
    %v623 = vunpack.c.l.b16 %v236
    %v624 = vunpack.c.h.b16 %v236
    %v625 = vunpack.c.l.b16 %v237
    %v626 = vunpack.c.h.b16 %v237
    %v627 = vunpack.c.l.b16 %v238
    %v628 = vunpack.c.h.b16 %v238
    %v629 = vunpack.c.l.b16 %v239
    %v630 = vunpack.c.h.b16 %v239
    %v631 = vunpack.c.l.b16 %v240
    %v632 = vunpack.c.h.b16 %v240
    %v633 = vunpack.c.l.b16 %v241
    %v634 = vunpack.c.h.b16 %v241
    %v635 = vunpack.c.l.b16 %v242
    %v636 = vunpack.c.h.b16 %v242
    %v637 = vunpack.c.l.b16 %v243
    %v638 = vunpack.c.h.b16 %v243
    %v639 = vunpack.c.l.b16 %v244
    %v640 = vunpack.c.h.b16 %v244
    %v641 = vunpack.c.l.b16 %v245
    %v642 = vunpack.c.h.b16 %v245
    %v643 = vunpack.c.l.b16 %v246
    %v644 = vunpack.c.h.b16 %v246
    %v645 = vunpack.c.l.b16 %v247
    %v646 = vunpack.c.h.b16 %v247
    %v647 = vunpack.c.l.b16 %v248
    %v648 = vunpack.c.h.b16 %v248
    %v649 = vunpack.c.l.b16 %v249
    %v650 = vunpack.c.h.b16 %v249
    %v651 = vunpack.c.l.b16 %v250
    %v652 = vunpack.c.h.b16 %v250
    %v653 = vunpack.c.l.b16 %v251
    %v654 = vunpack.c.h.b16 %v251
    %v655 = vunpack.c.l.b16 %v252
    %v656 = vunpack.c.h.b16 %v252
    %v657 = vunpack.c.l.b16 %v253
    %v658 = vunpack.c.h.b16 %v253
    %v659 = vunpack.c.l.b16 %v254
    %v660 = vunpack.c.h.b16 %v254
    %v661 = vunpack.c.l.b16 %v255
    %v662 = vunpack.c.h.b16 %v255
    %v663 = vunpack.c.l.b16 %v256
    %v664 = vunpack.c.h.b16 %v256
    %v665 = vunpack.c.l.b16 %v257
    %v666 = vunpack.c.h.b16 %v257
    %v667 = vunpack.c.l.b16 %v258
    %v668 = vunpack.c.h.b16 %v258
    %v669 = vunpack.c.l.b16 %v259
    %v670 = vunpack.c.h.b16 %v259
    %v671 = vunpack.c.l.b16 %v260
    %v672 = vunpack.c.h.b16 %v260
    %v673 = vunpack.c.l.b16 %v261
    %v674 = vunpack.c.h.b16 %v261
    %v675 = vunpack.c.l.b16 %v262
    %v676 = vunpack.c.h.b16 %v262
    %v677 = vunpack.c.l.b16 %v263
    %v678 = vunpack.c.h.b16 %v263
    %v679 = vunpack.c.l.b16 %v264
    %v680 = vunpack.c.h.b16 %v264
    %v681 = vunpack.c.l.b16 %v265
    %v682 = vunpack.c.h.b16 %v265
    %v683 = vunpack.c.l.b16 %v266
    %v684 = vunpack.c.h.b16 %v266
    %v685 = vunpack.c.l.b16 %v267
    %v686 = vunpack.c.h.b16 %v267
    %v687 = vunpack.c.l.b16 %v268
    %v688 = vunpack.c.h.b16 %v268
    %v689 = vunpack.c.l.b16 %v269
    %v690 = vunpack.c.h.b16 %v269
    %v691 = vunpack.c.l.b16 %v270
    %v692 = vunpack.c.h.b16 %v270
    %v693 = vunpack.c.l.b16 %v271
    %v694 = vunpack.c.h.b16 %v271
    %v695 = vunpack.c.l.b16 %v272
    %v696 = vunpack.c.h.b16 %v272
    %v697 = vunpack.c.l.b16 %v273
    %v698 = vunpack.c.h.b16 %v273
    %v699 = vunpack.c.l.b16 %v274
    %v700 = vunpack.c.h.b16 %v274
    %v701 = vunpack.c.l.b16 %v275
    %v702 = vunpack.c.h.b16 %v275
    %v703 = vunpack.c.l.b16 %v276
    %v704 = vunpack.c.h.b16 %v276
    %v705 = vunpack.c.l.b16 %v277
    %v706 = vunpack.c.h.b16 %v277
    %v707 = vunpack.c.l.b16 %v278
    %v708 = vunpack.c.h.b16 %v278
    %v709 = vunpack.c.l.b16 %v279
    %v710 = vunpack.c.h.b16 %v279
    %v711 = vunpack.c.l.b16 %v280
    %v712 = vunpack.c.h.b16 %v280
    %v713 = vunpack.c.l.b16 %v281
    %v714 = vunpack.c.h.b16 %v281
    %v715 = vunpack.c.l.b16 %v282
    %v716 = vunpack.c.h.b16 %v282
    %v717 = vunpack.c.l.b16 %v283
    %v718 = vunpack.c.h.b16 %v283
    %v719 = vunpack.c.l.b16 %v284
    %v720 = vunpack.c.h.b16 %v284
    %v721 = vunpack.c.l.b16 %v285
    %v722 = vunpack.c.h.b16 %v285
    %v723 = vunpack.c.l.b16 %v286
    %v724 = vunpack.c.h.b16 %v286
    %v725 = vunpack.c.l.b16 %v287
    %v726 = vunpack.c.h.b16 %v287
    %v727 = vunpack.c.l.b16 %v288
    %v728 = vunpack.c.h.b16 %v288
    %v729 = vunpack.c.l.b16 %v289
    %v730 = vunpack.c.h.b16 %v289
    %v731 = vunpack.c.l.b16 %v290
    %v732 = vunpack.c.h.b16 %v290
    %v733 = vunpack.c.l.b16 %v291
    %v734 = vunpack.c.h.b16 %v291
    %v735 = vunpack.c.l.b16 %v292
    %v736 = vunpack.c.h.b16 %v292
    %v737 = vunpack.c.l.b16 %v293
    %v738 = vunpack.c.h.b16 %v293
    %v739 = vunpack.c.l.b16 %v294
    %v740 = vunpack.c.h.b16 %v294
    %v741 = vunpack.c.l.b16 %v295
    %v742 = vunpack.c.h.b16 %v295
    %v743 = vunpack.c.l.b16 %v296
    %v744 = vunpack.c.h.b16 %v296
    %v745 = vunpack.c.l.b16 %v297
    %v746 = vunpack.c.h.b16 %v297
    %v747 = vunpack.c.l.b16 %v298
    %v748 = vunpack.c.h.b16 %v298
    %v749 = vunpack.c.l.b16 %v299
    %v750 = vunpack.c.h.b16 %v299
    %v751 = vunpack.c.l.b16 %v300
    %v752 = vunpack.c.h.b16 %v300
    %v753 = vunpack.c.l.b16 %v301
    %v754 = vunpack.c.h.b16 %v301
    %v755 = vunpack.c.l.b16 %v302
    %v756 = vunpack.c.h.b16 %v302
    %v757 = vunpack.c.l.b16 %v303
    %v758 = vunpack.c.h.b16 %v303
    %v759 = vunpack.c.l.b16 %v304
    %v760 = vunpack.c.h.b16 %v304
    %v761 = vunpack.c.l.b16 %v305
    %v762 = vunpack.c.h.b16 %v305
    %v763 = vunpack.c.l.b16 %v306
    %v764 = vunpack.c.h.b16 %v306
    %v765 = vunpack.c.l.b16 %v307
    %v766 = vunpack.c.h.b16 %v307
    %v767 = vunpack.c.l.b16 %v308
    %v768 = vunpack.c.h.b16 %v308
    %v769 = vunpack.c.l.b16 %v309
    %v770 = vunpack.c.h.b16 %v309
    %v771 = vunpack.c.l.b16 %v310
    %v772 = vunpack.c.h.b16 %v310
    %v773 = vunpack.c.l.b16 %v311
    %v774 = vunpack.c.h.b16 %v311
    %v775 = vunpack.c.l.b16 %v312
    %v776 = vunpack.c.h.b16 %v312
    %v777 = vunpack.c.l.b16 %v313
    %v778 = vunpack.c.h.b16 %v313
    %v779 = vunpack.c.l.b16 %v314
    %v780 = vunpack.c.h.b16 %v314
    %v781 = vunpack.c.l.b16 %v315
    %v782 = vunpack.c.h.b16 %v315
    %v783 = vunpack.c.l.b16 %v316
    %v784 = vunpack.c.h.b16 %v316
    %v785 = vunpack.c.l.b16 %v317
    %v786 = vunpack.c.h.b16 %v317
    %v787 = vunpack.c.l.b16 %v318
    %v788 = vunpack.c.h.b16 %v318
    %v789 = vunpack.c.l.b16 %v319
    %v790 = vunpack.c.h.b16 %v319
    %v791 = vpack.c.b16 %v605, %v599
    %v792 = vpack.c.b16 %v606, %v600
    %v793 = vpack.c.b16 %v607, %v601
    %v794 = vpack.c.b16 %v608, %v602
    %v795 = vpack.c.b16 %v609, %v603
    %v796 = vpack.c.b16 %v610, %v604
    %v797 = vpack.c.b16 %v617, %v611
    %v798 = vpack.c.b16 %v618, %v612
    %v799 = vpack.c.b16 %v619, %v613
    %v800 = vpack.c.b16 %v620, %v614
    %v801 = vpack.c.b16 %v621, %v615
    %v802 = vpack.c.b16 %v622, %v616
    %v803 = vpack.c.b16 %v629, %v623
    %v804 = vpack.c.b16 %v630, %v624
    %v805 = vpack.c.b16 %v631, %v625
    %v806 = vpack.c.b16 %v632, %v626
    %v807 = vpack.c.b16 %v633, %v627
    %v808 = vpack.c.b16 %v634, %v628
    %v809 = vpack.c.b16 %v641, %v635
    %v810 = vpack.c.b16 %v642, %v636
    %v811 = vpack.c.b16 %v643, %v637
    %v812 = vpack.c.b16 %v644, %v638
    %v813 = vpack.c.b16 %v645, %v639
    %v814 = vpack.c.b16 %v646, %v640
    %v815 = vpack.c.b16 %v653, %v647
    %v816 = vpack.c.b16 %v654, %v648
    %v817 = vpack.c.b16 %v655, %v649
    %v818 = vpack.c.b16 %v656, %v650
    %v819 = vpack.c.b16 %v657, %v651
    %v820 = vpack.c.b16 %v658, %v652
    %v821 = vpack.c.b16 %v665, %v659
    %v822 = vpack.c.b16 %v666, %v660
    %v823 = vpack.c.b16 %v667, %v661
    %v824 = vpack.c.b16 %v668, %v662
    %v825 = vpack.c.b16 %v669, %v663
    %v826 = vpack.c.b16 %v670, %v664
    %v827 = vpack.c.b16 %v677, %v671
    %v828 = vpack.c.b16 %v678, %v672
    %v829 = vpack.c.b16 %v679, %v673
    %v830 = vpack.c.b16 %v680, %v674
    %v831 = vpack.c.b16 %v681, %v675
    %v832 = vpack.c.b16 %v682, %v676
    %v833 = vpack.c.b16 %v689, %v683
    %v834 = vpack.c.b16 %v690, %v684
    %v835 = vpack.c.b16 %v691, %v685
    %v836 = vpack.c.b16 %v692, %v686
    %v837 = vpack.c.b16 %v693, %v687
    %v838 = vpack.c.b16 %v694, %v688
    %v839 = vpack.c.b16 %v701, %v695
    %v840 = vpack.c.b16 %v702, %v696
    %v841 = vpack.c.b16 %v703, %v697
    %v842 = vpack.c.b16 %v704, %v698
    %v843 = vpack.c.b16 %v705, %v699
    %v844 = vpack.c.b16 %v706, %v700
    %v845 = vpack.c.b16 %v713, %v707
    %v846 = vpack.c.b16 %v714, %v708
    %v847 = vpack.c.b16 %v715, %v709
    %v848 = vpack.c.b16 %v716, %v710
    %v849 = vpack.c.b16 %v717, %v711
    %v850 = vpack.c.b16 %v718, %v712
    %v851 = vpack.c.b16 %v725, %v719
    %v852 = vpack.c.b16 %v726, %v720
    %v853 = vpack.c.b16 %v727, %v721
    %v854 = vpack.c.b16 %v728, %v722
    %v855 = vpack.c.b16 %v729, %v723
    %v856 = vpack.c.b16 %v730, %v724
    %v857 = vpack.c.b16 %v737, %v731
    %v858 = vpack.c.b16 %v738, %v732
    %v859 = vpack.c.b16 %v739, %v733
    %v860 = vpack.c.b16 %v740, %v734
    %v861 = vpack.c.b16 %v741, %v735
    %v862 = vpack.c.b16 %v742, %v736
    %v863 = vpack.c.b16 %v749, %v743
    %v864 = vpack.c.b16 %v750, %v744
    %v865 = vpack.c.b16 %v751, %v745
    %v866 = vpack.c.b16 %v752, %v746
    %v867 = vpack.c.b16 %v753, %v747
    %v868 = vpack.c.b16 %v754, %v748
    %v869 = vpack.c.b16 %v761, %v755
    %v870 = vpack.c.b16 %v762, %v756
    %v871 = vpack.c.b16 %v763, %v757
    %v872 = vpack.c.b16 %v764, %v758
    %v873 = vpack.c.b16 %v765, %v759
    %v874 = vpack.c.b16 %v766, %v760
    %v875 = vpack.c.b16 %v773, %v767
    %v876 = vpack.c.b16 %v774, %v768
    %v877 = vpack.c.b16 %v775, %v769
    %v878 = vpack.c.b16 %v776, %v770
    %v879 = vpack.c.b16 %v777, %v771
    %v880 = vpack.c.b16 %v778, %v772
    %v881 = vpack.c.b16 %v785, %v779
    %v882 = vpack.c.b16 %v786, %v780
    %v883 = vpack.c.b16 %v787, %v781
    %v884 = vpack.c.b16 %v788, %v782
    %v885 = vpack.c.b16 %v789, %v783
    %v886 = vpack.c.b16 %v790, %v784
    %983 = vmatpush.bf16.msra.mxu0 %v833
    %984 = vmatpush.bf16.msra.mxu0 %v827
    %985 = vmatpush.bf16.msra.mxu0 %v821
    %986 = vmatpush.bf16.msra.mxu0 %v815
    %987 = vmatpush.bf16.msra.mxu0 %v809
    %988 = vmatpush.bf16.msra.mxu0 %v803
    %989 = vmatpush.bf16.msra.mxu0 %v797
    %990 = vmatpush.bf16.msra.mxu0 %v791
    %991 = vmatmul.bf16.gmra.mxu0 %v488
    %v992 = vpop.f32.mrf.mxu0
    %v993 = vadd.f32 %v491, %v992
    %v994 = vpop.f32.mrf.mxu0
    %v995 = vadd.f32 %v491, %v994
    %996 = vdwg.mxu0
    %997 = vmatpush.bf16.msra.mxu0 %v881
    %998 = vmatpush.bf16.msra.mxu0 %v875
    %999 = vmatpush.bf16.msra.mxu0 %v869
    %1000 = vmatpush.bf16.msra.mxu0 %v863
    %1001 = vmatpush.bf16.msra.mxu0 %v857
    %1002 = vmatpush.bf16.msra.mxu0 %v851
    %1003 = vmatpush.bf16.msra.mxu0 %v845
    %1004 = vmatpush.bf16.msra.mxu0 %v839
    %1005 = vmatmul.bf16.gmra.mxu0 %v489
    %v1006 = vpop.f32.mrf.mxu0
    %v1007 = vadd.f32 %v993, %v1006
    %v1008 = vpop.f32.mrf.mxu0
    %v1009 = vadd.f32 %v995, %v1008
    %1010 = vdwg.mxu0
    %1011 = vmatpush.bf16.msra.mxu0 %v834
    %1012 = vmatpush.bf16.msra.mxu0 %v828
    %1013 = vmatpush.bf16.msra.mxu0 %v822
    %1014 = vmatpush.bf16.msra.mxu0 %v816
    %1015 = vmatpush.bf16.msra.mxu0 %v810
    %1016 = vmatpush.bf16.msra.mxu0 %v804
    %1017 = vmatpush.bf16.msra.mxu0 %v798
    %1018 = vmatpush.bf16.msra.mxu0 %v792
    %1019 = vmatmul.bf16.gmra.mxu0 %v488
    %v1020 = vpop.f32.mrf.mxu0
    %v1021 = vadd.f32 %v492, %v1020
    %v1022 = vpop.f32.mrf.mxu0
    %v1023 = vadd.f32 %v492, %v1022
    %1024 = vdwg.mxu0
    %1025 = vmatpush.bf16.msra.mxu0 %v882
    %1026 = vmatpush.bf16.msra.mxu0 %v876
    %1027 = vmatpush.bf16.msra.mxu0 %v870
    %1028 = vmatpush.bf16.msra.mxu0 %v864
    %1029 = vmatpush.bf16.msra.mxu0 %v858
    %1030 = vmatpush.bf16.msra.mxu0 %v852
    %1031 = vmatpush.bf16.msra.mxu0 %v846
    %1032 = vmatpush.bf16.msra.mxu0 %v840
    %1033 = vmatmul.bf16.gmra.mxu0 %v489
    %v1034 = vpop.f32.mrf.mxu0
    %v1035 = vadd.f32 %v1021, %v1034
    %v1036 = vpop.f32.mrf.mxu0
    %v1037 = vadd.f32 %v1023, %v1036
    %1038 = vdwg.mxu0
    %1039 = vmatpush.bf16.msra.mxu0 %v835
    %1040 = vmatpush.bf16.msra.mxu0 %v829
    %1041 = vmatpush.bf16.msra.mxu0 %v823
    %1042 = vmatpush.bf16.msra.mxu0 %v817
    %1043 = vmatpush.bf16.msra.mxu0 %v811
    %1044 = vmatpush.bf16.msra.mxu0 %v805
    %1045 = vmatpush.bf16.msra.mxu0 %v799
    %1046 = vmatpush.bf16.msra.mxu0 %v793
    %1047 = vmatmul.bf16.gmra.mxu0 %v488
    %v1048 = vpop.f32.mrf.mxu0
    %v1049 = vadd.f32 %v493, %v1048
    %v1050 = vpop.f32.mrf.mxu0
    %v1051 = vadd.f32 %v493, %v1050
    %1052 = vdwg.mxu0
    %1053 = vmatpush.bf16.msra.mxu0 %v883
    %1054 = vmatpush.bf16.msra.mxu0 %v877
    %1055 = vmatpush.bf16.msra.mxu0 %v871
    %1056 = vmatpush.bf16.msra.mxu0 %v865
    %1057 = vmatpush.bf16.msra.mxu0 %v859
    %1058 = vmatpush.bf16.msra.mxu0 %v853
    %1059 = vmatpush.bf16.msra.mxu0 %v847
    %1060 = vmatpush.bf16.msra.mxu0 %v841
    %1061 = vmatmul.bf16.gmra.mxu0 %v489
    %v1062 = vpop.f32.mrf.mxu0
    %v1063 = vadd.f32 %v1049, %v1062
    %v1064 = vpop.f32.mrf.mxu0
    %v1065 = vadd.f32 %v1051, %v1064
    %1066 = vdwg.mxu0
    %1067 = vmatpush.bf16.msra.mxu0 %v836
    %1068 = vmatpush.bf16.msra.mxu0 %v830
    %1069 = vmatpush.bf16.msra.mxu0 %v824
    %1070 = vmatpush.bf16.msra.mxu0 %v818
    %1071 = vmatpush.bf16.msra.mxu0 %v812
    %1072 = vmatpush.bf16.msra.mxu0 %v806
    %1073 = vmatpush.bf16.msra.mxu0 %v800
    %1074 = vmatpush.bf16.msra.mxu0 %v794
    %1075 = vmatmul.bf16.gmra.mxu0 %v488
    %v1076 = vpop.f32.mrf.mxu0
    %v1077 = vadd.f32 %v494, %v1076
    %v1078 = vpop.f32.mrf.mxu0
    %v1079 = vadd.f32 %v494, %v1078
    %1080 = vdwg.mxu0
    %1081 = vmatpush.bf16.msra.mxu0 %v884
    %1082 = vmatpush.bf16.msra.mxu0 %v878
    %1083 = vmatpush.bf16.msra.mxu0 %v872
    %1084 = vmatpush.bf16.msra.mxu0 %v866
    %1085 = vmatpush.bf16.msra.mxu0 %v860
    %1086 = vmatpush.bf16.msra.mxu0 %v854
    %1087 = vmatpush.bf16.msra.mxu0 %v848
    %1088 = vmatpush.bf16.msra.mxu0 %v842
    %1089 = vmatmul.bf16.gmra.mxu0 %v489
    %v1090 = vpop.f32.mrf.mxu0
    %v1091 = vadd.f32 %v1077, %v1090
    %v1092 = vpop.f32.mrf.mxu0
    %v1093 = vadd.f32 %v1079, %v1092
    %1094 = vdwg.mxu0
    %1095 = vmatpush.bf16.msra.mxu0 %v837
    %1096 = vmatpush.bf16.msra.mxu0 %v831
    %1097 = vmatpush.bf16.msra.mxu0 %v825
    %1098 = vmatpush.bf16.msra.mxu0 %v819
    %1099 = vmatpush.bf16.msra.mxu0 %v813
    %1100 = vmatpush.bf16.msra.mxu0 %v807
    %1101 = vmatpush.bf16.msra.mxu0 %v801
    %1102 = vmatpush.bf16.msra.mxu0 %v795
    %1103 = vmatmul.bf16.gmra.mxu0 %v488
    %v1104 = vpop.f32.mrf.mxu0
    %v1105 = vadd.f32 %v495, %v1104
    %v1106 = vpop.f32.mrf.mxu0
    %v1107 = vadd.f32 %v495, %v1106
    %1108 = vdwg.mxu0
    %1109 = vmatpush.bf16.msra.mxu0 %v885
    %1110 = vmatpush.bf16.msra.mxu0 %v879
    %1111 = vmatpush.bf16.msra.mxu0 %v873
    %1112 = vmatpush.bf16.msra.mxu0 %v867
    %1113 = vmatpush.bf16.msra.mxu0 %v861
    %1114 = vmatpush.bf16.msra.mxu0 %v855
    %1115 = vmatpush.bf16.msra.mxu0 %v849
    %1116 = vmatpush.bf16.msra.mxu0 %v843
    %1117 = vmatmul.bf16.gmra.mxu0 %v489
    %v1118 = vpop.f32.mrf.mxu0
    %v1119 = vadd.f32 %v1105, %v1118
    %v1120 = vpop.f32.mrf.mxu0
    %v1121 = vadd.f32 %v1107, %v1120
    %1122 = vdwg.mxu0
    %1123 = vmatpush.bf16.msra.mxu0 %v838
    %1124 = vmatpush.bf16.msra.mxu0 %v832
    %1125 = vmatpush.bf16.msra.mxu0 %v826
    %1126 = vmatpush.bf16.msra.mxu0 %v820
    %1127 = vmatpush.bf16.msra.mxu0 %v814
    %1128 = vmatpush.bf16.msra.mxu0 %v808
    %1129 = vmatpush.bf16.msra.mxu0 %v802
    %1130 = vmatpush.bf16.msra.mxu0 %v796
    %1131 = vmatmul.bf16.gmra.mxu0 %v488
    %v1132 = vpop.f32.mrf.mxu0
    %v1133 = vadd.f32 %v496, %v1132
    %v1134 = vpop.f32.mrf.mxu0
    %v1135 = vadd.f32 %v496, %v1134
    %1136 = vdwg.mxu0
    %1137 = vmatpush.bf16.msra.mxu0 %v886
    %1138 = vmatpush.bf16.msra.mxu0 %v880
    %1139 = vmatpush.bf16.msra.mxu0 %v874
    %1140 = vmatpush.bf16.msra.mxu0 %v868
    %1141 = vmatpush.bf16.msra.mxu0 %v862
    %1142 = vmatpush.bf16.msra.mxu0 %v856
    %1143 = vmatpush.bf16.msra.mxu0 %v850
    %1144 = vmatpush.bf16.msra.mxu0 %v844
    %1145 = vmatmul.bf16.gmra.mxu0 %v489
    %v1146 = vpop.f32.mrf.mxu0
    %v1147 = vadd.f32 %v1133, %v1146
    %v1148 = vpop.f32.mrf.mxu0
    %v1149 = vadd.f32 %v1135, %v1148
    %1150 = vdwg.mxu0
    %v1151 = vmul.f32 %v1007, 0.088388346
    %v1152 = vmul.f32 %v1035, 0.088388346
    %v1153 = vmul.f32 %v1009, 0.088388346
    %v1154 = vmul.f32 %v1037, 0.088388346
    %v1155 = vpack.c.bf16 %v1151, %v1151
    %v1156 = vpack.c.bf16 %v1153, %v1153
    %v1157 = vpack.c.bf16 %v1152, %v1152
    %v1158 = vpack.c.bf16 %v1154, %v1154
    %v1159 = vpack.c.bf16 %v1063, %v1063
    %v1160 = vpack.c.bf16 %v1065, %v1065
    %v1161 = vpack.c.bf16 %v1091, %v1091
    %v1162 = vpack.c.bf16 %v1093, %v1093
    %v1163 = vpack.c.bf16 %v1119, %v1119
    %v1164 = vpack.c.bf16 %v1121, %v1121
    %v1165 = vpack.c.bf16 %v1147, %v1147
    %v1166 = vpack.c.bf16 %v1149, %v1149
    %v1171 = vperm.slane %v220, 0
    %v1172 = vperm.slane %v221, 0
    %v1173 = vperm.slane %v222, 0
    %v1174 = vperm.slane %v223, 0
    %1179 = vmatpush.bf16.xpose.msra.mxu0 0
    %1180 = vmatpush.bf16.xpose.msra.mxu0 0
    %1181 = vmatpush.bf16.xpose.msra.mxu0 0
    %1182 = vmatpush.bf16.xpose.msra.mxu0 0
    %1183 = vmatpush.bf16.xpose.msra.mxu0 0
    %1184 = vmatpush.bf16.xpose.msra.mxu0 0
    %1185 = vmatpush.bf16.xpose.msra.mxu0 0
    %1186 = vmatpush.bf16.xpose.msra.mxu0 %v1159
    %1187 = vmatmul.bf16.gmra.mxu0 %v1155
    %v1188 = vpop.f32.mrf.mxu0
    %v1189 = vadd.f32 %v1171, %v1188
    %v1190 = vpop.f32.mrf.mxu0
    %1191 = vdwg.mxu0
    %1192 = vmatpush.bf16.xpose.msra.mxu0 0
    %1193 = vmatpush.bf16.xpose.msra.mxu0 0
    %1194 = vmatpush.bf16.xpose.msra.mxu0 0
    %1195 = vmatpush.bf16.xpose.msra.mxu0 0
    %1196 = vmatpush.bf16.xpose.msra.mxu0 0
    %1197 = vmatpush.bf16.xpose.msra.mxu0 0
    %1198 = vmatpush.bf16.xpose.msra.mxu0 0
    %1199 = vmatpush.bf16.xpose.msra.mxu0 %v1160
    %1200 = vmatmul.bf16.gmra.mxu0 %v1156
    %v1201 = vpop.f32.mrf.mxu0
    %v1202 = vadd.f32 %v1172, %v1201
    %v1203 = vpop.f32.mrf.mxu0
    %1204 = vdwg.mxu0
    %1205 = vmatpush.bf16.xpose.msra.mxu0 0
    %1206 = vmatpush.bf16.xpose.msra.mxu0 0
    %1207 = vmatpush.bf16.xpose.msra.mxu0 0
    %1208 = vmatpush.bf16.xpose.msra.mxu0 0
    %1209 = vmatpush.bf16.xpose.msra.mxu0 0
    %1210 = vmatpush.bf16.xpose.msra.mxu0 0
    %1211 = vmatpush.bf16.xpose.msra.mxu0 0
    %1212 = vmatpush.bf16.xpose.msra.mxu0 %v1161
    %1213 = vmatmul.bf16.gmra.mxu0 %v1157
    %v1214 = vpop.f32.mrf.mxu0
    %v1215 = vadd.f32 %v1173, %v1214
    %v1216 = vpop.f32.mrf.mxu0
    %1217 = vdwg.mxu0
    %1218 = vmatpush.bf16.xpose.msra.mxu0 0
    %1219 = vmatpush.bf16.xpose.msra.mxu0 0
    %1220 = vmatpush.bf16.xpose.msra.mxu0 0
    %1221 = vmatpush.bf16.xpose.msra.mxu0 0
    %1222 = vmatpush.bf16.xpose.msra.mxu0 0
    %1223 = vmatpush.bf16.xpose.msra.mxu0 0
    %1224 = vmatpush.bf16.xpose.msra.mxu0 0
    %1225 = vmatpush.bf16.xpose.msra.mxu0 %v1162
    %1226 = vmatmul.bf16.gmra.mxu0 %v1158
    %v1227 = vpop.f32.mrf.mxu0
    %v1228 = vadd.f32 %v1174, %v1227
    %v1229 = vpop.f32.mrf.mxu0
    %1230 = vdwg.mxu0
    %vm1231 = vcmask 64512
    %v1232 = vsel %vm1231, %v1189, -inf
    %1233 = vmax.xlane.f32.xlu0 %v1232
    %v1234 = vpop.xlane.xlu0 %1233
    %v1235 = vsel %vm1231, %v1202, -inf
    %1236 = vmax.xlane.f32.xlu0 %v1235
    %v1237 = vpop.xlane.xlu0 %1236
    %v1238 = vsel %vm1231, %v1215, -inf
    %1239 = vmax.xlane.f32.xlu0 %v1238
    %v1240 = vpop.xlane.xlu0 %1239
    %v1241 = vsel %vm1231, %v1228, -inf
    %1242 = vmax.xlane.f32.xlu0 %v1241
    %v1243 = vpop.xlane.xlu0 %1242
    %v1244 = vsub.f32 %v1189, %v1234
    %v1245 = vsub.f32 %v1202, %v1237
    %v1246 = vsub.f32 %v1215, %v1240
    %v1247 = vsub.f32 %v1228, %v1243
    %v1248 = vmul.f32 %v1244, 1.442695
    %v1249 = vpow.pop %v1248
    %v1250 = vmul.f32 %v1245, 1.442695
    %v1251 = vpow.pop %v1250
    %v1252 = vmul.f32 %v1246, 1.442695
    %v1253 = vpow.pop %v1252
    %v1254 = vmul.f32 %v1247, 1.442695
    %v1255 = vpow.pop %v1254
    %v1256 = vsel %vm1231, %v1249, 0.0
    %1257 = vadd.xlane.f32.xlu0 %v1256
    %v1258 = vpop.xlane.xlu0 %1257
    %v1259 = vsel %vm1231, %v1251, 0.0
    %1260 = vadd.xlane.f32.xlu0 %v1259
    %v1261 = vpop.xlane.xlu0 %1260
    %v1262 = vsel %vm1231, %v1253, 0.0
    %1263 = vadd.xlane.f32.xlu0 %v1262
    %v1264 = vpop.xlane.xlu0 %1263
    %v1265 = vsel %vm1231, %v1255, 0.0
    %1266 = vadd.xlane.f32.xlu0 %v1265
    %v1267 = vpop.xlane.xlu0 %1266
    %v1268 = vrcp.pop %v1258
    %v1269 = vrcp.pop %v1261
    %v1270 = vrcp.pop %v1264
    %v1271 = vrcp.pop %v1267
    %v1272 = vmul.f32 %v1249, %v1268
    %v1273 = vmul.f32 %v1251, %v1269
    %v1274 = vmul.f32 %v1253, %v1270
    %v1275 = vmul.f32 %v1255, %v1271
    %v1276 = vpack.c.bf16 %v1272, %v1272
    %v1277 = vpack.c.bf16 %v1273, %v1273
    %v1278 = vpack.c.bf16 %v1274, %v1274
    %v1279 = vpack.c.bf16 %v1275, %v1275
    %v1281 = vsel %vm1231, %v1276, 0
    %vm1283 = vcmask 1043456
    %v1285 = vsel %vm1283, %v1163, 0
    %1287 = vmatpush.bf16.msra.mxu0 0
    %1288 = vmatpush.bf16.msra.mxu0 0
    %1289 = vmatpush.bf16.msra.mxu0 0
    %1290 = vmatpush.bf16.msra.mxu0 0
    %1291 = vmatpush.bf16.msra.mxu0 0
    %1292 = vmatpush.bf16.msra.mxu0 0
    %1293 = vmatpush.bf16.msra.mxu0 0
    %1294 = vmatpush.bf16.msra.mxu0 %v1285
    %1295 = vmatmul.bf16.gmra.mxu0 %v1281
    %v1296 = vpop.f32.mrf.mxu0
    %v1297 = vadd.f32 0.0, %v1296
    %v1298 = vpop.f32.mrf.mxu0
    %1299 = vdwg.mxu0
    %v1301 = vsel %vm1231, %v1277, 0
    %v1304 = vsel %vm1283, %v1164, 0
    %1306 = vmatpush.bf16.msra.mxu0 0
    %1307 = vmatpush.bf16.msra.mxu0 0
    %1308 = vmatpush.bf16.msra.mxu0 0
    %1309 = vmatpush.bf16.msra.mxu0 0
    %1310 = vmatpush.bf16.msra.mxu0 0
    %1311 = vmatpush.bf16.msra.mxu0 0
    %1312 = vmatpush.bf16.msra.mxu0 0
    %1313 = vmatpush.bf16.msra.mxu0 %v1304
    %1314 = vmatmul.bf16.gmra.mxu0 %v1301
    %v1315 = vpop.f32.mrf.mxu0
    %v1316 = vadd.f32 0.0, %v1315
    %v1317 = vpop.f32.mrf.mxu0
    %1318 = vdwg.mxu0
    %v1320 = vsel %vm1231, %v1278, 0
    %v1323 = vsel %vm1283, %v1165, 0
    %1325 = vmatpush.bf16.msra.mxu0 0
    %1326 = vmatpush.bf16.msra.mxu0 0
    %1327 = vmatpush.bf16.msra.mxu0 0
    %1328 = vmatpush.bf16.msra.mxu0 0
    %1329 = vmatpush.bf16.msra.mxu0 0
    %1330 = vmatpush.bf16.msra.mxu0 0
    %1331 = vmatpush.bf16.msra.mxu0 0
    %1332 = vmatpush.bf16.msra.mxu0 %v1323
    %1333 = vmatmul.bf16.gmra.mxu0 %v1320
    %v1334 = vpop.f32.mrf.mxu0
    %v1335 = vadd.f32 0.0, %v1334
    %v1336 = vpop.f32.mrf.mxu0
    %1337 = vdwg.mxu0
    %v1339 = vsel %vm1231, %v1279, 0
    %v1342 = vsel %vm1283, %v1166, 0
    %1344 = vmatpush.bf16.msra.mxu0 0
    %1345 = vmatpush.bf16.msra.mxu0 0
    %1346 = vmatpush.bf16.msra.mxu0 0
    %1347 = vmatpush.bf16.msra.mxu0 0
    %1348 = vmatpush.bf16.msra.mxu0 0
    %1349 = vmatpush.bf16.msra.mxu0 0
    %1350 = vmatpush.bf16.msra.mxu0 0
    %1351 = vmatpush.bf16.msra.mxu0 %v1342
    %1352 = vmatmul.bf16.gmra.mxu0 %v1339
    %v1353 = vpop.f32.mrf.mxu0
    %v1354 = vadd.f32 0.0, %v1353
    %v1355 = vpop.f32.mrf.mxu0
    %1356 = vdwg.mxu0
    %v1357 = vpack.c.bf16 %v1316, %v1297
    %v1358 = vpack.c.bf16 %v1354, %v1335
    %v1360 = vperm.slane %v353, 0
    %v1361 = vperm.slane %v353, 1
    %v1396 = vunpack.c.l.b16 %v321
    %v1397 = vunpack.c.h.b16 %v321
    %v1398 = vunpack.c.l.b16 %v322
    %v1399 = vunpack.c.h.b16 %v322
    %v1400 = vunpack.c.l.b16 %v323
    %v1401 = vunpack.c.h.b16 %v323
    %v1402 = vunpack.c.l.b16 %v324
    %v1403 = vunpack.c.h.b16 %v324
    %v1404 = vunpack.c.l.b16 %v325
    %v1405 = vunpack.c.h.b16 %v325
    %v1406 = vunpack.c.l.b16 %v326
    %v1407 = vunpack.c.h.b16 %v326
    %v1408 = vunpack.c.l.b16 %v327
    %v1409 = vunpack.c.h.b16 %v327
    %v1410 = vunpack.c.l.b16 %v328
    %v1411 = vunpack.c.h.b16 %v328
    %v1412 = vunpack.c.l.b16 %v329
    %v1413 = vunpack.c.h.b16 %v329
    %v1414 = vunpack.c.l.b16 %v330
    %v1415 = vunpack.c.h.b16 %v330
    %v1416 = vunpack.c.l.b16 %v331
    %v1417 = vunpack.c.h.b16 %v331
    %v1418 = vunpack.c.l.b16 %v332
    %v1419 = vunpack.c.h.b16 %v332
    %v1420 = vunpack.c.l.b16 %v333
    %v1421 = vunpack.c.h.b16 %v333
    %v1422 = vunpack.c.l.b16 %v334
    %v1423 = vunpack.c.h.b16 %v334
    %v1424 = vunpack.c.l.b16 %v335
    %v1425 = vunpack.c.h.b16 %v335
    %v1426 = vunpack.c.l.b16 %v336
    %v1427 = vunpack.c.h.b16 %v336
    %v1428 = vunpack.c.l.b16 %v337
    %v1429 = vunpack.c.h.b16 %v337
    %v1430 = vunpack.c.l.b16 %v338
    %v1431 = vunpack.c.h.b16 %v338
    %v1432 = vunpack.c.l.b16 %v339
    %v1433 = vunpack.c.h.b16 %v339
    %v1434 = vunpack.c.l.b16 %v340
    %v1435 = vunpack.c.h.b16 %v340
    %v1436 = vunpack.c.l.b16 %v341
    %v1437 = vunpack.c.h.b16 %v341
    %v1438 = vunpack.c.l.b16 %v342
    %v1439 = vunpack.c.h.b16 %v342
    %v1440 = vunpack.c.l.b16 %v343
    %v1441 = vunpack.c.h.b16 %v343
    %v1442 = vunpack.c.l.b16 %v344
    %v1443 = vunpack.c.h.b16 %v344
    %v1444 = vunpack.c.l.b16 %v345
    %v1445 = vunpack.c.h.b16 %v345
    %v1446 = vunpack.c.l.b16 %v346
    %v1447 = vunpack.c.h.b16 %v346
    %v1448 = vunpack.c.l.b16 %v347
    %v1449 = vunpack.c.h.b16 %v347
    %v1450 = vunpack.c.l.b16 %v348
    %v1451 = vunpack.c.h.b16 %v348
    %v1452 = vunpack.c.l.b16 %v349
    %v1453 = vunpack.c.h.b16 %v349
    %v1454 = vunpack.c.l.b16 %v350
    %v1455 = vunpack.c.h.b16 %v350
    %v1456 = vunpack.c.l.b16 %v351
    %v1457 = vunpack.c.h.b16 %v351
    %v1458 = vunpack.c.l.b16 %v352
    %v1459 = vunpack.c.h.b16 %v352
    %v1460 = vpack.c.b16 %v1398, %v1396
    %v1461 = vpack.c.b16 %v1399, %v1397
    %v1462 = vpack.c.b16 %v1402, %v1400
    %v1463 = vpack.c.b16 %v1403, %v1401
    %v1464 = vpack.c.b16 %v1406, %v1404
    %v1465 = vpack.c.b16 %v1407, %v1405
    %v1466 = vpack.c.b16 %v1410, %v1408
    %v1467 = vpack.c.b16 %v1411, %v1409
    %v1468 = vpack.c.b16 %v1414, %v1412
    %v1469 = vpack.c.b16 %v1415, %v1413
    %v1470 = vpack.c.b16 %v1418, %v1416
    %v1471 = vpack.c.b16 %v1419, %v1417
    %v1472 = vpack.c.b16 %v1422, %v1420
    %v1473 = vpack.c.b16 %v1423, %v1421
    %v1474 = vpack.c.b16 %v1426, %v1424
    %v1475 = vpack.c.b16 %v1427, %v1425
    %v1476 = vpack.c.b16 %v1430, %v1428
    %v1477 = vpack.c.b16 %v1431, %v1429
    %v1478 = vpack.c.b16 %v1434, %v1432
    %v1479 = vpack.c.b16 %v1435, %v1433
    %v1480 = vpack.c.b16 %v1438, %v1436
    %v1481 = vpack.c.b16 %v1439, %v1437
    %v1482 = vpack.c.b16 %v1442, %v1440
    %v1483 = vpack.c.b16 %v1443, %v1441
    %v1484 = vpack.c.b16 %v1446, %v1444
    %v1485 = vpack.c.b16 %v1447, %v1445
    %v1486 = vpack.c.b16 %v1450, %v1448
    %v1487 = vpack.c.b16 %v1451, %v1449
    %v1488 = vpack.c.b16 %v1454, %v1452
    %v1489 = vpack.c.b16 %v1455, %v1453
    %v1490 = vpack.c.b16 %v1458, %v1456
    %v1491 = vpack.c.b16 %v1459, %v1457
    %1524 = vmatpush.bf16.msra.mxu0 %v1474
    %1525 = vmatpush.bf16.msra.mxu0 %v1472
    %1526 = vmatpush.bf16.msra.mxu0 %v1470
    %1527 = vmatpush.bf16.msra.mxu0 %v1468
    %1528 = vmatpush.bf16.msra.mxu0 %v1466
    %1529 = vmatpush.bf16.msra.mxu0 %v1464
    %1530 = vmatpush.bf16.msra.mxu0 %v1462
    %1531 = vmatpush.bf16.msra.mxu0 %v1460
    %1532 = vmatmul.bf16.gmra.mxu0 %v1357
    %v1533 = vpop.f32.mrf.mxu0
    %v1534 = vadd.f32 %v1360, %v1533
    %v1535 = vpop.f32.mrf.mxu0
    %v1536 = vadd.f32 %v1360, %v1535
    %1537 = vdwg.mxu0
    %1538 = vmatpush.bf16.msra.mxu0 %v1490
    %1539 = vmatpush.bf16.msra.mxu0 %v1488
    %1540 = vmatpush.bf16.msra.mxu0 %v1486
    %1541 = vmatpush.bf16.msra.mxu0 %v1484
    %1542 = vmatpush.bf16.msra.mxu0 %v1482
    %1543 = vmatpush.bf16.msra.mxu0 %v1480
    %1544 = vmatpush.bf16.msra.mxu0 %v1478
    %1545 = vmatpush.bf16.msra.mxu0 %v1476
    %1546 = vmatmul.bf16.gmra.mxu0 %v1358
    %v1547 = vpop.f32.mrf.mxu0
    %v1548 = vadd.f32 %v1534, %v1547
    %v1549 = vpop.f32.mrf.mxu0
    %v1550 = vadd.f32 %v1536, %v1549
    %1551 = vdwg.mxu0
    %1552 = vmatpush.bf16.msra.mxu0 %v1475
    %1553 = vmatpush.bf16.msra.mxu0 %v1473
    %1554 = vmatpush.bf16.msra.mxu0 %v1471
    %1555 = vmatpush.bf16.msra.mxu0 %v1469
    %1556 = vmatpush.bf16.msra.mxu0 %v1467
    %1557 = vmatpush.bf16.msra.mxu0 %v1465
    %1558 = vmatpush.bf16.msra.mxu0 %v1463
    %1559 = vmatpush.bf16.msra.mxu0 %v1461
    %1560 = vmatmul.bf16.gmra.mxu0 %v1357
    %v1561 = vpop.f32.mrf.mxu0
    %v1562 = vadd.f32 %v1361, %v1561
    %v1563 = vpop.f32.mrf.mxu0
    %v1564 = vadd.f32 %v1361, %v1563
    %1565 = vdwg.mxu0
    %1566 = vmatpush.bf16.msra.mxu0 %v1491
    %1567 = vmatpush.bf16.msra.mxu0 %v1489
    %1568 = vmatpush.bf16.msra.mxu0 %v1487
    %1569 = vmatpush.bf16.msra.mxu0 %v1485
    %1570 = vmatpush.bf16.msra.mxu0 %v1483
    %1571 = vmatpush.bf16.msra.mxu0 %v1481
    %1572 = vmatpush.bf16.msra.mxu0 %v1479
    %1573 = vmatpush.bf16.msra.mxu0 %v1477
    %1574 = vmatmul.bf16.gmra.mxu0 %v1358
    %v1575 = vpop.f32.mrf.mxu0
    %v1576 = vadd.f32 %v1562, %v1575
    %v1577 = vpop.f32.mrf.mxu0
    %v1578 = vadd.f32 %v1564, %v1577
    %1579 = vdwg.mxu0
    %v1580 = vadd.f32 %v216, %v1548
    %v1581 = vadd.f32 %v217, %v1576
    %v1582 = vadd.f32 %v218, %v1550
    %v1583 = vadd.f32 %v219, %v1578
    %v1584 = vadd.f32 %v1580, %v1581
    %1585 = vadd.xlane.f32.xlu0 %v1584
    %v1586 = vpop.xlane.xlu0 %1585
    %v1587 = vadd.f32 %v1582, %v1583
    %1588 = vadd.xlane.f32.xlu0 %v1587
    %v1589 = vpop.xlane.xlu0 %1588
    %v1590 = vmul.f32 %v1586, %v157
    %v1591 = vmul.f32 %v1589, %v157
    %v1592 = vsub.f32 %v1580, %v1590
    %v1593 = vsub.f32 %v1581, %v1590
    %v1594 = vsub.f32 %v1582, %v1591
    %v1595 = vsub.f32 %v1583, %v1591
    %v1596 = vmul.f32 %v1592, %v1592
    %v1597 = vmul.f32 %v1593, %v1593
    %v1598 = vmul.f32 %v1594, %v1594
    %v1599 = vmul.f32 %v1595, %v1595
    %v1600 = vadd.f32 %v1596, %v1597
    %1601 = vadd.xlane.f32.xlu0 %v1600
    %v1602 = vpop.xlane.xlu0 %1601
    %v1603 = vadd.f32 %v1598, %v1599
    %1604 = vadd.xlane.f32.xlu0 %v1603
    %v1605 = vpop.xlane.xlu0 %1604
    %v1606 = vmul.f32 %v1602, %v157
    %v1607 = vmul.f32 %v1605, %v157
    %v1608 = vadd.f32 %v1606, 1e-05
    %v1609 = vadd.f32 %v1607, 1e-05
    %v1610 = vrsqrt.pop %v1608
    %v1611 = vmul.f32 %v1610, %v1608
    %v1612 = vmul.f32 %v1611, %v1610
    %v1613 = vmul.f32 0.5, %v1612
    %v1614 = vsub.f32 1.5, %v1613
    %v1615 = vmul.f32 %v1610, %v1614
    %vm1616 = vweird.f32 %v1608
    %vm1617 = vweird.f32 %v1610
    %vm1618 = vmor %vm1616, %vm1617
    %v1619 = vsel %vm1618, %v1610, %v1615
    %v1620 = vrsqrt.pop %v1609
    %v1621 = vmul.f32 %v1620, %v1609
    %v1622 = vmul.f32 %v1621, %v1620
    %v1623 = vmul.f32 0.5, %v1622
    %v1624 = vsub.f32 1.5, %v1623
    %v1625 = vmul.f32 %v1620, %v1624
    %vm1626 = vweird.f32 %v1609
    %vm1627 = vweird.f32 %v1620
    %vm1628 = vmor %vm1626, %vm1627
    %v1629 = vsel %vm1628, %v1620, %v1625
    %v1630 = vmul.f32 %v1592, %v1619
    %v1631 = vmul.f32 %v1593, %v1619
    %v1632 = vmul.f32 %v1594, %v1629
    %v1633 = vmul.f32 %v1595, %v1629
    %v1635 = vperm.slane %v354, 0
    %v1636 = vperm.slane %v354, 1
    %v1639 = vmul.f32 %v1630, %v1635
    %v1640 = vmul.f32 %v1631, %v1636
    %v1641 = vmul.f32 %v1632, %v1635
    %v1642 = vmul.f32 %v1633, %v1636
    %v1644 = vperm.slane %v355, 0
    %v1645 = vperm.slane %v355, 1
    %v1648 = vadd.f32 %v1639, %v1644
    %v1649 = vadd.f32 %v1640, %v1645
    %v1650 = vadd.f32 %v1641, %v1644
    %v1651 = vadd.f32 %v1642, %v1645
    %v1652 = vpack.c.bf16 %v1650, %v1648
    %v1653 = vpack.c.bf16 %v1651, %v1649
    %v1655 = vperm.slane %v420, 0
    %v1656 = vperm.slane %v420, 1
    %v1657 = vperm.slane %v420, 2
    %v1658 = vperm.slane %v420, 3
    %v1727 = vunpack.c.l.b16 %v356
    %v1728 = vunpack.c.h.b16 %v356
    %v1729 = vunpack.c.l.b16 %v357
    %v1730 = vunpack.c.h.b16 %v357
    %v1731 = vunpack.c.l.b16 %v358
    %v1732 = vunpack.c.h.b16 %v358
    %v1733 = vunpack.c.l.b16 %v359
    %v1734 = vunpack.c.h.b16 %v359
    %v1735 = vunpack.c.l.b16 %v360
    %v1736 = vunpack.c.h.b16 %v360
    %v1737 = vunpack.c.l.b16 %v361
    %v1738 = vunpack.c.h.b16 %v361
    %v1739 = vunpack.c.l.b16 %v362
    %v1740 = vunpack.c.h.b16 %v362
    %v1741 = vunpack.c.l.b16 %v363
    %v1742 = vunpack.c.h.b16 %v363
    %v1743 = vunpack.c.l.b16 %v364
    %v1744 = vunpack.c.h.b16 %v364
    %v1745 = vunpack.c.l.b16 %v365
    %v1746 = vunpack.c.h.b16 %v365
    %v1747 = vunpack.c.l.b16 %v366
    %v1748 = vunpack.c.h.b16 %v366
    %v1749 = vunpack.c.l.b16 %v367
    %v1750 = vunpack.c.h.b16 %v367
    %v1751 = vunpack.c.l.b16 %v368
    %v1752 = vunpack.c.h.b16 %v368
    %v1753 = vunpack.c.l.b16 %v369
    %v1754 = vunpack.c.h.b16 %v369
    %v1755 = vunpack.c.l.b16 %v370
    %v1756 = vunpack.c.h.b16 %v370
    %v1757 = vunpack.c.l.b16 %v371
    %v1758 = vunpack.c.h.b16 %v371
    %v1759 = vunpack.c.l.b16 %v372
    %v1760 = vunpack.c.h.b16 %v372
    %v1761 = vunpack.c.l.b16 %v373
    %v1762 = vunpack.c.h.b16 %v373
    %v1763 = vunpack.c.l.b16 %v374
    %v1764 = vunpack.c.h.b16 %v374
    %v1765 = vunpack.c.l.b16 %v375
    %v1766 = vunpack.c.h.b16 %v375
    %v1767 = vunpack.c.l.b16 %v376
    %v1768 = vunpack.c.h.b16 %v376
    %v1769 = vunpack.c.l.b16 %v377
    %v1770 = vunpack.c.h.b16 %v377
    %v1771 = vunpack.c.l.b16 %v378
    %v1772 = vunpack.c.h.b16 %v378
    %v1773 = vunpack.c.l.b16 %v379
    %v1774 = vunpack.c.h.b16 %v379
    %v1775 = vunpack.c.l.b16 %v380
    %v1776 = vunpack.c.h.b16 %v380
    %v1777 = vunpack.c.l.b16 %v381
    %v1778 = vunpack.c.h.b16 %v381
    %v1779 = vunpack.c.l.b16 %v382
    %v1780 = vunpack.c.h.b16 %v382
    %v1781 = vunpack.c.l.b16 %v383
    %v1782 = vunpack.c.h.b16 %v383
    %v1783 = vunpack.c.l.b16 %v384
    %v1784 = vunpack.c.h.b16 %v384
    %v1785 = vunpack.c.l.b16 %v385
    %v1786 = vunpack.c.h.b16 %v385
    %v1787 = vunpack.c.l.b16 %v386
    %v1788 = vunpack.c.h.b16 %v386
    %v1789 = vunpack.c.l.b16 %v387
    %v1790 = vunpack.c.h.b16 %v387
    %v1791 = vunpack.c.l.b16 %v388
    %v1792 = vunpack.c.h.b16 %v388
    %v1793 = vunpack.c.l.b16 %v389
    %v1794 = vunpack.c.h.b16 %v389
    %v1795 = vunpack.c.l.b16 %v390
    %v1796 = vunpack.c.h.b16 %v390
    %v1797 = vunpack.c.l.b16 %v391
    %v1798 = vunpack.c.h.b16 %v391
    %v1799 = vunpack.c.l.b16 %v392
    %v1800 = vunpack.c.h.b16 %v392
    %v1801 = vunpack.c.l.b16 %v393
    %v1802 = vunpack.c.h.b16 %v393
    %v1803 = vunpack.c.l.b16 %v394
    %v1804 = vunpack.c.h.b16 %v394
    %v1805 = vunpack.c.l.b16 %v395
    %v1806 = vunpack.c.h.b16 %v395
    %v1807 = vunpack.c.l.b16 %v396
    %v1808 = vunpack.c.h.b16 %v396
    %v1809 = vunpack.c.l.b16 %v397
    %v1810 = vunpack.c.h.b16 %v397
    %v1811 = vunpack.c.l.b16 %v398
    %v1812 = vunpack.c.h.b16 %v398
    %v1813 = vunpack.c.l.b16 %v399
    %v1814 = vunpack.c.h.b16 %v399
    %v1815 = vunpack.c.l.b16 %v400
    %v1816 = vunpack.c.h.b16 %v400
    %v1817 = vunpack.c.l.b16 %v401
    %v1818 = vunpack.c.h.b16 %v401
    %v1819 = vunpack.c.l.b16 %v402
    %v1820 = vunpack.c.h.b16 %v402
    %v1821 = vunpack.c.l.b16 %v403
    %v1822 = vunpack.c.h.b16 %v403
    %v1823 = vunpack.c.l.b16 %v404
    %v1824 = vunpack.c.h.b16 %v404
    %v1825 = vunpack.c.l.b16 %v405
    %v1826 = vunpack.c.h.b16 %v405
    %v1827 = vunpack.c.l.b16 %v406
    %v1828 = vunpack.c.h.b16 %v406
    %v1829 = vunpack.c.l.b16 %v407
    %v1830 = vunpack.c.h.b16 %v407
    %v1831 = vunpack.c.l.b16 %v408
    %v1832 = vunpack.c.h.b16 %v408
    %v1833 = vunpack.c.l.b16 %v409
    %v1834 = vunpack.c.h.b16 %v409
    %v1835 = vunpack.c.l.b16 %v410
    %v1836 = vunpack.c.h.b16 %v410
    %v1837 = vunpack.c.l.b16 %v411
    %v1838 = vunpack.c.h.b16 %v411
    %v1839 = vunpack.c.l.b16 %v412
    %v1840 = vunpack.c.h.b16 %v412
    %v1841 = vunpack.c.l.b16 %v413
    %v1842 = vunpack.c.h.b16 %v413
    %v1843 = vunpack.c.l.b16 %v414
    %v1844 = vunpack.c.h.b16 %v414
    %v1845 = vunpack.c.l.b16 %v415
    %v1846 = vunpack.c.h.b16 %v415
    %v1847 = vunpack.c.l.b16 %v416
    %v1848 = vunpack.c.h.b16 %v416
    %v1849 = vunpack.c.l.b16 %v417
    %v1850 = vunpack.c.h.b16 %v417
    %v1851 = vunpack.c.l.b16 %v418
    %v1852 = vunpack.c.h.b16 %v418
    %v1853 = vunpack.c.l.b16 %v419
    %v1854 = vunpack.c.h.b16 %v419
    %v1855 = vpack.c.b16 %v1731, %v1727
    %v1856 = vpack.c.b16 %v1732, %v1728
    %v1857 = vpack.c.b16 %v1733, %v1729
    %v1858 = vpack.c.b16 %v1734, %v1730
    %v1859 = vpack.c.b16 %v1739, %v1735
    %v1860 = vpack.c.b16 %v1740, %v1736
    %v1861 = vpack.c.b16 %v1741, %v1737
    %v1862 = vpack.c.b16 %v1742, %v1738
    %v1863 = vpack.c.b16 %v1747, %v1743
    %v1864 = vpack.c.b16 %v1748, %v1744
    %v1865 = vpack.c.b16 %v1749, %v1745
    %v1866 = vpack.c.b16 %v1750, %v1746
    %v1867 = vpack.c.b16 %v1755, %v1751
    %v1868 = vpack.c.b16 %v1756, %v1752
    %v1869 = vpack.c.b16 %v1757, %v1753
    %v1870 = vpack.c.b16 %v1758, %v1754
    %v1871 = vpack.c.b16 %v1763, %v1759
    %v1872 = vpack.c.b16 %v1764, %v1760
    %v1873 = vpack.c.b16 %v1765, %v1761
    %v1874 = vpack.c.b16 %v1766, %v1762
    %v1875 = vpack.c.b16 %v1771, %v1767
    %v1876 = vpack.c.b16 %v1772, %v1768
    %v1877 = vpack.c.b16 %v1773, %v1769
    %v1878 = vpack.c.b16 %v1774, %v1770
    %v1879 = vpack.c.b16 %v1779, %v1775
    %v1880 = vpack.c.b16 %v1780, %v1776
    %v1881 = vpack.c.b16 %v1781, %v1777
    %v1882 = vpack.c.b16 %v1782, %v1778
    %v1883 = vpack.c.b16 %v1787, %v1783
    %v1884 = vpack.c.b16 %v1788, %v1784
    %v1885 = vpack.c.b16 %v1789, %v1785
    %v1886 = vpack.c.b16 %v1790, %v1786
    %v1887 = vpack.c.b16 %v1795, %v1791
    %v1888 = vpack.c.b16 %v1796, %v1792
    %v1889 = vpack.c.b16 %v1797, %v1793
    %v1890 = vpack.c.b16 %v1798, %v1794
    %v1891 = vpack.c.b16 %v1803, %v1799
    %v1892 = vpack.c.b16 %v1804, %v1800
    %v1893 = vpack.c.b16 %v1805, %v1801
    %v1894 = vpack.c.b16 %v1806, %v1802
    %v1895 = vpack.c.b16 %v1811, %v1807
    %v1896 = vpack.c.b16 %v1812, %v1808
    %v1897 = vpack.c.b16 %v1813, %v1809
    %v1898 = vpack.c.b16 %v1814, %v1810
    %v1899 = vpack.c.b16 %v1819, %v1815
    %v1900 = vpack.c.b16 %v1820, %v1816
    %v1901 = vpack.c.b16 %v1821, %v1817
    %v1902 = vpack.c.b16 %v1822, %v1818
    %v1903 = vpack.c.b16 %v1827, %v1823
    %v1904 = vpack.c.b16 %v1828, %v1824
    %v1905 = vpack.c.b16 %v1829, %v1825
    %v1906 = vpack.c.b16 %v1830, %v1826
    %v1907 = vpack.c.b16 %v1835, %v1831
    %v1908 = vpack.c.b16 %v1836, %v1832
    %v1909 = vpack.c.b16 %v1837, %v1833
    %v1910 = vpack.c.b16 %v1838, %v1834
    %v1911 = vpack.c.b16 %v1843, %v1839
    %v1912 = vpack.c.b16 %v1844, %v1840
    %v1913 = vpack.c.b16 %v1845, %v1841
    %v1914 = vpack.c.b16 %v1846, %v1842
    %v1915 = vpack.c.b16 %v1851, %v1847
    %v1916 = vpack.c.b16 %v1852, %v1848
    %v1917 = vpack.c.b16 %v1853, %v1849
    %v1918 = vpack.c.b16 %v1854, %v1850
    %1983 = vmatpush.bf16.msra.mxu0 %v1883
    %1984 = vmatpush.bf16.msra.mxu0 %v1879
    %1985 = vmatpush.bf16.msra.mxu0 %v1875
    %1986 = vmatpush.bf16.msra.mxu0 %v1871
    %1987 = vmatpush.bf16.msra.mxu0 %v1867
    %1988 = vmatpush.bf16.msra.mxu0 %v1863
    %1989 = vmatpush.bf16.msra.mxu0 %v1859
    %1990 = vmatpush.bf16.msra.mxu0 %v1855
    %1991 = vmatmul.bf16.gmra.mxu0 %v1652
    %v1992 = vpop.f32.mrf.mxu0
    %v1993 = vadd.f32 %v1655, %v1992
    %v1994 = vpop.f32.mrf.mxu0
    %v1995 = vadd.f32 %v1655, %v1994
    %1996 = vdwg.mxu0
    %1997 = vmatpush.bf16.msra.mxu0 %v1915
    %1998 = vmatpush.bf16.msra.mxu0 %v1911
    %1999 = vmatpush.bf16.msra.mxu0 %v1907
    %2000 = vmatpush.bf16.msra.mxu0 %v1903
    %2001 = vmatpush.bf16.msra.mxu0 %v1899
    %2002 = vmatpush.bf16.msra.mxu0 %v1895
    %2003 = vmatpush.bf16.msra.mxu0 %v1891
    %2004 = vmatpush.bf16.msra.mxu0 %v1887
    %2005 = vmatmul.bf16.gmra.mxu0 %v1653
    %v2006 = vpop.f32.mrf.mxu0
    %v2007 = vadd.f32 %v1993, %v2006
    %v2008 = vpop.f32.mrf.mxu0
    %v2009 = vadd.f32 %v1995, %v2008
    %2010 = vdwg.mxu0
    %2011 = vmatpush.bf16.msra.mxu0 %v1884
    %2012 = vmatpush.bf16.msra.mxu0 %v1880
    %2013 = vmatpush.bf16.msra.mxu0 %v1876
    %2014 = vmatpush.bf16.msra.mxu0 %v1872
    %2015 = vmatpush.bf16.msra.mxu0 %v1868
    %2016 = vmatpush.bf16.msra.mxu0 %v1864
    %2017 = vmatpush.bf16.msra.mxu0 %v1860
    %2018 = vmatpush.bf16.msra.mxu0 %v1856
    %2019 = vmatmul.bf16.gmra.mxu0 %v1652
    %v2020 = vpop.f32.mrf.mxu0
    %v2021 = vadd.f32 %v1656, %v2020
    %v2022 = vpop.f32.mrf.mxu0
    %v2023 = vadd.f32 %v1656, %v2022
    %2024 = vdwg.mxu0
    %2025 = vmatpush.bf16.msra.mxu0 %v1916
    %2026 = vmatpush.bf16.msra.mxu0 %v1912
    %2027 = vmatpush.bf16.msra.mxu0 %v1908
    %2028 = vmatpush.bf16.msra.mxu0 %v1904
    %2029 = vmatpush.bf16.msra.mxu0 %v1900
    %2030 = vmatpush.bf16.msra.mxu0 %v1896
    %2031 = vmatpush.bf16.msra.mxu0 %v1892
    %2032 = vmatpush.bf16.msra.mxu0 %v1888
    %2033 = vmatmul.bf16.gmra.mxu0 %v1653
    %v2034 = vpop.f32.mrf.mxu0
    %v2035 = vadd.f32 %v2021, %v2034
    %v2036 = vpop.f32.mrf.mxu0
    %v2037 = vadd.f32 %v2023, %v2036
    %2038 = vdwg.mxu0
    %2039 = vmatpush.bf16.msra.mxu0 %v1885
    %2040 = vmatpush.bf16.msra.mxu0 %v1881
    %2041 = vmatpush.bf16.msra.mxu0 %v1877
    %2042 = vmatpush.bf16.msra.mxu0 %v1873
    %2043 = vmatpush.bf16.msra.mxu0 %v1869
    %2044 = vmatpush.bf16.msra.mxu0 %v1865
    %2045 = vmatpush.bf16.msra.mxu0 %v1861
    %2046 = vmatpush.bf16.msra.mxu0 %v1857
    %2047 = vmatmul.bf16.gmra.mxu0 %v1652
    %v2048 = vpop.f32.mrf.mxu0
    %v2049 = vadd.f32 %v1657, %v2048
    %v2050 = vpop.f32.mrf.mxu0
    %v2051 = vadd.f32 %v1657, %v2050
    %2052 = vdwg.mxu0
    %2053 = vmatpush.bf16.msra.mxu0 %v1917
    %2054 = vmatpush.bf16.msra.mxu0 %v1913
    %2055 = vmatpush.bf16.msra.mxu0 %v1909
    %2056 = vmatpush.bf16.msra.mxu0 %v1905
    %2057 = vmatpush.bf16.msra.mxu0 %v1901
    %2058 = vmatpush.bf16.msra.mxu0 %v1897
    %2059 = vmatpush.bf16.msra.mxu0 %v1893
    %2060 = vmatpush.bf16.msra.mxu0 %v1889
    %2061 = vmatmul.bf16.gmra.mxu0 %v1653
    %v2062 = vpop.f32.mrf.mxu0
    %v2063 = vadd.f32 %v2049, %v2062
    %v2064 = vpop.f32.mrf.mxu0
    %v2065 = vadd.f32 %v2051, %v2064
    %2066 = vdwg.mxu0
    %2067 = vmatpush.bf16.msra.mxu0 %v1886
    %2068 = vmatpush.bf16.msra.mxu0 %v1882
    %2069 = vmatpush.bf16.msra.mxu0 %v1878
    %2070 = vmatpush.bf16.msra.mxu0 %v1874
    %2071 = vmatpush.bf16.msra.mxu0 %v1870
    %2072 = vmatpush.bf16.msra.mxu0 %v1866
    %2073 = vmatpush.bf16.msra.mxu0 %v1862
    %2074 = vmatpush.bf16.msra.mxu0 %v1858
    %2075 = vmatmul.bf16.gmra.mxu0 %v1652
    %v2076 = vpop.f32.mrf.mxu0
    %v2077 = vadd.f32 %v1658, %v2076
    %v2078 = vpop.f32.mrf.mxu0
    %v2079 = vadd.f32 %v1658, %v2078
    %2080 = vdwg.mxu0
    %2081 = vmatpush.bf16.msra.mxu0 %v1918
    %2082 = vmatpush.bf16.msra.mxu0 %v1914
    %2083 = vmatpush.bf16.msra.mxu0 %v1910
    %2084 = vmatpush.bf16.msra.mxu0 %v1906
    %2085 = vmatpush.bf16.msra.mxu0 %v1902
    %2086 = vmatpush.bf16.msra.mxu0 %v1898
    %2087 = vmatpush.bf16.msra.mxu0 %v1894
    %2088 = vmatpush.bf16.msra.mxu0 %v1890
    %2089 = vmatmul.bf16.gmra.mxu0 %v1653
    %v2090 = vpop.f32.mrf.mxu0
    %v2091 = vadd.f32 %v2077, %v2090
    %v2092 = vpop.f32.mrf.mxu0
    %v2093 = vadd.f32 %v2079, %v2092
    %2094 = vdwg.mxu0
    %v2095 = vmul.f32 %v2007, 0.5
    %v2096 = vmul.f32 %v2035, 0.5
    %v2097 = vmul.f32 %v2063, 0.5
    %v2098 = vmul.f32 %v2091, 0.5
    %v2099 = vmul.f32 %v2009, 0.5
    %v2100 = vmul.f32 %v2037, 0.5
    %v2101 = vmul.f32 %v2065, 0.5
    %v2102 = vmul.f32 %v2093, 0.5
    %v2103 = vmul.f32 %v2007, 0.044715
    %v2104 = vmul.f32 %v2035, 0.044715
    %v2105 = vmul.f32 %v2063, 0.044715
    %v2106 = vmul.f32 %v2091, 0.044715
    %v2107 = vmul.f32 %v2009, 0.044715
    %v2108 = vmul.f32 %v2037, 0.044715
    %v2109 = vmul.f32 %v2065, 0.044715
    %v2110 = vmul.f32 %v2093, 0.044715
    %v2111 = vmul.f32 %v2103, %v2007
    %v2112 = vmul.f32 %v2104, %v2035
    %v2113 = vmul.f32 %v2105, %v2063
    %v2114 = vmul.f32 %v2106, %v2091
    %v2115 = vmul.f32 %v2107, %v2009
    %v2116 = vmul.f32 %v2108, %v2037
    %v2117 = vmul.f32 %v2109, %v2065
    %v2118 = vmul.f32 %v2110, %v2093
    %v2119 = vmul.f32 %v2111, %v2007
    %v2120 = vmul.f32 %v2112, %v2035
    %v2121 = vmul.f32 %v2113, %v2063
    %v2122 = vmul.f32 %v2114, %v2091
    %v2123 = vmul.f32 %v2115, %v2009
    %v2124 = vmul.f32 %v2116, %v2037
    %v2125 = vmul.f32 %v2117, %v2065
    %v2126 = vmul.f32 %v2118, %v2093
    %v2127 = vadd.f32 %v2007, %v2119
    %v2128 = vadd.f32 %v2035, %v2120
    %v2129 = vadd.f32 %v2063, %v2121
    %v2130 = vadd.f32 %v2091, %v2122
    %v2131 = vadd.f32 %v2009, %v2123
    %v2132 = vadd.f32 %v2037, %v2124
    %v2133 = vadd.f32 %v2065, %v2125
    %v2134 = vadd.f32 %v2093, %v2126
    %v2135 = vmul.f32 %v2127, 0.7978846
    %v2136 = vmul.f32 %v2128, 0.7978846
    %v2137 = vmul.f32 %v2129, 0.7978846
    %v2138 = vmul.f32 %v2130, 0.7978846
    %v2139 = vmul.f32 %v2131, 0.7978846
    %v2140 = vmul.f32 %v2132, 0.7978846
    %v2141 = vmul.f32 %v2133, 0.7978846
    %v2142 = vmul.f32 %v2134, 0.7978846
    %v2143 = vtanh.pop %v2135
    %v2144 = vtanh.pop %v2136
    %v2145 = vtanh.pop %v2137
    %v2146 = vtanh.pop %v2138
    %v2147 = vtanh.pop %v2139
    %v2148 = vtanh.pop %v2140
    %v2149 = vtanh.pop %v2141
    %v2150 = vtanh.pop %v2142
    %v2151 = vadd.f32 %v2143, 1.0
    %v2152 = vadd.f32 %v2144, 1.0
    %v2153 = vadd.f32 %v2145, 1.0
    %v2154 = vadd.f32 %v2146, 1.0
    %v2155 = vadd.f32 %v2147, 1.0
    %v2156 = vadd.f32 %v2148, 1.0
    %v2157 = vadd.f32 %v2149, 1.0
    %v2158 = vadd.f32 %v2150, 1.0
    %v2159 = vmul.f32 %v2095, %v2151
    %v2160 = vmul.f32 %v2096, %v2152
    %v2161 = vmul.f32 %v2097, %v2153
    %v2162 = vmul.f32 %v2098, %v2154
    %v2163 = vmul.f32 %v2099, %v2155
    %v2164 = vmul.f32 %v2100, %v2156
    %v2165 = vmul.f32 %v2101, %v2157
    %v2166 = vmul.f32 %v2102, %v2158
    %v2167 = vpack.c.bf16 %v2163, %v2159
    %v2168 = vpack.c.bf16 %v2164, %v2160
    %v2169 = vpack.c.bf16 %v2165, %v2161
    %v2170 = vpack.c.bf16 %v2166, %v2162
    %v2235 = vunpack.c.l.b16 %v421
    %v2236 = vunpack.c.h.b16 %v421
    %v2237 = vunpack.c.l.b16 %v422
    %v2238 = vunpack.c.h.b16 %v422
    %v2239 = vunpack.c.l.b16 %v423
    %v2240 = vunpack.c.h.b16 %v423
    %v2241 = vunpack.c.l.b16 %v424
    %v2242 = vunpack.c.h.b16 %v424
    %v2243 = vunpack.c.l.b16 %v425
    %v2244 = vunpack.c.h.b16 %v425
    %v2245 = vunpack.c.l.b16 %v426
    %v2246 = vunpack.c.h.b16 %v426
    %v2247 = vunpack.c.l.b16 %v427
    %v2248 = vunpack.c.h.b16 %v427
    %v2249 = vunpack.c.l.b16 %v428
    %v2250 = vunpack.c.h.b16 %v428
    %v2251 = vunpack.c.l.b16 %v429
    %v2252 = vunpack.c.h.b16 %v429
    %v2253 = vunpack.c.l.b16 %v430
    %v2254 = vunpack.c.h.b16 %v430
    %v2255 = vunpack.c.l.b16 %v431
    %v2256 = vunpack.c.h.b16 %v431
    %v2257 = vunpack.c.l.b16 %v432
    %v2258 = vunpack.c.h.b16 %v432
    %v2259 = vunpack.c.l.b16 %v433
    %v2260 = vunpack.c.h.b16 %v433
    %v2261 = vunpack.c.l.b16 %v434
    %v2262 = vunpack.c.h.b16 %v434
    %v2263 = vunpack.c.l.b16 %v435
    %v2264 = vunpack.c.h.b16 %v435
    %v2265 = vunpack.c.l.b16 %v436
    %v2266 = vunpack.c.h.b16 %v436
    %v2267 = vunpack.c.l.b16 %v437
    %v2268 = vunpack.c.h.b16 %v437
    %v2269 = vunpack.c.l.b16 %v438
    %v2270 = vunpack.c.h.b16 %v438
    %v2271 = vunpack.c.l.b16 %v439
    %v2272 = vunpack.c.h.b16 %v439
    %v2273 = vunpack.c.l.b16 %v440
    %v2274 = vunpack.c.h.b16 %v440
    %v2275 = vunpack.c.l.b16 %v441
    %v2276 = vunpack.c.h.b16 %v441
    %v2277 = vunpack.c.l.b16 %v442
    %v2278 = vunpack.c.h.b16 %v442
    %v2279 = vunpack.c.l.b16 %v443
    %v2280 = vunpack.c.h.b16 %v443
    %v2281 = vunpack.c.l.b16 %v444
    %v2282 = vunpack.c.h.b16 %v444
    %v2283 = vunpack.c.l.b16 %v445
    %v2284 = vunpack.c.h.b16 %v445
    %v2285 = vunpack.c.l.b16 %v446
    %v2286 = vunpack.c.h.b16 %v446
    %v2287 = vunpack.c.l.b16 %v447
    %v2288 = vunpack.c.h.b16 %v447
    %v2289 = vunpack.c.l.b16 %v448
    %v2290 = vunpack.c.h.b16 %v448
    %v2291 = vunpack.c.l.b16 %v449
    %v2292 = vunpack.c.h.b16 %v449
    %v2293 = vunpack.c.l.b16 %v450
    %v2294 = vunpack.c.h.b16 %v450
    %v2295 = vunpack.c.l.b16 %v451
    %v2296 = vunpack.c.h.b16 %v451
    %v2297 = vunpack.c.l.b16 %v452
    %v2298 = vunpack.c.h.b16 %v452
    %v2299 = vunpack.c.l.b16 %v453
    %v2300 = vunpack.c.h.b16 %v453
    %v2301 = vunpack.c.l.b16 %v454
    %v2302 = vunpack.c.h.b16 %v454
    %v2303 = vunpack.c.l.b16 %v455
    %v2304 = vunpack.c.h.b16 %v455
    %v2305 = vunpack.c.l.b16 %v456
    %v2306 = vunpack.c.h.b16 %v456
    %v2307 = vunpack.c.l.b16 %v457
    %v2308 = vunpack.c.h.b16 %v457
    %v2309 = vunpack.c.l.b16 %v458
    %v2310 = vunpack.c.h.b16 %v458
    %v2311 = vunpack.c.l.b16 %v459
    %v2312 = vunpack.c.h.b16 %v459
    %v2313 = vunpack.c.l.b16 %v460
    %v2314 = vunpack.c.h.b16 %v460
    %v2315 = vunpack.c.l.b16 %v461
    %v2316 = vunpack.c.h.b16 %v461
    %v2317 = vunpack.c.l.b16 %v462
    %v2318 = vunpack.c.h.b16 %v462
    %v2319 = vunpack.c.l.b16 %v463
    %v2320 = vunpack.c.h.b16 %v463
    %v2321 = vunpack.c.l.b16 %v464
    %v2322 = vunpack.c.h.b16 %v464
    %v2323 = vunpack.c.l.b16 %v465
    %v2324 = vunpack.c.h.b16 %v465
    %v2325 = vunpack.c.l.b16 %v466
    %v2326 = vunpack.c.h.b16 %v466
    %v2327 = vunpack.c.l.b16 %v467
    %v2328 = vunpack.c.h.b16 %v467
    %v2329 = vunpack.c.l.b16 %v468
    %v2330 = vunpack.c.h.b16 %v468
    %v2331 = vunpack.c.l.b16 %v469
    %v2332 = vunpack.c.h.b16 %v469
    %v2333 = vunpack.c.l.b16 %v470
    %v2334 = vunpack.c.h.b16 %v470
    %v2335 = vunpack.c.l.b16 %v471
    %v2336 = vunpack.c.h.b16 %v471
    %v2337 = vunpack.c.l.b16 %v472
    %v2338 = vunpack.c.h.b16 %v472
    %v2339 = vunpack.c.l.b16 %v473
    %v2340 = vunpack.c.h.b16 %v473
    %v2341 = vunpack.c.l.b16 %v474
    %v2342 = vunpack.c.h.b16 %v474
    %v2343 = vunpack.c.l.b16 %v475
    %v2344 = vunpack.c.h.b16 %v475
    %v2345 = vunpack.c.l.b16 %v476
    %v2346 = vunpack.c.h.b16 %v476
    %v2347 = vunpack.c.l.b16 %v477
    %v2348 = vunpack.c.h.b16 %v477
    %v2349 = vunpack.c.l.b16 %v478
    %v2350 = vunpack.c.h.b16 %v478
    %v2351 = vunpack.c.l.b16 %v479
    %v2352 = vunpack.c.h.b16 %v479
    %v2353 = vunpack.c.l.b16 %v480
    %v2354 = vunpack.c.h.b16 %v480
    %v2355 = vunpack.c.l.b16 %v481
    %v2356 = vunpack.c.h.b16 %v481
    %v2357 = vunpack.c.l.b16 %v482
    %v2358 = vunpack.c.h.b16 %v482
    %v2359 = vunpack.c.l.b16 %v483
    %v2360 = vunpack.c.h.b16 %v483
    %v2361 = vunpack.c.l.b16 %v484
    %v2362 = vunpack.c.h.b16 %v484
    %v2363 = vpack.c.b16 %v2237, %v2235
    %v2364 = vpack.c.b16 %v2238, %v2236
    %v2365 = vpack.c.b16 %v2241, %v2239
    %v2366 = vpack.c.b16 %v2242, %v2240
    %v2367 = vpack.c.b16 %v2245, %v2243
    %v2368 = vpack.c.b16 %v2246, %v2244
    %v2369 = vpack.c.b16 %v2249, %v2247
    %v2370 = vpack.c.b16 %v2250, %v2248
    %v2371 = vpack.c.b16 %v2253, %v2251
    %v2372 = vpack.c.b16 %v2254, %v2252
    %v2373 = vpack.c.b16 %v2257, %v2255
    %v2374 = vpack.c.b16 %v2258, %v2256
    %v2375 = vpack.c.b16 %v2261, %v2259
    %v2376 = vpack.c.b16 %v2262, %v2260
    %v2377 = vpack.c.b16 %v2265, %v2263
    %v2378 = vpack.c.b16 %v2266, %v2264
    %v2379 = vpack.c.b16 %v2269, %v2267
    %v2380 = vpack.c.b16 %v2270, %v2268
    %v2381 = vpack.c.b16 %v2273, %v2271
    %v2382 = vpack.c.b16 %v2274, %v2272
    %v2383 = vpack.c.b16 %v2277, %v2275
    %v2384 = vpack.c.b16 %v2278, %v2276
    %v2385 = vpack.c.b16 %v2281, %v2279
    %v2386 = vpack.c.b16 %v2282, %v2280
    %v2387 = vpack.c.b16 %v2285, %v2283
    %v2388 = vpack.c.b16 %v2286, %v2284
    %v2389 = vpack.c.b16 %v2289, %v2287
    %v2390 = vpack.c.b16 %v2290, %v2288
    %v2391 = vpack.c.b16 %v2293, %v2291
    %v2392 = vpack.c.b16 %v2294, %v2292
    %v2393 = vpack.c.b16 %v2297, %v2295
    %v2394 = vpack.c.b16 %v2298, %v2296
    %v2395 = vpack.c.b16 %v2301, %v2299
    %v2396 = vpack.c.b16 %v2302, %v2300
    %v2397 = vpack.c.b16 %v2305, %v2303
    %v2398 = vpack.c.b16 %v2306, %v2304
    %v2399 = vpack.c.b16 %v2309, %v2307
    %v2400 = vpack.c.b16 %v2310, %v2308
    %v2401 = vpack.c.b16 %v2313, %v2311
    %v2402 = vpack.c.b16 %v2314, %v2312
    %v2403 = vpack.c.b16 %v2317, %v2315
    %v2404 = vpack.c.b16 %v2318, %v2316
    %v2405 = vpack.c.b16 %v2321, %v2319
    %v2406 = vpack.c.b16 %v2322, %v2320
    %v2407 = vpack.c.b16 %v2325, %v2323
    %v2408 = vpack.c.b16 %v2326, %v2324
    %v2409 = vpack.c.b16 %v2329, %v2327
    %v2410 = vpack.c.b16 %v2330, %v2328
    %v2411 = vpack.c.b16 %v2333, %v2331
    %v2412 = vpack.c.b16 %v2334, %v2332
    %v2413 = vpack.c.b16 %v2337, %v2335
    %v2414 = vpack.c.b16 %v2338, %v2336
    %v2415 = vpack.c.b16 %v2341, %v2339
    %v2416 = vpack.c.b16 %v2342, %v2340
    %v2417 = vpack.c.b16 %v2345, %v2343
    %v2418 = vpack.c.b16 %v2346, %v2344
    %v2419 = vpack.c.b16 %v2349, %v2347
    %v2420 = vpack.c.b16 %v2350, %v2348
    %v2421 = vpack.c.b16 %v2353, %v2351
    %v2422 = vpack.c.b16 %v2354, %v2352
    %v2423 = vpack.c.b16 %v2357, %v2355
    %v2424 = vpack.c.b16 %v2358, %v2356
    %v2425 = vpack.c.b16 %v2361, %v2359
    %v2426 = vpack.c.b16 %v2362, %v2360
    %2491 = vmatpush.bf16.msra.mxu0 %v2377
    %2492 = vmatpush.bf16.msra.mxu0 %v2375
    %2493 = vmatpush.bf16.msra.mxu0 %v2373
    %2494 = vmatpush.bf16.msra.mxu0 %v2371
    %2495 = vmatpush.bf16.msra.mxu0 %v2369
    %2496 = vmatpush.bf16.msra.mxu0 %v2367
    %2497 = vmatpush.bf16.msra.mxu0 %v2365
    %2498 = vmatpush.bf16.msra.mxu0 %v2363
    %2499 = vmatmul.bf16.gmra.mxu0 %v2167
    %v2500 = vpop.f32.mrf.mxu0
    %v2501 = vadd.f32 0.0, %v2500
    %v2502 = vpop.f32.mrf.mxu0
    %v2503 = vadd.f32 0.0, %v2502
    %2504 = vdwg.mxu0
    %2505 = vmatpush.bf16.msra.mxu0 %v2393
    %2506 = vmatpush.bf16.msra.mxu0 %v2391
    %2507 = vmatpush.bf16.msra.mxu0 %v2389
    %2508 = vmatpush.bf16.msra.mxu0 %v2387
    %2509 = vmatpush.bf16.msra.mxu0 %v2385
    %2510 = vmatpush.bf16.msra.mxu0 %v2383
    %2511 = vmatpush.bf16.msra.mxu0 %v2381
    %2512 = vmatpush.bf16.msra.mxu0 %v2379
    %2513 = vmatmul.bf16.gmra.mxu0 %v2168
    %v2514 = vpop.f32.mrf.mxu0
    %v2515 = vadd.f32 %v2501, %v2514
    %v2516 = vpop.f32.mrf.mxu0
    %v2517 = vadd.f32 %v2503, %v2516
    %2518 = vdwg.mxu0
    %2519 = vmatpush.bf16.msra.mxu0 %v2409
    %2520 = vmatpush.bf16.msra.mxu0 %v2407
    %2521 = vmatpush.bf16.msra.mxu0 %v2405
    %2522 = vmatpush.bf16.msra.mxu0 %v2403
    %2523 = vmatpush.bf16.msra.mxu0 %v2401
    %2524 = vmatpush.bf16.msra.mxu0 %v2399
    %2525 = vmatpush.bf16.msra.mxu0 %v2397
    %2526 = vmatpush.bf16.msra.mxu0 %v2395
    %2527 = vmatmul.bf16.gmra.mxu0 %v2169
    %v2528 = vpop.f32.mrf.mxu0
    %v2529 = vadd.f32 %v2515, %v2528
    %v2530 = vpop.f32.mrf.mxu0
    %v2531 = vadd.f32 %v2517, %v2530
    %2532 = vdwg.mxu0
    %2533 = vmatpush.bf16.msra.mxu0 %v2425
    %2534 = vmatpush.bf16.msra.mxu0 %v2423
    %2535 = vmatpush.bf16.msra.mxu0 %v2421
    %2536 = vmatpush.bf16.msra.mxu0 %v2419
    %2537 = vmatpush.bf16.msra.mxu0 %v2417
    %2538 = vmatpush.bf16.msra.mxu0 %v2415
    %2539 = vmatpush.bf16.msra.mxu0 %v2413
    %2540 = vmatpush.bf16.msra.mxu0 %v2411
    %2541 = vmatmul.bf16.gmra.mxu0 %v2170
    %v2542 = vpop.f32.mrf.mxu0
    %v2543 = vadd.f32 %v2529, %v2542
    %v2544 = vpop.f32.mrf.mxu0
    %v2545 = vadd.f32 %v2531, %v2544
    %2546 = vdwg.mxu0
    %2547 = vmatpush.bf16.msra.mxu0 %v2378
    %2548 = vmatpush.bf16.msra.mxu0 %v2376
    %2549 = vmatpush.bf16.msra.mxu0 %v2374
    %2550 = vmatpush.bf16.msra.mxu0 %v2372
    %2551 = vmatpush.bf16.msra.mxu0 %v2370
    %2552 = vmatpush.bf16.msra.mxu0 %v2368
    %2553 = vmatpush.bf16.msra.mxu0 %v2366
    %2554 = vmatpush.bf16.msra.mxu0 %v2364
    %2555 = vmatmul.bf16.gmra.mxu0 %v2167
    %v2556 = vpop.f32.mrf.mxu0
    %v2557 = vadd.f32 0.0, %v2556
    %v2558 = vpop.f32.mrf.mxu0
    %v2559 = vadd.f32 0.0, %v2558
    %2560 = vdwg.mxu0
    %2561 = vmatpush.bf16.msra.mxu0 %v2394
    %2562 = vmatpush.bf16.msra.mxu0 %v2392
    %2563 = vmatpush.bf16.msra.mxu0 %v2390
    %2564 = vmatpush.bf16.msra.mxu0 %v2388
    %2565 = vmatpush.bf16.msra.mxu0 %v2386
    %2566 = vmatpush.bf16.msra.mxu0 %v2384
    %2567 = vmatpush.bf16.msra.mxu0 %v2382
    %2568 = vmatpush.bf16.msra.mxu0 %v2380
    %2569 = vmatmul.bf16.gmra.mxu0 %v2168
    %v2570 = vpop.f32.mrf.mxu0
    %v2571 = vadd.f32 %v2557, %v2570
    %v2572 = vpop.f32.mrf.mxu0
    %v2573 = vadd.f32 %v2559, %v2572
    %2574 = vdwg.mxu0
    %2575 = vmatpush.bf16.msra.mxu0 %v2410
    %2576 = vmatpush.bf16.msra.mxu0 %v2408
    %2577 = vmatpush.bf16.msra.mxu0 %v2406
    %2578 = vmatpush.bf16.msra.mxu0 %v2404
    %2579 = vmatpush.bf16.msra.mxu0 %v2402
    %2580 = vmatpush.bf16.msra.mxu0 %v2400
    %2581 = vmatpush.bf16.msra.mxu0 %v2398
    %2582 = vmatpush.bf16.msra.mxu0 %v2396
    %2583 = vmatmul.bf16.gmra.mxu0 %v2169
    %v2584 = vpop.f32.mrf.mxu0
    %v2585 = vadd.f32 %v2571, %v2584
    %v2586 = vpop.f32.mrf.mxu0
    %v2587 = vadd.f32 %v2573, %v2586
    %2588 = vdwg.mxu0
    %2589 = vmatpush.bf16.msra.mxu0 %v2426
    %2590 = vmatpush.bf16.msra.mxu0 %v2424
    %2591 = vmatpush.bf16.msra.mxu0 %v2422
    %2592 = vmatpush.bf16.msra.mxu0 %v2420
    %2593 = vmatpush.bf16.msra.mxu0 %v2418
    %2594 = vmatpush.bf16.msra.mxu0 %v2416
    %2595 = vmatpush.bf16.msra.mxu0 %v2414
    %2596 = vmatpush.bf16.msra.mxu0 %v2412
    %2597 = vmatmul.bf16.gmra.mxu0 %v2170
    %v2598 = vpop.f32.mrf.mxu0
    %v2599 = vadd.f32 %v2585, %v2598
    %v2600 = vpop.f32.mrf.mxu0
    %v2601 = vadd.f32 %v2587, %v2600
    %2602 = vdwg.mxu0
    %v2603 = vadd.f32 %v1648, %v2543
    %v2604 = vadd.f32 %v1649, %v2599
    %v2605 = vadd.f32 %v1650, %v2545
    %v2606 = vadd.f32 %v1651, %v2601
    %v2608 = vperm.slane %v485, 0
    %v2609 = vperm.slane %v485, 1
    %v2612 = vadd.f32 %v2603, %v2608
    %v2613 = vadd.f32 %v2604, %v2609
    %v2614 = vadd.f32 %v2605, %v2608
    %v2615 = vadd.f32 %v2606, %v2609
    %v2616 = vadd.f32 %v2612, %v2613
    %2617 = vadd.xlane.f32.xlu0 %v2616
    %v2618 = vpop.xlane.xlu0 %2617
    %v2619 = vadd.f32 %v2614, %v2615
    %2620 = vadd.xlane.f32.xlu0 %v2619
    %v2621 = vpop.xlane.xlu0 %2620
    %v2622 = vmul.f32 %v2618, %v157
    %v2623 = vmul.f32 %v2621, %v157
    %v2624 = vsub.f32 %v2612, %v2622
    %v2625 = vsub.f32 %v2613, %v2622
    %v2626 = vsub.f32 %v2614, %v2623
    %v2627 = vsub.f32 %v2615, %v2623
    %v2628 = vmul.f32 %v2624, %v2624
    %v2629 = vmul.f32 %v2625, %v2625
    %v2630 = vmul.f32 %v2626, %v2626
    %v2631 = vmul.f32 %v2627, %v2627
    %v2632 = vadd.f32 %v2628, %v2629
    %2633 = vadd.xlane.f32.xlu0 %v2632
    %v2634 = vpop.xlane.xlu0 %2633
    %v2635 = vadd.f32 %v2630, %v2631
    %2636 = vadd.xlane.f32.xlu0 %v2635
    %v2637 = vpop.xlane.xlu0 %2636
    %v2638 = vmul.f32 %v2634, %v157
    %v2639 = vmul.f32 %v2637, %v157
    %v2640 = vadd.f32 %v2638, 1e-05
    %v2641 = vadd.f32 %v2639, 1e-05
    %v2642 = vrsqrt.pop %v2640
    %v2643 = vmul.f32 %v2642, %v2640
    %v2644 = vmul.f32 %v2643, %v2642
    %v2645 = vmul.f32 0.5, %v2644
    %v2646 = vsub.f32 1.5, %v2645
    %v2647 = vmul.f32 %v2642, %v2646
    %vm2648 = vweird.f32 %v2640
    %vm2649 = vweird.f32 %v2642
    %vm2650 = vmor %vm2648, %vm2649
    %v2651 = vsel %vm2650, %v2642, %v2647
    %v2652 = vrsqrt.pop %v2641
    %v2653 = vmul.f32 %v2652, %v2641
    %v2654 = vmul.f32 %v2653, %v2652
    %v2655 = vmul.f32 0.5, %v2654
    %v2656 = vsub.f32 1.5, %v2655
    %v2657 = vmul.f32 %v2652, %v2656
    %vm2658 = vweird.f32 %v2641
    %vm2659 = vweird.f32 %v2652
    %vm2660 = vmor %vm2658, %vm2659
    %v2661 = vsel %vm2660, %v2652, %v2657
    %v2662 = vmul.f32 %v2624, %v2651
    %v2663 = vmul.f32 %v2625, %v2651
    %v2664 = vmul.f32 %v2626, %v2661
    %v2665 = vmul.f32 %v2627, %v2661
    %v2667 = vperm.slane %v486, 0
    %v2668 = vperm.slane %v486, 1
    %v2671 = vmul.f32 %v2662, %v2667
    %v2672 = vmul.f32 %v2663, %v2668
    %v2673 = vmul.f32 %v2664, %v2667
    %v2674 = vmul.f32 %v2665, %v2668
    %v2676 = vperm.slane %v487, 0
    %v2677 = vperm.slane %v487, 1
    %v2680 = vadd.f32 %v2671, %v2676
    %v2681 = vadd.f32 %v2672, %v2677
    %v2682 = vadd.f32 %v2673, %v2676
    %v2683 = vadd.f32 %v2674, %v2677
    %s2684 = scalar_lea.vmem [#allocation2], 768
    %v2685 = vld [vmem:[%s2684] sm:$0xff]
    %v2686 = vld [vmem:[%s2684 + $0x8] sm:$0xff]
    %v2687 = vld [vmem:[%s2684 + $0x10] sm:$0xff]
    %v2688 = vld [vmem:[%s2684 + $0x18] sm:$0xff]
    %v2689 = vld [vmem:[%s2684 + $0x20] sm:$0xff]
    %v2690 = vld [vmem:[%s2684 + $0x28] sm:$0xff]
    %v2691 = vld [vmem:[%s2684 + $0x30] sm:$0xff]
    %v2692 = vld [vmem:[%s2684 + $0x38] sm:$0xff]
    %v2693 = vld [vmem:[%s2684 + $0x40] sm:$0xff]
    %v2694 = vld [vmem:[%s2684 + $0x48] sm:$0xff]
    %v2695 = vld [vmem:[%s2684 + $0x50] sm:$0xff]
    %v2696 = vld [vmem:[%s2684 + $0x58] sm:$0xff]
    %v2697 = vld [vmem:[%s2684 + $0x60] sm:$0xff]
    %v2698 = vld [vmem:[%s2684 + $0x68] sm:$0xff]
    %v2699 = vld [vmem:[%s2684 + $0x70] sm:$0xff]
    %v2700 = vld [vmem:[%s2684 + $0x78] sm:$0xff]
    %v2701 = vld [vmem:[%s2684 + $0x80] sm:$0xff]
    %v2702 = vld [vmem:[%s2684 + $0x88] sm:$0xff]
    %v2703 = vld [vmem:[%s2684 + $0x90] sm:$0xff]
    %v2704 = vld [vmem:[%s2684 + $0x98] sm:$0xff]
    %v2705 = vld [vmem:[%s2684 + $0xa0] sm:$0xff]
    %v2706 = vld [vmem:[%s2684 + $0xa8] sm:$0xff]
    %v2707 = vld [vmem:[%s2684 + $0xb0] sm:$0xff]
    %v2708 = vld [vmem:[%s2684 + $0xb8] sm:$0xff]
    %v2709 = vld [vmem:[%s2684 + $0xc0] sm:$0xff]
    %v2710 = vld [vmem:[%s2684 + $0xc8] sm:$0xff]
    %v2711 = vld [vmem:[%s2684 + $0xd0] sm:$0xff]
    %v2712 = vld [vmem:[%s2684 + $0xd8] sm:$0xff]
    %v2713 = vld [vmem:[%s2684 + $0xe0] sm:$0xff]
    %v2714 = vld [vmem:[%s2684 + $0xe8] sm:$0xff]
    %v2715 = vld [vmem:[%s2684 + $0xf0] sm:$0xff]
    %v2716 = vld [vmem:[%s2684 + $0xf8] sm:$0xff]
    %v2717 = vld [vmem:[%s2684 + $0x100] sm:$0xff]
    %v2718 = vld [vmem:[%s2684 + $0x108] sm:$0xff]
    %v2719 = vld [vmem:[%s2684 + $0x110] sm:$0xff]
    %v2720 = vld [vmem:[%s2684 + $0x118] sm:$0xff]
    %v2721 = vld [vmem:[%s2684 + $0x120] sm:$0xff]
    %v2722 = vld [vmem:[%s2684 + $0x128] sm:$0xff]
    %v2723 = vld [vmem:[%s2684 + $0x130] sm:$0xff]
    %v2724 = vld [vmem:[%s2684 + $0x138] sm:$0xff]
    %v2725 = vld [vmem:[%s2684 + $0x140] sm:$0xff]
    %v2726 = vld [vmem:[%s2684 + $0x148] sm:$0xff]
    %v2727 = vld [vmem:[%s2684 + $0x150] sm:$0xff]
    %v2728 = vld [vmem:[%s2684 + $0x158] sm:$0xff]
    %v2729 = vld [vmem:[%s2684 + $0x160] sm:$0xff]
    %v2730 = vld [vmem:[%s2684 + $0x168] sm:$0xff]
    %v2731 = vld [vmem:[%s2684 + $0x170] sm:$0xff]
    %v2732 = vld [vmem:[%s2684 + $0x178] sm:$0xff]
    %v2733 = vld [vmem:[%s2684 + $0x180] sm:$0xff]
    %v2734 = vld [vmem:[%s2684 + $0x188] sm:$0xff]
    %v2735 = vld [vmem:[%s2684 + $0x190] sm:$0xff]
    %v2736 = vld [vmem:[%s2684 + $0x198] sm:$0xff]
    %v2737 = vld [vmem:[%s2684 + $0x1a0] sm:$0xff]
    %v2738 = vld [vmem:[%s2684 + $0x1a8] sm:$0xff]
    %v2739 = vld [vmem:[%s2684 + $0x1b0] sm:$0xff]
    %v2740 = vld [vmem:[%s2684 + $0x1b8] sm:$0xff]
    %v2741 = vld [vmem:[%s2684 + $0x1c0] sm:$0xff]
    %v2742 = vld [vmem:[%s2684 + $0x1c8] sm:$0xff]
    %v2743 = vld [vmem:[%s2684 + $0x1d0] sm:$0xff]
    %v2744 = vld [vmem:[%s2684 + $0x1d8] sm:$0xff]
    %v2745 = vld [vmem:[%s2684 + $0x1e0] sm:$0xff]
    %v2746 = vld [vmem:[%s2684 + $0x1e8] sm:$0xff]
    %v2747 = vld [vmem:[%s2684 + $0x1f0] sm:$0xff]
    %v2748 = vld [vmem:[%s2684 + $0x1f8] sm:$0xff]
    %v2749 = vld [vmem:[%s2684 + $0x200] sm:$0xff]
    %v2750 = vld [vmem:[%s2684 + $0x208] sm:$0xff]
    %v2751 = vld [vmem:[%s2684 + $0x210] sm:$0xff]
    %v2752 = vld [vmem:[%s2684 + $0x218] sm:$0xff]
    %v2753 = vld [vmem:[%s2684 + $0x220] sm:$0xff]
    %v2754 = vld [vmem:[%s2684 + $0x228] sm:$0xff]
    %v2755 = vld [vmem:[%s2684 + $0x230] sm:$0xff]
    %v2756 = vld [vmem:[%s2684 + $0x238] sm:$0xff]
    %v2757 = vld [vmem:[%s2684 + $0x240] sm:$0xff]
    %v2758 = vld [vmem:[%s2684 + $0x248] sm:$0xff]
    %v2759 = vld [vmem:[%s2684 + $0x250] sm:$0xff]
    %v2760 = vld [vmem:[%s2684 + $0x258] sm:$0xff]
    %v2761 = vld [vmem:[%s2684 + $0x260] sm:$0xff]
    %v2762 = vld [vmem:[%s2684 + $0x268] sm:$0xff]
    %v2763 = vld [vmem:[%s2684 + $0x270] sm:$0xff]
    %v2764 = vld [vmem:[%s2684 + $0x278] sm:$0xff]
    %v2765 = vld [vmem:[%s2684 + $0x280] sm:$0xff]
    %v2766 = vld [vmem:[%s2684 + $0x288] sm:$0xff]
    %v2767 = vld [vmem:[%s2684 + $0x290] sm:$0xff]
    %v2768 = vld [vmem:[%s2684 + $0x298] sm:$0xff]
    %v2769 = vld [vmem:[%s2684 + $0x2a0] sm:$0xff]
    %v2770 = vld [vmem:[%s2684 + $0x2a8] sm:$0xff]
    %v2771 = vld [vmem:[%s2684 + $0x2b0] sm:$0xff]
    %v2772 = vld [vmem:[%s2684 + $0x2b8] sm:$0xff]
    %v2773 = vld [vmem:[%s2684 + $0x2c0] sm:$0xff]
    %v2774 = vld [vmem:[%s2684 + $0x2c8] sm:$0xff]
    %v2775 = vld [vmem:[%s2684 + $0x2d0] sm:$0xff]
    %v2776 = vld [vmem:[%s2684 + $0x2d8] sm:$0xff]
    %v2777 = vld [vmem:[%s2684 + $0x2e0] sm:$0xff]
    %v2778 = vld [vmem:[%s2684 + $0x2e8] sm:$0xff]
    %v2779 = vld [vmem:[%s2684 + $0x2f0] sm:$0xff]
    %v2780 = vld [vmem:[%s2684 + $0x2f8] sm:$0xff]
    %s2781 = scalar_lea.vmem %s6, 6
    %v2782 = vld [vmem:[%s2781] sm:$0x3f]
    %s2783 = scalar_lea.vmem [#allocation5], 256
    %v2784 = vld [vmem:[%s2783] sm:$0xff]
    %v2785 = vld [vmem:[%s2783 + $0x8] sm:$0xff]
    %v2786 = vld [vmem:[%s2783 + $0x10] sm:$0xff]
    %v2787 = vld [vmem:[%s2783 + $0x18] sm:$0xff]
    %v2788 = vld [vmem:[%s2783 + $0x20] sm:$0xff]
    %v2789 = vld [vmem:[%s2783 + $0x28] sm:$0xff]
    %v2790 = vld [vmem:[%s2783 + $0x30] sm:$0xff]
    %v2791 = vld [vmem:[%s2783 + $0x38] sm:$0xff]
    %v2792 = vld [vmem:[%s2783 + $0x40] sm:$0xff]
    %v2793 = vld [vmem:[%s2783 + $0x48] sm:$0xff]
    %v2794 = vld [vmem:[%s2783 + $0x50] sm:$0xff]
    %v2795 = vld [vmem:[%s2783 + $0x58] sm:$0xff]
    %v2796 = vld [vmem:[%s2783 + $0x60] sm:$0xff]
    %v2797 = vld [vmem:[%s2783 + $0x68] sm:$0xff]
    %v2798 = vld [vmem:[%s2783 + $0x70] sm:$0xff]
    %v2799 = vld [vmem:[%s2783 + $0x78] sm:$0xff]
    %v2800 = vld [vmem:[%s2783 + $0x80] sm:$0xff]
    %v2801 = vld [vmem:[%s2783 + $0x88] sm:$0xff]
    %v2802 = vld [vmem:[%s2783 + $0x90] sm:$0xff]
    %v2803 = vld [vmem:[%s2783 + $0x98] sm:$0xff]
    %v2804 = vld [vmem:[%s2783 + $0xa0] sm:$0xff]
    %v2805 = vld [vmem:[%s2783 + $0xa8] sm:$0xff]
    %v2806 = vld [vmem:[%s2783 + $0xb0] sm:$0xff]
    %v2807 = vld [vmem:[%s2783 + $0xb8] sm:$0xff]
    %v2808 = vld [vmem:[%s2783 + $0xc0] sm:$0xff]
    %v2809 = vld [vmem:[%s2783 + $0xc8] sm:$0xff]
    %v2810 = vld [vmem:[%s2783 + $0xd0] sm:$0xff]
    %v2811 = vld [vmem:[%s2783 + $0xd8] sm:$0xff]
    %v2812 = vld [vmem:[%s2783 + $0xe0] sm:$0xff]
    %v2813 = vld [vmem:[%s2783 + $0xe8] sm:$0xff]
    %v2814 = vld [vmem:[%s2783 + $0xf0] sm:$0xff]
    %v2815 = vld [vmem:[%s2783 + $0xf8] sm:$0xff]
    %s2816 = scalar_lea.vmem %s8, 2
    %v2817 = vld [vmem:[%s2816] sm:$0x3]
    %s2818 = scalar_lea.vmem %s9, 2
    %v2819 = vld [vmem:[%s2818] sm:$0x3]
    %s2820 = scalar_lea.vmem %s10, 2
    %v2821 = vld [vmem:[%s2820] sm:$0x3]
    %s2822 = scalar_lea.vmem [#allocation7], 512
    %v2823 = vld [vmem:[%s2822] sm:$0xff]
    %v2824 = vld [vmem:[%s2822 + $0x8] sm:$0xff]
    %v2825 = vld [vmem:[%s2822 + $0x10] sm:$0xff]
    %v2826 = vld [vmem:[%s2822 + $0x18] sm:$0xff]
    %v2827 = vld [vmem:[%s2822 + $0x20] sm:$0xff]
    %v2828 = vld [vmem:[%s2822 + $0x28] sm:$0xff]
    %v2829 = vld [vmem:[%s2822 + $0x30] sm:$0xff]
    %v2830 = vld [vmem:[%s2822 + $0x38] sm:$0xff]
    %v2831 = vld [vmem:[%s2822 + $0x40] sm:$0xff]
    %v2832 = vld [vmem:[%s2822 + $0x48] sm:$0xff]
    %v2833 = vld [vmem:[%s2822 + $0x50] sm:$0xff]
    %v2834 = vld [vmem:[%s2822 + $0x58] sm:$0xff]
    %v2835 = vld [vmem:[%s2822 + $0x60] sm:$0xff]
    %v2836 = vld [vmem:[%s2822 + $0x68] sm:$0xff]
    %v2837 = vld [vmem:[%s2822 + $0x70] sm:$0xff]
    %v2838 = vld [vmem:[%s2822 + $0x78] sm:$0xff]
    %v2839 = vld [vmem:[%s2822 + $0x80] sm:$0xff]
    %v2840 = vld [vmem:[%s2822 + $0x88] sm:$0xff]
    %v2841 = vld [vmem:[%s2822 + $0x90] sm:$0xff]
    %v2842 = vld [vmem:[%s2822 + $0x98] sm:$0xff]
    %v2843 = vld [vmem:[%s2822 + $0xa0] sm:$0xff]
    %v2844 = vld [vmem:[%s2822 + $0xa8] sm:$0xff]
    %v2845 = vld [vmem:[%s2822 + $0xb0] sm:$0xff]
    %v2846 = vld [vmem:[%s2822 + $0xb8] sm:$0xff]
    %v2847 = vld [vmem:[%s2822 + $0xc0] sm:$0xff]
    %v2848 = vld [vmem:[%s2822 + $0xc8] sm:$0xff]
    %v2849 = vld [vmem:[%s2822 + $0xd0] sm:$0xff]
    %v2850 = vld [vmem:[%s2822 + $0xd8] sm:$0xff]
    %v2851 = vld [vmem:[%s2822 + $0xe0] sm:$0xff]
    %v2852 = vld [vmem:[%s2822 + $0xe8] sm:$0xff]
    %v2853 = vld [vmem:[%s2822 + $0xf0] sm:$0xff]
    %v2854 = vld [vmem:[%s2822 + $0xf8] sm:$0xff]
    %v2855 = vld [vmem:[%s2822 + $0x100] sm:$0xff]
    %v2856 = vld [vmem:[%s2822 + $0x108] sm:$0xff]
    %v2857 = vld [vmem:[%s2822 + $0x110] sm:$0xff]
    %v2858 = vld [vmem:[%s2822 + $0x118] sm:$0xff]
    %v2859 = vld [vmem:[%s2822 + $0x120] sm:$0xff]
    %v2860 = vld [vmem:[%s2822 + $0x128] sm:$0xff]
    %v2861 = vld [vmem:[%s2822 + $0x130] sm:$0xff]
    %v2862 = vld [vmem:[%s2822 + $0x138] sm:$0xff]
    %v2863 = vld [vmem:[%s2822 + $0x140] sm:$0xff]
    %v2864 = vld [vmem:[%s2822 + $0x148] sm:$0xff]
    %v2865 = vld [vmem:[%s2822 + $0x150] sm:$0xff]
    %v2866 = vld [vmem:[%s2822 + $0x158] sm:$0xff]
    %v2867 = vld [vmem:[%s2822 + $0x160] sm:$0xff]
    %v2868 = vld [vmem:[%s2822 + $0x168] sm:$0xff]
    %v2869 = vld [vmem:[%s2822 + $0x170] sm:$0xff]
    %v2870 = vld [vmem:[%s2822 + $0x178] sm:$0xff]
    %v2871 = vld [vmem:[%s2822 + $0x180] sm:$0xff]
    %v2872 = vld [vmem:[%s2822 + $0x188] sm:$0xff]
    %v2873 = vld [vmem:[%s2822 + $0x190] sm:$0xff]
    %v2874 = vld [vmem:[%s2822 + $0x198] sm:$0xff]
    %v2875 = vld [vmem:[%s2822 + $0x1a0] sm:$0xff]
    %v2876 = vld [vmem:[%s2822 + $0x1a8] sm:$0xff]
    %v2877 = vld [vmem:[%s2822 + $0x1b0] sm:$0xff]
    %v2878 = vld [vmem:[%s2822 + $0x1b8] sm:$0xff]
    %v2879 = vld [vmem:[%s2822 + $0x1c0] sm:$0xff]
    %v2880 = vld [vmem:[%s2822 + $0x1c8] sm:$0xff]
    %v2881 = vld [vmem:[%s2822 + $0x1d0] sm:$0xff]
    %v2882 = vld [vmem:[%s2822 + $0x1d8] sm:$0xff]
    %v2883 = vld [vmem:[%s2822 + $0x1e0] sm:$0xff]
    %v2884 = vld [vmem:[%s2822 + $0x1e8] sm:$0xff]
    %v2885 = vld [vmem:[%s2822 + $0x1f0] sm:$0xff]
    %v2886 = vld [vmem:[%s2822 + $0x1f8] sm:$0xff]
    %s2887 = scalar_lea.vmem %s12, 4
    %v2888 = vld [vmem:[%s2887] sm:$0xf]
    %s2889 = scalar_lea.vmem [#allocation8], 512
    %v2890 = vld [vmem:[%s2889] sm:$0xff]
    %v2891 = vld [vmem:[%s2889 + $0x8] sm:$0xff]
    %v2892 = vld [vmem:[%s2889 + $0x10] sm:$0xff]
    %v2893 = vld [vmem:[%s2889 + $0x18] sm:$0xff]
    %v2894 = vld [vmem:[%s2889 + $0x20] sm:$0xff]
    %v2895 = vld [vmem:[%s2889 + $0x28] sm:$0xff]
    %v2896 = vld [vmem:[%s2889 + $0x30] sm:$0xff]
    %v2897 = vld [vmem:[%s2889 + $0x38] sm:$0xff]
    %v2898 = vld [vmem:[%s2889 + $0x40] sm:$0xff]
    %v2899 = vld [vmem:[%s2889 + $0x48] sm:$0xff]
    %v2900 = vld [vmem:[%s2889 + $0x50] sm:$0xff]
    %v2901 = vld [vmem:[%s2889 + $0x58] sm:$0xff]
    %v2902 = vld [vmem:[%s2889 + $0x60] sm:$0xff]
    %v2903 = vld [vmem:[%s2889 + $0x68] sm:$0xff]
    %v2904 = vld [vmem:[%s2889 + $0x70] sm:$0xff]
    %v2905 = vld [vmem:[%s2889 + $0x78] sm:$0xff]
    %v2906 = vld [vmem:[%s2889 + $0x80] sm:$0xff]
    %v2907 = vld [vmem:[%s2889 + $0x88] sm:$0xff]
    %v2908 = vld [vmem:[%s2889 + $0x90] sm:$0xff]
    %v2909 = vld [vmem:[%s2889 + $0x98] sm:$0xff]
    %v2910 = vld [vmem:[%s2889 + $0xa0] sm:$0xff]
    %v2911 = vld [vmem:[%s2889 + $0xa8] sm:$0xff]
    %v2912 = vld [vmem:[%s2889 + $0xb0] sm:$0xff]
    %v2913 = vld [vmem:[%s2889 + $0xb8] sm:$0xff]
    %v2914 = vld [vmem:[%s2889 + $0xc0] sm:$0xff]
    %v2915 = vld [vmem:[%s2889 + $0xc8] sm:$0xff]
    %v2916 = vld [vmem:[%s2889 + $0xd0] sm:$0xff]
    %v2917 = vld [vmem:[%s2889 + $0xd8] sm:$0xff]
    %v2918 = vld [vmem:[%s2889 + $0xe0] sm:$0xff]
    %v2919 = vld [vmem:[%s2889 + $0xe8] sm:$0xff]
    %v2920 = vld [vmem:[%s2889 + $0xf0] sm:$0xff]
    %v2921 = vld [vmem:[%s2889 + $0xf8] sm:$0xff]
    %v2922 = vld [vmem:[%s2889 + $0x100] sm:$0xff]
    %v2923 = vld [vmem:[%s2889 + $0x108] sm:$0xff]
    %v2924 = vld [vmem:[%s2889 + $0x110] sm:$0xff]
    %v2925 = vld [vmem:[%s2889 + $0x118] sm:$0xff]
    %v2926 = vld [vmem:[%s2889 + $0x120] sm:$0xff]
    %v2927 = vld [vmem:[%s2889 + $0x128] sm:$0xff]
    %v2928 = vld [vmem:[%s2889 + $0x130] sm:$0xff]
    %v2929 = vld [vmem:[%s2889 + $0x138] sm:$0xff]
    %v2930 = vld [vmem:[%s2889 + $0x140] sm:$0xff]
    %v2931 = vld [vmem:[%s2889 + $0x148] sm:$0xff]
    %v2932 = vld [vmem:[%s2889 + $0x150] sm:$0xff]
    %v2933 = vld [vmem:[%s2889 + $0x158] sm:$0xff]
    %v2934 = vld [vmem:[%s2889 + $0x160] sm:$0xff]
    %v2935 = vld [vmem:[%s2889 + $0x168] sm:$0xff]
    %v2936 = vld [vmem:[%s2889 + $0x170] sm:$0xff]
    %v2937 = vld [vmem:[%s2889 + $0x178] sm:$0xff]
    %v2938 = vld [vmem:[%s2889 + $0x180] sm:$0xff]
    %v2939 = vld [vmem:[%s2889 + $0x188] sm:$0xff]
    %v2940 = vld [vmem:[%s2889 + $0x190] sm:$0xff]
    %v2941 = vld [vmem:[%s2889 + $0x198] sm:$0xff]
    %v2942 = vld [vmem:[%s2889 + $0x1a0] sm:$0xff]
    %v2943 = vld [vmem:[%s2889 + $0x1a8] sm:$0xff]
    %v2944 = vld [vmem:[%s2889 + $0x1b0] sm:$0xff]
    %v2945 = vld [vmem:[%s2889 + $0x1b8] sm:$0xff]
    %v2946 = vld [vmem:[%s2889 + $0x1c0] sm:$0xff]
    %v2947 = vld [vmem:[%s2889 + $0x1c8] sm:$0xff]
    %v2948 = vld [vmem:[%s2889 + $0x1d0] sm:$0xff]
    %v2949 = vld [vmem:[%s2889 + $0x1d8] sm:$0xff]
    %v2950 = vld [vmem:[%s2889 + $0x1e0] sm:$0xff]
    %v2951 = vld [vmem:[%s2889 + $0x1e8] sm:$0xff]
    %v2952 = vld [vmem:[%s2889 + $0x1f0] sm:$0xff]
    %v2953 = vld [vmem:[%s2889 + $0x1f8] sm:$0xff]
    %s2954 = scalar_lea.vmem %s14, 2
    %v2955 = vld [vmem:[%s2954] sm:$0x3]
    %s2956 = scalar_lea.vmem %s15, 2
    %v2957 = vld [vmem:[%s2956] sm:$0x3]
    %s2958 = scalar_lea.vmem %s16, 2
    %v2959 = vld [vmem:[%s2958] sm:$0x3]
    %v2960 = vpack.c.bf16 %v2682, %v2680
    %v2961 = vpack.c.bf16 %v2683, %v2681
    %v2963 = vperm.slane %v2782, 0
    %v2964 = vperm.slane %v2782, 1
    %v2965 = vperm.slane %v2782, 2
    %v2966 = vperm.slane %v2782, 3
    %v2967 = vperm.slane %v2782, 4
    %v2968 = vperm.slane %v2782, 5
    %v3071 = vunpack.c.l.b16 %v2685
    %v3072 = vunpack.c.h.b16 %v2685
    %v3073 = vunpack.c.l.b16 %v2686
    %v3074 = vunpack.c.h.b16 %v2686
    %v3075 = vunpack.c.l.b16 %v2687
    %v3076 = vunpack.c.h.b16 %v2687
    %v3077 = vunpack.c.l.b16 %v2688
    %v3078 = vunpack.c.h.b16 %v2688
    %v3079 = vunpack.c.l.b16 %v2689
    %v3080 = vunpack.c.h.b16 %v2689
    %v3081 = vunpack.c.l.b16 %v2690
    %v3082 = vunpack.c.h.b16 %v2690
    %v3083 = vunpack.c.l.b16 %v2691
    %v3084 = vunpack.c.h.b16 %v2691
    %v3085 = vunpack.c.l.b16 %v2692
    %v3086 = vunpack.c.h.b16 %v2692
    %v3087 = vunpack.c.l.b16 %v2693
    %v3088 = vunpack.c.h.b16 %v2693
    %v3089 = vunpack.c.l.b16 %v2694
    %v3090 = vunpack.c.h.b16 %v2694
    %v3091 = vunpack.c.l.b16 %v2695
    %v3092 = vunpack.c.h.b16 %v2695
    %v3093 = vunpack.c.l.b16 %v2696
    %v3094 = vunpack.c.h.b16 %v2696
    %v3095 = vunpack.c.l.b16 %v2697
    %v3096 = vunpack.c.h.b16 %v2697
    %v3097 = vunpack.c.l.b16 %v2698
    %v3098 = vunpack.c.h.b16 %v2698
    %v3099 = vunpack.c.l.b16 %v2699
    %v3100 = vunpack.c.h.b16 %v2699
    %v3101 = vunpack.c.l.b16 %v2700
    %v3102 = vunpack.c.h.b16 %v2700
    %v3103 = vunpack.c.l.b16 %v2701
    %v3104 = vunpack.c.h.b16 %v2701
    %v3105 = vunpack.c.l.b16 %v2702
    %v3106 = vunpack.c.h.b16 %v2702
    %v3107 = vunpack.c.l.b16 %v2703
    %v3108 = vunpack.c.h.b16 %v2703
    %v3109 = vunpack.c.l.b16 %v2704
    %v3110 = vunpack.c.h.b16 %v2704
    %v3111 = vunpack.c.l.b16 %v2705
    %v3112 = vunpack.c.h.b16 %v2705
    %v3113 = vunpack.c.l.b16 %v2706
    %v3114 = vunpack.c.h.b16 %v2706
    %v3115 = vunpack.c.l.b16 %v2707
    %v3116 = vunpack.c.h.b16 %v2707
    %v3117 = vunpack.c.l.b16 %v2708
    %v3118 = vunpack.c.h.b16 %v2708
    %v3119 = vunpack.c.l.b16 %v2709
    %v3120 = vunpack.c.h.b16 %v2709
    %v3121 = vunpack.c.l.b16 %v2710
    %v3122 = vunpack.c.h.b16 %v2710
    %v3123 = vunpack.c.l.b16 %v2711
    %v3124 = vunpack.c.h.b16 %v2711
    %v3125 = vunpack.c.l.b16 %v2712
    %v3126 = vunpack.c.h.b16 %v2712
    %v3127 = vunpack.c.l.b16 %v2713
    %v3128 = vunpack.c.h.b16 %v2713
    %v3129 = vunpack.c.l.b16 %v2714
    %v3130 = vunpack.c.h.b16 %v2714
    %v3131 = vunpack.c.l.b16 %v2715
    %v3132 = vunpack.c.h.b16 %v2715
    %v3133 = vunpack.c.l.b16 %v2716
    %v3134 = vunpack.c.h.b16 %v2716
    %v3135 = vunpack.c.l.b16 %v2717
    %v3136 = vunpack.c.h.b16 %v2717
    %v3137 = vunpack.c.l.b16 %v2718
    %v3138 = vunpack.c.h.b16 %v2718
    %v3139 = vunpack.c.l.b16 %v2719
    %v3140 = vunpack.c.h.b16 %v2719
    %v3141 = vunpack.c.l.b16 %v2720
    %v3142 = vunpack.c.h.b16 %v2720
    %v3143 = vunpack.c.l.b16 %v2721
    %v3144 = vunpack.c.h.b16 %v2721
    %v3145 = vunpack.c.l.b16 %v2722
    %v3146 = vunpack.c.h.b16 %v2722
    %v3147 = vunpack.c.l.b16 %v2723
    %v3148 = vunpack.c.h.b16 %v2723
    %v3149 = vunpack.c.l.b16 %v2724
    %v3150 = vunpack.c.h.b16 %v2724
    %v3151 = vunpack.c.l.b16 %v2725
    %v3152 = vunpack.c.h.b16 %v2725
    %v3153 = vunpack.c.l.b16 %v2726
    %v3154 = vunpack.c.h.b16 %v2726
    %v3155 = vunpack.c.l.b16 %v2727
    %v3156 = vunpack.c.h.b16 %v2727
    %v3157 = vunpack.c.l.b16 %v2728
    %v3158 = vunpack.c.h.b16 %v2728
    %v3159 = vunpack.c.l.b16 %v2729
    %v3160 = vunpack.c.h.b16 %v2729
    %v3161 = vunpack.c.l.b16 %v2730
    %v3162 = vunpack.c.h.b16 %v2730
    %v3163 = vunpack.c.l.b16 %v2731
    %v3164 = vunpack.c.h.b16 %v2731
    %v3165 = vunpack.c.l.b16 %v2732
    %v3166 = vunpack.c.h.b16 %v2732
    %v3167 = vunpack.c.l.b16 %v2733
    %v3168 = vunpack.c.h.b16 %v2733
    %v3169 = vunpack.c.l.b16 %v2734
    %v3170 = vunpack.c.h.b16 %v2734
    %v3171 = vunpack.c.l.b16 %v2735
    %v3172 = vunpack.c.h.b16 %v2735
    %v3173 = vunpack.c.l.b16 %v2736
    %v3174 = vunpack.c.h.b16 %v2736
    %v3175 = vunpack.c.l.b16 %v2737
    %v3176 = vunpack.c.h.b16 %v2737
    %v3177 = vunpack.c.l.b16 %v2738
    %v3178 = vunpack.c.h.b16 %v2738
    %v3179 = vunpack.c.l.b16 %v2739
    %v3180 = vunpack.c.h.b16 %v2739
    %v3181 = vunpack.c.l.b16 %v2740
    %v3182 = vunpack.c.h.b16 %v2740
    %v3183 = vunpack.c.l.b16 %v2741
    %v3184 = vunpack.c.h.b16 %v2741
    %v3185 = vunpack.c.l.b16 %v2742
    %v3186 = vunpack.c.h.b16 %v2742
    %v3187 = vunpack.c.l.b16 %v2743
    %v3188 = vunpack.c.h.b16 %v2743
    %v3189 = vunpack.c.l.b16 %v2744
    %v3190 = vunpack.c.h.b16 %v2744
    %v3191 = vunpack.c.l.b16 %v2745
    %v3192 = vunpack.c.h.b16 %v2745
    %v3193 = vunpack.c.l.b16 %v2746
    %v3194 = vunpack.c.h.b16 %v2746
    %v3195 = vunpack.c.l.b16 %v2747
    %v3196 = vunpack.c.h.b16 %v2747
    %v3197 = vunpack.c.l.b16 %v2748
    %v3198 = vunpack.c.h.b16 %v2748
    %v3199 = vunpack.c.l.b16 %v2749
    %v3200 = vunpack.c.h.b16 %v2749
    %v3201 = vunpack.c.l.b16 %v2750
    %v3202 = vunpack.c.h.b16 %v2750
    %v3203 = vunpack.c.l.b16 %v2751
    %v3204 = vunpack.c.h.b16 %v2751
    %v3205 = vunpack.c.l.b16 %v2752
    %v3206 = vunpack.c.h.b16 %v2752
    %v3207 = vunpack.c.l.b16 %v2753
    %v3208 = vunpack.c.h.b16 %v2753
    %v3209 = vunpack.c.l.b16 %v2754
    %v3210 = vunpack.c.h.b16 %v2754
    %v3211 = vunpack.c.l.b16 %v2755
    %v3212 = vunpack.c.h.b16 %v2755
    %v3213 = vunpack.c.l.b16 %v2756
    %v3214 = vunpack.c.h.b16 %v2756
    %v3215 = vunpack.c.l.b16 %v2757
    %v3216 = vunpack.c.h.b16 %v2757
    %v3217 = vunpack.c.l.b16 %v2758
    %v3218 = vunpack.c.h.b16 %v2758
    %v3219 = vunpack.c.l.b16 %v2759
    %v3220 = vunpack.c.h.b16 %v2759
    %v3221 = vunpack.c.l.b16 %v2760
    %v3222 = vunpack.c.h.b16 %v2760
    %v3223 = vunpack.c.l.b16 %v2761
    %v3224 = vunpack.c.h.b16 %v2761
    %v3225 = vunpack.c.l.b16 %v2762
    %v3226 = vunpack.c.h.b16 %v2762
    %v3227 = vunpack.c.l.b16 %v2763
    %v3228 = vunpack.c.h.b16 %v2763
    %v3229 = vunpack.c.l.b16 %v2764
    %v3230 = vunpack.c.h.b16 %v2764
    %v3231 = vunpack.c.l.b16 %v2765
    %v3232 = vunpack.c.h.b16 %v2765
    %v3233 = vunpack.c.l.b16 %v2766
    %v3234 = vunpack.c.h.b16 %v2766
    %v3235 = vunpack.c.l.b16 %v2767
    %v3236 = vunpack.c.h.b16 %v2767
    %v3237 = vunpack.c.l.b16 %v2768
    %v3238 = vunpack.c.h.b16 %v2768
    %v3239 = vunpack.c.l.b16 %v2769
    %v3240 = vunpack.c.h.b16 %v2769
    %v3241 = vunpack.c.l.b16 %v2770
    %v3242 = vunpack.c.h.b16 %v2770
    %v3243 = vunpack.c.l.b16 %v2771
    %v3244 = vunpack.c.h.b16 %v2771
    %v3245 = vunpack.c.l.b16 %v2772
    %v3246 = vunpack.c.h.b16 %v2772
    %v3247 = vunpack.c.l.b16 %v2773
    %v3248 = vunpack.c.h.b16 %v2773
    %v3249 = vunpack.c.l.b16 %v2774
    %v3250 = vunpack.c.h.b16 %v2774
    %v3251 = vunpack.c.l.b16 %v2775
    %v3252 = vunpack.c.h.b16 %v2775
    %v3253 = vunpack.c.l.b16 %v2776
    %v3254 = vunpack.c.h.b16 %v2776
    %v3255 = vunpack.c.l.b16 %v2777
    %v3256 = vunpack.c.h.b16 %v2777
    %v3257 = vunpack.c.l.b16 %v2778
    %v3258 = vunpack.c.h.b16 %v2778
    %v3259 = vunpack.c.l.b16 %v2779
    %v3260 = vunpack.c.h.b16 %v2779
    %v3261 = vunpack.c.l.b16 %v2780
    %v3262 = vunpack.c.h.b16 %v2780
    %v3263 = vpack.c.b16 %v3077, %v3071
    %v3264 = vpack.c.b16 %v3078, %v3072
    %v3265 = vpack.c.b16 %v3079, %v3073
    %v3266 = vpack.c.b16 %v3080, %v3074
    %v3267 = vpack.c.b16 %v3081, %v3075
    %v3268 = vpack.c.b16 %v3082, %v3076
    %v3269 = vpack.c.b16 %v3089, %v3083
    %v3270 = vpack.c.b16 %v3090, %v3084
    %v3271 = vpack.c.b16 %v3091, %v3085
    %v3272 = vpack.c.b16 %v3092, %v3086
    %v3273 = vpack.c.b16 %v3093, %v3087
    %v3274 = vpack.c.b16 %v3094, %v3088
    %v3275 = vpack.c.b16 %v3101, %v3095
    %v3276 = vpack.c.b16 %v3102, %v3096
    %v3277 = vpack.c.b16 %v3103, %v3097
    %v3278 = vpack.c.b16 %v3104, %v3098
    %v3279 = vpack.c.b16 %v3105, %v3099
    %v3280 = vpack.c.b16 %v3106, %v3100
    %v3281 = vpack.c.b16 %v3113, %v3107
    %v3282 = vpack.c.b16 %v3114, %v3108
    %v3283 = vpack.c.b16 %v3115, %v3109
    %v3284 = vpack.c.b16 %v3116, %v3110
    %v3285 = vpack.c.b16 %v3117, %v3111
    %v3286 = vpack.c.b16 %v3118, %v3112
    %v3287 = vpack.c.b16 %v3125, %v3119
    %v3288 = vpack.c.b16 %v3126, %v3120
    %v3289 = vpack.c.b16 %v3127, %v3121
    %v3290 = vpack.c.b16 %v3128, %v3122
    %v3291 = vpack.c.b16 %v3129, %v3123
    %v3292 = vpack.c.b16 %v3130, %v3124
    %v3293 = vpack.c.b16 %v3137, %v3131
    %v3294 = vpack.c.b16 %v3138, %v3132
    %v3295 = vpack.c.b16 %v3139, %v3133
    %v3296 = vpack.c.b16 %v3140, %v3134
    %v3297 = vpack.c.b16 %v3141, %v3135
    %v3298 = vpack.c.b16 %v3142, %v3136
    %v3299 = vpack.c.b16 %v3149, %v3143
    %v3300 = vpack.c.b16 %v3150, %v3144
    %v3301 = vpack.c.b16 %v3151, %v3145
    %v3302 = vpack.c.b16 %v3152, %v3146
    %v3303 = vpack.c.b16 %v3153, %v3147
    %v3304 = vpack.c.b16 %v3154, %v3148
    %v3305 = vpack.c.b16 %v3161, %v3155
    %v3306 = vpack.c.b16 %v3162, %v3156
    %v3307 = vpack.c.b16 %v3163, %v3157
    %v3308 = vpack.c.b16 %v3164, %v3158
    %v3309 = vpack.c.b16 %v3165, %v3159
    %v3310 = vpack.c.b16 %v3166, %v3160
    %v3311 = vpack.c.b16 %v3173, %v3167
    %v3312 = vpack.c.b16 %v3174, %v3168
    %v3313 = vpack.c.b16 %v3175, %v3169
    %v3314 = vpack.c.b16 %v3176, %v3170
    %v3315 = vpack.c.b16 %v3177, %v3171
    %v3316 = vpack.c.b16 %v3178, %v3172
    %v3317 = vpack.c.b16 %v3185, %v3179
    %v3318 = vpack.c.b16 %v3186, %v3180
    %v3319 = vpack.c.b16 %v3187, %v3181
    %v3320 = vpack.c.b16 %v3188, %v3182
    %v3321 = vpack.c.b16 %v3189, %v3183
    %v3322 = vpack.c.b16 %v3190, %v3184
    %v3323 = vpack.c.b16 %v3197, %v3191
    %v3324 = vpack.c.b16 %v3198, %v3192
    %v3325 = vpack.c.b16 %v3199, %v3193
    %v3326 = vpack.c.b16 %v3200, %v3194
    %v3327 = vpack.c.b16 %v3201, %v3195
    %v3328 = vpack.c.b16 %v3202, %v3196
    %v3329 = vpack.c.b16 %v3209, %v3203
    %v3330 = vpack.c.b16 %v3210, %v3204
    %v3331 = vpack.c.b16 %v3211, %v3205
    %v3332 = vpack.c.b16 %v3212, %v3206
    %v3333 = vpack.c.b16 %v3213, %v3207
    %v3334 = vpack.c.b16 %v3214, %v3208
    %v3335 = vpack.c.b16 %v3221, %v3215
    %v3336 = vpack.c.b16 %v3222, %v3216
    %v3337 = vpack.c.b16 %v3223, %v3217
    %v3338 = vpack.c.b16 %v3224, %v3218
    %v3339 = vpack.c.b16 %v3225, %v3219
    %v3340 = vpack.c.b16 %v3226, %v3220
    %v3341 = vpack.c.b16 %v3233, %v3227
    %v3342 = vpack.c.b16 %v3234, %v3228
    %v3343 = vpack.c.b16 %v3235, %v3229
    %v3344 = vpack.c.b16 %v3236, %v3230
    %v3345 = vpack.c.b16 %v3237, %v3231
    %v3346 = vpack.c.b16 %v3238, %v3232
    %v3347 = vpack.c.b16 %v3245, %v3239
    %v3348 = vpack.c.b16 %v3246, %v3240
    %v3349 = vpack.c.b16 %v3247, %v3241
    %v3350 = vpack.c.b16 %v3248, %v3242
    %v3351 = vpack.c.b16 %v3249, %v3243
    %v3352 = vpack.c.b16 %v3250, %v3244
    %v3353 = vpack.c.b16 %v3257, %v3251
    %v3354 = vpack.c.b16 %v3258, %v3252
    %v3355 = vpack.c.b16 %v3259, %v3253
    %v3356 = vpack.c.b16 %v3260, %v3254
    %v3357 = vpack.c.b16 %v3261, %v3255
    %v3358 = vpack.c.b16 %v3262, %v3256
    %3455 = vmatpush.bf16.msra.mxu0 %v3305
    %3456 = vmatpush.bf16.msra.mxu0 %v3299
    %3457 = vmatpush.bf16.msra.mxu0 %v3293
    %3458 = vmatpush.bf16.msra.mxu0 %v3287
    %3459 = vmatpush.bf16.msra.mxu0 %v3281
    %3460 = vmatpush.bf16.msra.mxu0 %v3275
    %3461 = vmatpush.bf16.msra.mxu0 %v3269
    %3462 = vmatpush.bf16.msra.mxu0 %v3263
    %3463 = vmatmul.bf16.gmra.mxu0 %v2960
    %v3464 = vpop.f32.mrf.mxu0
    %v3465 = vadd.f32 %v2963, %v3464
    %v3466 = vpop.f32.mrf.mxu0
    %v3467 = vadd.f32 %v2963, %v3466
    %3468 = vdwg.mxu0
    %3469 = vmatpush.bf16.msra.mxu0 %v3353
    %3470 = vmatpush.bf16.msra.mxu0 %v3347
    %3471 = vmatpush.bf16.msra.mxu0 %v3341
    %3472 = vmatpush.bf16.msra.mxu0 %v3335
    %3473 = vmatpush.bf16.msra.mxu0 %v3329
    %3474 = vmatpush.bf16.msra.mxu0 %v3323
    %3475 = vmatpush.bf16.msra.mxu0 %v3317
    %3476 = vmatpush.bf16.msra.mxu0 %v3311
    %3477 = vmatmul.bf16.gmra.mxu0 %v2961
    %v3478 = vpop.f32.mrf.mxu0
    %v3479 = vadd.f32 %v3465, %v3478
    %v3480 = vpop.f32.mrf.mxu0
    %v3481 = vadd.f32 %v3467, %v3480
    %3482 = vdwg.mxu0
    %3483 = vmatpush.bf16.msra.mxu0 %v3306
    %3484 = vmatpush.bf16.msra.mxu0 %v3300
    %3485 = vmatpush.bf16.msra.mxu0 %v3294
    %3486 = vmatpush.bf16.msra.mxu0 %v3288
    %3487 = vmatpush.bf16.msra.mxu0 %v3282
    %3488 = vmatpush.bf16.msra.mxu0 %v3276
    %3489 = vmatpush.bf16.msra.mxu0 %v3270
    %3490 = vmatpush.bf16.msra.mxu0 %v3264
    %3491 = vmatmul.bf16.gmra.mxu0 %v2960
    %v3492 = vpop.f32.mrf.mxu0
    %v3493 = vadd.f32 %v2964, %v3492
    %v3494 = vpop.f32.mrf.mxu0
    %v3495 = vadd.f32 %v2964, %v3494
    %3496 = vdwg.mxu0
    %3497 = vmatpush.bf16.msra.mxu0 %v3354
    %3498 = vmatpush.bf16.msra.mxu0 %v3348
    %3499 = vmatpush.bf16.msra.mxu0 %v3342
    %3500 = vmatpush.bf16.msra.mxu0 %v3336
    %3501 = vmatpush.bf16.msra.mxu0 %v3330
    %3502 = vmatpush.bf16.msra.mxu0 %v3324
    %3503 = vmatpush.bf16.msra.mxu0 %v3318
    %3504 = vmatpush.bf16.msra.mxu0 %v3312
    %3505 = vmatmul.bf16.gmra.mxu0 %v2961
    %v3506 = vpop.f32.mrf.mxu0
    %v3507 = vadd.f32 %v3493, %v3506
    %v3508 = vpop.f32.mrf.mxu0
    %v3509 = vadd.f32 %v3495, %v3508
    %3510 = vdwg.mxu0
    %3511 = vmatpush.bf16.msra.mxu0 %v3307
    %3512 = vmatpush.bf16.msra.mxu0 %v3301
    %3513 = vmatpush.bf16.msra.mxu0 %v3295
    %3514 = vmatpush.bf16.msra.mxu0 %v3289
    %3515 = vmatpush.bf16.msra.mxu0 %v3283
    %3516 = vmatpush.bf16.msra.mxu0 %v3277
    %3517 = vmatpush.bf16.msra.mxu0 %v3271
    %3518 = vmatpush.bf16.msra.mxu0 %v3265
    %3519 = vmatmul.bf16.gmra.mxu0 %v2960
    %v3520 = vpop.f32.mrf.mxu0
    %v3521 = vadd.f32 %v2965, %v3520
    %v3522 = vpop.f32.mrf.mxu0
    %v3523 = vadd.f32 %v2965, %v3522
    %3524 = vdwg.mxu0
    %3525 = vmatpush.bf16.msra.mxu0 %v3355
    %3526 = vmatpush.bf16.msra.mxu0 %v3349
    %3527 = vmatpush.bf16.msra.mxu0 %v3343
    %3528 = vmatpush.bf16.msra.mxu0 %v3337
    %3529 = vmatpush.bf16.msra.mxu0 %v3331
    %3530 = vmatpush.bf16.msra.mxu0 %v3325
    %3531 = vmatpush.bf16.msra.mxu0 %v3319
    %3532 = vmatpush.bf16.msra.mxu0 %v3313
    %3533 = vmatmul.bf16.gmra.mxu0 %v2961
    %v3534 = vpop.f32.mrf.mxu0
    %v3535 = vadd.f32 %v3521, %v3534
    %v3536 = vpop.f32.mrf.mxu0
    %v3537 = vadd.f32 %v3523, %v3536
    %3538 = vdwg.mxu0
    %3539 = vmatpush.bf16.msra.mxu0 %v3308
    %3540 = vmatpush.bf16.msra.mxu0 %v3302
    %3541 = vmatpush.bf16.msra.mxu0 %v3296
    %3542 = vmatpush.bf16.msra.mxu0 %v3290
    %3543 = vmatpush.bf16.msra.mxu0 %v3284
    %3544 = vmatpush.bf16.msra.mxu0 %v3278
    %3545 = vmatpush.bf16.msra.mxu0 %v3272
    %3546 = vmatpush.bf16.msra.mxu0 %v3266
    %3547 = vmatmul.bf16.gmra.mxu0 %v2960
    %v3548 = vpop.f32.mrf.mxu0
    %v3549 = vadd.f32 %v2966, %v3548
    %v3550 = vpop.f32.mrf.mxu0
    %v3551 = vadd.f32 %v2966, %v3550
    %3552 = vdwg.mxu0
    %3553 = vmatpush.bf16.msra.mxu0 %v3356
    %3554 = vmatpush.bf16.msra.mxu0 %v3350
    %3555 = vmatpush.bf16.msra.mxu0 %v3344
    %3556 = vmatpush.bf16.msra.mxu0 %v3338
    %3557 = vmatpush.bf16.msra.mxu0 %v3332
    %3558 = vmatpush.bf16.msra.mxu0 %v3326
    %3559 = vmatpush.bf16.msra.mxu0 %v3320
    %3560 = vmatpush.bf16.msra.mxu0 %v3314
    %3561 = vmatmul.bf16.gmra.mxu0 %v2961
    %v3562 = vpop.f32.mrf.mxu0
    %v3563 = vadd.f32 %v3549, %v3562
    %v3564 = vpop.f32.mrf.mxu0
    %v3565 = vadd.f32 %v3551, %v3564
    %3566 = vdwg.mxu0
    %3567 = vmatpush.bf16.msra.mxu0 %v3309
    %3568 = vmatpush.bf16.msra.mxu0 %v3303
    %3569 = vmatpush.bf16.msra.mxu0 %v3297
    %3570 = vmatpush.bf16.msra.mxu0 %v3291
    %3571 = vmatpush.bf16.msra.mxu0 %v3285
    %3572 = vmatpush.bf16.msra.mxu0 %v3279
    %3573 = vmatpush.bf16.msra.mxu0 %v3273
    %3574 = vmatpush.bf16.msra.mxu0 %v3267
    %3575 = vmatmul.bf16.gmra.mxu0 %v2960
    %v3576 = vpop.f32.mrf.mxu0
    %v3577 = vadd.f32 %v2967, %v3576
    %v3578 = vpop.f32.mrf.mxu0
    %v3579 = vadd.f32 %v2967, %v3578
    %3580 = vdwg.mxu0
    %3581 = vmatpush.bf16.msra.mxu0 %v3357
    %3582 = vmatpush.bf16.msra.mxu0 %v3351
    %3583 = vmatpush.bf16.msra.mxu0 %v3345
    %3584 = vmatpush.bf16.msra.mxu0 %v3339
    %3585 = vmatpush.bf16.msra.mxu0 %v3333
    %3586 = vmatpush.bf16.msra.mxu0 %v3327
    %3587 = vmatpush.bf16.msra.mxu0 %v3321
    %3588 = vmatpush.bf16.msra.mxu0 %v3315
    %3589 = vmatmul.bf16.gmra.mxu0 %v2961
    %v3590 = vpop.f32.mrf.mxu0
    %v3591 = vadd.f32 %v3577, %v3590
    %v3592 = vpop.f32.mrf.mxu0
    %v3593 = vadd.f32 %v3579, %v3592
    %3594 = vdwg.mxu0
    %3595 = vmatpush.bf16.msra.mxu0 %v3310
    %3596 = vmatpush.bf16.msra.mxu0 %v3304
    %3597 = vmatpush.bf16.msra.mxu0 %v3298
    %3598 = vmatpush.bf16.msra.mxu0 %v3292
    %3599 = vmatpush.bf16.msra.mxu0 %v3286
    %3600 = vmatpush.bf16.msra.mxu0 %v3280
    %3601 = vmatpush.bf16.msra.mxu0 %v3274
    %3602 = vmatpush.bf16.msra.mxu0 %v3268
    %3603 = vmatmul.bf16.gmra.mxu0 %v2960
    %v3604 = vpop.f32.mrf.mxu0
    %v3605 = vadd.f32 %v2968, %v3604
    %v3606 = vpop.f32.mrf.mxu0
    %v3607 = vadd.f32 %v2968, %v3606
    %3608 = vdwg.mxu0
    %3609 = vmatpush.bf16.msra.mxu0 %v3358
    %3610 = vmatpush.bf16.msra.mxu0 %v3352
    %3611 = vmatpush.bf16.msra.mxu0 %v3346
    %3612 = vmatpush.bf16.msra.mxu0 %v3340
    %3613 = vmatpush.bf16.msra.mxu0 %v3334
    %3614 = vmatpush.bf16.msra.mxu0 %v3328
    %3615 = vmatpush.bf16.msra.mxu0 %v3322
    %3616 = vmatpush.bf16.msra.mxu0 %v3316
    %3617 = vmatmul.bf16.gmra.mxu0 %v2961
    %v3618 = vpop.f32.mrf.mxu0
    %v3619 = vadd.f32 %v3605, %v3618
    %v3620 = vpop.f32.mrf.mxu0
    %v3621 = vadd.f32 %v3607, %v3620
    %3622 = vdwg.mxu0
    %v3623 = vmul.f32 %v3479, 0.088388346
    %v3624 = vmul.f32 %v3507, 0.088388346
    %v3625 = vmul.f32 %v3481, 0.088388346
    %v3626 = vmul.f32 %v3509, 0.088388346
    %v3627 = vpack.c.bf16 %v3623, %v3623
    %v3628 = vpack.c.bf16 %v3625, %v3625
    %v3629 = vpack.c.bf16 %v3624, %v3624
    %v3630 = vpack.c.bf16 %v3626, %v3626
    %v3631 = vpack.c.bf16 %v3535, %v3535
    %v3632 = vpack.c.bf16 %v3537, %v3537
    %v3633 = vpack.c.bf16 %v3563, %v3563
    %v3634 = vpack.c.bf16 %v3565, %v3565
    %v3635 = vpack.c.bf16 %v3591, %v3591
    %v3636 = vpack.c.bf16 %v3593, %v3593
    %v3637 = vpack.c.bf16 %v3619, %v3619
    %v3638 = vpack.c.bf16 %v3621, %v3621
    %3639 = vmatpush.bf16.xpose.msra.mxu0 0
    %3640 = vmatpush.bf16.xpose.msra.mxu0 0
    %3641 = vmatpush.bf16.xpose.msra.mxu0 0
    %3642 = vmatpush.bf16.xpose.msra.mxu0 0
    %3643 = vmatpush.bf16.xpose.msra.mxu0 0
    %3644 = vmatpush.bf16.xpose.msra.mxu0 0
    %3645 = vmatpush.bf16.xpose.msra.mxu0 0
    %3646 = vmatpush.bf16.xpose.msra.mxu0 %v3631
    %3647 = vmatmul.bf16.gmra.mxu0 %v3627
    %v3648 = vpop.f32.mrf.mxu0
    %v3649 = vadd.f32 %v1171, %v3648
    %v3650 = vpop.f32.mrf.mxu0
    %3651 = vdwg.mxu0
    %3652 = vmatpush.bf16.xpose.msra.mxu0 0
    %3653 = vmatpush.bf16.xpose.msra.mxu0 0
    %3654 = vmatpush.bf16.xpose.msra.mxu0 0
    %3655 = vmatpush.bf16.xpose.msra.mxu0 0
    %3656 = vmatpush.bf16.xpose.msra.mxu0 0
    %3657 = vmatpush.bf16.xpose.msra.mxu0 0
    %3658 = vmatpush.bf16.xpose.msra.mxu0 0
    %3659 = vmatpush.bf16.xpose.msra.mxu0 %v3632
    %3660 = vmatmul.bf16.gmra.mxu0 %v3628
    %v3661 = vpop.f32.mrf.mxu0
    %v3662 = vadd.f32 %v1172, %v3661
    %v3663 = vpop.f32.mrf.mxu0
    %3664 = vdwg.mxu0
    %3665 = vmatpush.bf16.xpose.msra.mxu0 0
    %3666 = vmatpush.bf16.xpose.msra.mxu0 0
    %3667 = vmatpush.bf16.xpose.msra.mxu0 0
    %3668 = vmatpush.bf16.xpose.msra.mxu0 0
    %3669 = vmatpush.bf16.xpose.msra.mxu0 0
    %3670 = vmatpush.bf16.xpose.msra.mxu0 0
    %3671 = vmatpush.bf16.xpose.msra.mxu0 0
    %3672 = vmatpush.bf16.xpose.msra.mxu0 %v3633
    %3673 = vmatmul.bf16.gmra.mxu0 %v3629
    %v3674 = vpop.f32.mrf.mxu0
    %v3675 = vadd.f32 %v1173, %v3674
    %v3676 = vpop.f32.mrf.mxu0
    %3677 = vdwg.mxu0
    %3678 = vmatpush.bf16.xpose.msra.mxu0 0
    %3679 = vmatpush.bf16.xpose.msra.mxu0 0
    %3680 = vmatpush.bf16.xpose.msra.mxu0 0
    %3681 = vmatpush.bf16.xpose.msra.mxu0 0
    %3682 = vmatpush.bf16.xpose.msra.mxu0 0
    %3683 = vmatpush.bf16.xpose.msra.mxu0 0
    %3684 = vmatpush.bf16.xpose.msra.mxu0 0
    %3685 = vmatpush.bf16.xpose.msra.mxu0 %v3634
    %3686 = vmatmul.bf16.gmra.mxu0 %v3630
    %v3687 = vpop.f32.mrf.mxu0
    %v3688 = vadd.f32 %v1174, %v3687
    %v3689 = vpop.f32.mrf.mxu0
    %3690 = vdwg.mxu0
    %v3691 = vsel %vm1231, %v3649, -inf
    %3692 = vmax.xlane.f32.xlu0 %v3691
    %v3693 = vpop.xlane.xlu0 %3692
    %v3694 = vsel %vm1231, %v3662, -inf
    %3695 = vmax.xlane.f32.xlu0 %v3694
    %v3696 = vpop.xlane.xlu0 %3695
    %v3697 = vsel %vm1231, %v3675, -inf
    %3698 = vmax.xlane.f32.xlu0 %v3697
    %v3699 = vpop.xlane.xlu0 %3698
    %v3700 = vsel %vm1231, %v3688, -inf
    %3701 = vmax.xlane.f32.xlu0 %v3700
    %v3702 = vpop.xlane.xlu0 %3701
    %v3703 = vsub.f32 %v3649, %v3693
    %v3704 = vsub.f32 %v3662, %v3696
    %v3705 = vsub.f32 %v3675, %v3699
    %v3706 = vsub.f32 %v3688, %v3702
    %v3707 = vmul.f32 %v3703, 1.442695
    %v3708 = vpow.pop %v3707
    %v3709 = vmul.f32 %v3704, 1.442695
    %v3710 = vpow.pop %v3709
    %v3711 = vmul.f32 %v3705, 1.442695
    %v3712 = vpow.pop %v3711
    %v3713 = vmul.f32 %v3706, 1.442695
    %v3714 = vpow.pop %v3713
    %v3715 = vsel %vm1231, %v3708, 0.0
    %3716 = vadd.xlane.f32.xlu0 %v3715
    %v3717 = vpop.xlane.xlu0 %3716
    %v3718 = vsel %vm1231, %v3710, 0.0
    %3719 = vadd.xlane.f32.xlu0 %v3718
    %v3720 = vpop.xlane.xlu0 %3719
    %v3721 = vsel %vm1231, %v3712, 0.0
    %3722 = vadd.xlane.f32.xlu0 %v3721
    %v3723 = vpop.xlane.xlu0 %3722
    %v3724 = vsel %vm1231, %v3714, 0.0
    %3725 = vadd.xlane.f32.xlu0 %v3724
    %v3726 = vpop.xlane.xlu0 %3725
    %v3727 = vrcp.pop %v3717
    %v3728 = vrcp.pop %v3720
    %v3729 = vrcp.pop %v3723
    %v3730 = vrcp.pop %v3726
    %v3731 = vmul.f32 %v3708, %v3727
    %v3732 = vmul.f32 %v3710, %v3728
    %v3733 = vmul.f32 %v3712, %v3729
    %v3734 = vmul.f32 %v3714, %v3730
    %v3735 = vpack.c.bf16 %v3731, %v3731
    %v3736 = vpack.c.bf16 %v3732, %v3732
    %v3737 = vpack.c.bf16 %v3733, %v3733
    %v3738 = vpack.c.bf16 %v3734, %v3734
    %v3740 = vsel %vm1231, %v3735, 0
    %v3743 = vsel %vm1283, %v3635, 0
    %3745 = vmatpush.bf16.msra.mxu0 0
    %3746 = vmatpush.bf16.msra.mxu0 0
    %3747 = vmatpush.bf16.msra.mxu0 0
    %3748 = vmatpush.bf16.msra.mxu0 0
    %3749 = vmatpush.bf16.msra.mxu0 0
    %3750 = vmatpush.bf16.msra.mxu0 0
    %3751 = vmatpush.bf16.msra.mxu0 0
    %3752 = vmatpush.bf16.msra.mxu0 %v3743
    %3753 = vmatmul.bf16.gmra.mxu0 %v3740
    %v3754 = vpop.f32.mrf.mxu0
    %v3755 = vadd.f32 0.0, %v3754
    %v3756 = vpop.f32.mrf.mxu0
    %3757 = vdwg.mxu0
    %v3759 = vsel %vm1231, %v3736, 0
    %v3762 = vsel %vm1283, %v3636, 0
    %3764 = vmatpush.bf16.msra.mxu0 0
    %3765 = vmatpush.bf16.msra.mxu0 0
    %3766 = vmatpush.bf16.msra.mxu0 0
    %3767 = vmatpush.bf16.msra.mxu0 0
    %3768 = vmatpush.bf16.msra.mxu0 0
    %3769 = vmatpush.bf16.msra.mxu0 0
    %3770 = vmatpush.bf16.msra.mxu0 0
    %3771 = vmatpush.bf16.msra.mxu0 %v3762
    %3772 = vmatmul.bf16.gmra.mxu0 %v3759
    %v3773 = vpop.f32.mrf.mxu0
    %v3774 = vadd.f32 0.0, %v3773
    %v3775 = vpop.f32.mrf.mxu0
    %3776 = vdwg.mxu0
    %v3778 = vsel %vm1231, %v3737, 0
    %v3781 = vsel %vm1283, %v3637, 0
    %3783 = vmatpush.bf16.msra.mxu0 0
    %3784 = vmatpush.bf16.msra.mxu0 0
    %3785 = vmatpush.bf16.msra.mxu0 0
    %3786 = vmatpush.bf16.msra.mxu0 0
    %3787 = vmatpush.bf16.msra.mxu0 0
    %3788 = vmatpush.bf16.msra.mxu0 0
    %3789 = vmatpush.bf16.msra.mxu0 0
    %3790 = vmatpush.bf16.msra.mxu0 %v3781
    %3791 = vmatmul.bf16.gmra.mxu0 %v3778
    %v3792 = vpop.f32.mrf.mxu0
    %v3793 = vadd.f32 0.0, %v3792
    %v3794 = vpop.f32.mrf.mxu0
    %3795 = vdwg.mxu0
    %v3797 = vsel %vm1231, %v3738, 0
    %v3800 = vsel %vm1283, %v3638, 0
    %3802 = vmatpush.bf16.msra.mxu0 0
    %3803 = vmatpush.bf16.msra.mxu0 0
    %3804 = vmatpush.bf16.msra.mxu0 0
    %3805 = vmatpush.bf16.msra.mxu0 0
    %3806 = vmatpush.bf16.msra.mxu0 0
    %3807 = vmatpush.bf16.msra.mxu0 0
    %3808 = vmatpush.bf16.msra.mxu0 0
    %3809 = vmatpush.bf16.msra.mxu0 %v3800
    %3810 = vmatmul.bf16.gmra.mxu0 %v3797
    %v3811 = vpop.f32.mrf.mxu0
    %v3812 = vadd.f32 0.0, %v3811
    %v3813 = vpop.f32.mrf.mxu0
    %3814 = vdwg.mxu0
    %v3815 = vpack.c.bf16 %v3774, %v3755
    %v3816 = vpack.c.bf16 %v3812, %v3793
    %v3818 = vperm.slane %v2817, 0
    %v3819 = vperm.slane %v2817, 1
    %v3854 = vunpack.c.l.b16 %v2784
    %v3855 = vunpack.c.h.b16 %v2784
    %v3856 = vunpack.c.l.b16 %v2785
    %v3857 = vunpack.c.h.b16 %v2785
    %v3858 = vunpack.c.l.b16 %v2786
    %v3859 = vunpack.c.h.b16 %v2786
    %v3860 = vunpack.c.l.b16 %v2787
    %v3861 = vunpack.c.h.b16 %v2787
    %v3862 = vunpack.c.l.b16 %v2788
    %v3863 = vunpack.c.h.b16 %v2788
    %v3864 = vunpack.c.l.b16 %v2789
    %v3865 = vunpack.c.h.b16 %v2789
    %v3866 = vunpack.c.l.b16 %v2790
    %v3867 = vunpack.c.h.b16 %v2790
    %v3868 = vunpack.c.l.b16 %v2791
    %v3869 = vunpack.c.h.b16 %v2791
    %v3870 = vunpack.c.l.b16 %v2792
    %v3871 = vunpack.c.h.b16 %v2792
    %v3872 = vunpack.c.l.b16 %v2793
    %v3873 = vunpack.c.h.b16 %v2793
    %v3874 = vunpack.c.l.b16 %v2794
    %v3875 = vunpack.c.h.b16 %v2794
    %v3876 = vunpack.c.l.b16 %v2795
    %v3877 = vunpack.c.h.b16 %v2795
    %v3878 = vunpack.c.l.b16 %v2796
    %v3879 = vunpack.c.h.b16 %v2796
    %v3880 = vunpack.c.l.b16 %v2797
    %v3881 = vunpack.c.h.b16 %v2797
    %v3882 = vunpack.c.l.b16 %v2798
    %v3883 = vunpack.c.h.b16 %v2798
    %v3884 = vunpack.c.l.b16 %v2799
    %v3885 = vunpack.c.h.b16 %v2799
    %v3886 = vunpack.c.l.b16 %v2800
    %v3887 = vunpack.c.h.b16 %v2800
    %v3888 = vunpack.c.l.b16 %v2801
    %v3889 = vunpack.c.h.b16 %v2801
    %v3890 = vunpack.c.l.b16 %v2802
    %v3891 = vunpack.c.h.b16 %v2802
    %v3892 = vunpack.c.l.b16 %v2803
    %v3893 = vunpack.c.h.b16 %v2803
    %v3894 = vunpack.c.l.b16 %v2804
    %v3895 = vunpack.c.h.b16 %v2804
    %v3896 = vunpack.c.l.b16 %v2805
    %v3897 = vunpack.c.h.b16 %v2805
    %v3898 = vunpack.c.l.b16 %v2806
    %v3899 = vunpack.c.h.b16 %v2806
    %v3900 = vunpack.c.l.b16 %v2807
    %v3901 = vunpack.c.h.b16 %v2807
    %v3902 = vunpack.c.l.b16 %v2808
    %v3903 = vunpack.c.h.b16 %v2808
    %v3904 = vunpack.c.l.b16 %v2809
    %v3905 = vunpack.c.h.b16 %v2809
    %v3906 = vunpack.c.l.b16 %v2810
    %v3907 = vunpack.c.h.b16 %v2810
    %v3908 = vunpack.c.l.b16 %v2811
    %v3909 = vunpack.c.h.b16 %v2811
    %v3910 = vunpack.c.l.b16 %v2812
    %v3911 = vunpack.c.h.b16 %v2812
    %v3912 = vunpack.c.l.b16 %v2813
    %v3913 = vunpack.c.h.b16 %v2813
    %v3914 = vunpack.c.l.b16 %v2814
    %v3915 = vunpack.c.h.b16 %v2814
    %v3916 = vunpack.c.l.b16 %v2815
    %v3917 = vunpack.c.h.b16 %v2815
    %v3918 = vpack.c.b16 %v3856, %v3854
    %v3919 = vpack.c.b16 %v3857, %v3855
    %v3920 = vpack.c.b16 %v3860, %v3858
    %v3921 = vpack.c.b16 %v3861, %v3859
    %v3922 = vpack.c.b16 %v3864, %v3862
    %v3923 = vpack.c.b16 %v3865, %v3863
    %v3924 = vpack.c.b16 %v3868, %v3866
    %v3925 = vpack.c.b16 %v3869, %v3867
    %v3926 = vpack.c.b16 %v3872, %v3870
    %v3927 = vpack.c.b16 %v3873, %v3871
    %v3928 = vpack.c.b16 %v3876, %v3874
    %v3929 = vpack.c.b16 %v3877, %v3875
    %v3930 = vpack.c.b16 %v3880, %v3878
    %v3931 = vpack.c.b16 %v3881, %v3879
    %v3932 = vpack.c.b16 %v3884, %v3882
    %v3933 = vpack.c.b16 %v3885, %v3883
    %v3934 = vpack.c.b16 %v3888, %v3886
    %v3935 = vpack.c.b16 %v3889, %v3887
    %v3936 = vpack.c.b16 %v3892, %v3890
    %v3937 = vpack.c.b16 %v3893, %v3891
    %v3938 = vpack.c.b16 %v3896, %v3894
    %v3939 = vpack.c.b16 %v3897, %v3895
    %v3940 = vpack.c.b16 %v3900, %v3898
    %v3941 = vpack.c.b16 %v3901, %v3899
    %v3942 = vpack.c.b16 %v3904, %v3902
    %v3943 = vpack.c.b16 %v3905, %v3903
    %v3944 = vpack.c.b16 %v3908, %v3906
    %v3945 = vpack.c.b16 %v3909, %v3907
    %v3946 = vpack.c.b16 %v3912, %v3910
    %v3947 = vpack.c.b16 %v3913, %v3911
    %v3948 = vpack.c.b16 %v3916, %v3914
    %v3949 = vpack.c.b16 %v3917, %v3915
    %3982 = vmatpush.bf16.msra.mxu0 %v3932
    %3983 = vmatpush.bf16.msra.mxu0 %v3930
    %3984 = vmatpush.bf16.msra.mxu0 %v3928
    %3985 = vmatpush.bf16.msra.mxu0 %v3926
    %3986 = vmatpush.bf16.msra.mxu0 %v3924
    %3987 = vmatpush.bf16.msra.mxu0 %v3922
    %3988 = vmatpush.bf16.msra.mxu0 %v3920
    %3989 = vmatpush.bf16.msra.mxu0 %v3918
    %3990 = vmatmul.bf16.gmra.mxu0 %v3815
    %v3991 = vpop.f32.mrf.mxu0
    %v3992 = vadd.f32 %v3818, %v3991
    %v3993 = vpop.f32.mrf.mxu0
    %v3994 = vadd.f32 %v3818, %v3993
    %3995 = vdwg.mxu0
    %3996 = vmatpush.bf16.msra.mxu0 %v3948
    %3997 = vmatpush.bf16.msra.mxu0 %v3946
    %3998 = vmatpush.bf16.msra.mxu0 %v3944
    %3999 = vmatpush.bf16.msra.mxu0 %v3942
    %4000 = vmatpush.bf16.msra.mxu0 %v3940
    %4001 = vmatpush.bf16.msra.mxu0 %v3938
    %4002 = vmatpush.bf16.msra.mxu0 %v3936
    %4003 = vmatpush.bf16.msra.mxu0 %v3934
    %4004 = vmatmul.bf16.gmra.mxu0 %v3816
    %v4005 = vpop.f32.mrf.mxu0
    %v4006 = vadd.f32 %v3992, %v4005
    %v4007 = vpop.f32.mrf.mxu0
    %v4008 = vadd.f32 %v3994, %v4007
    %4009 = vdwg.mxu0
    %4010 = vmatpush.bf16.msra.mxu0 %v3933
    %4011 = vmatpush.bf16.msra.mxu0 %v3931
    %4012 = vmatpush.bf16.msra.mxu0 %v3929
    %4013 = vmatpush.bf16.msra.mxu0 %v3927
    %4014 = vmatpush.bf16.msra.mxu0 %v3925
    %4015 = vmatpush.bf16.msra.mxu0 %v3923
    %4016 = vmatpush.bf16.msra.mxu0 %v3921
    %4017 = vmatpush.bf16.msra.mxu0 %v3919
    %4018 = vmatmul.bf16.gmra.mxu0 %v3815
    %v4019 = vpop.f32.mrf.mxu0
    %v4020 = vadd.f32 %v3819, %v4019
    %v4021 = vpop.f32.mrf.mxu0
    %v4022 = vadd.f32 %v3819, %v4021
    %4023 = vdwg.mxu0
    %4024 = vmatpush.bf16.msra.mxu0 %v3949
    %4025 = vmatpush.bf16.msra.mxu0 %v3947
    %4026 = vmatpush.bf16.msra.mxu0 %v3945
    %4027 = vmatpush.bf16.msra.mxu0 %v3943
    %4028 = vmatpush.bf16.msra.mxu0 %v3941
    %4029 = vmatpush.bf16.msra.mxu0 %v3939
    %4030 = vmatpush.bf16.msra.mxu0 %v3937
    %4031 = vmatpush.bf16.msra.mxu0 %v3935
    %4032 = vmatmul.bf16.gmra.mxu0 %v3816
    %v4033 = vpop.f32.mrf.mxu0
    %v4034 = vadd.f32 %v4020, %v4033
    %v4035 = vpop.f32.mrf.mxu0
    %v4036 = vadd.f32 %v4022, %v4035
    %4037 = vdwg.mxu0
    %v4038 = vadd.f32 %v2680, %v4006
    %v4039 = vadd.f32 %v2681, %v4034
    %v4040 = vadd.f32 %v2682, %v4008
    %v4041 = vadd.f32 %v2683, %v4036
    %v4042 = vadd.f32 %v4038, %v4039
    %4043 = vadd.xlane.f32.xlu0 %v4042
    %v4044 = vpop.xlane.xlu0 %4043
    %v4045 = vadd.f32 %v4040, %v4041
    %4046 = vadd.xlane.f32.xlu0 %v4045
    %v4047 = vpop.xlane.xlu0 %4046
    %v4048 = vmul.f32 %v4044, %v157
    %v4049 = vmul.f32 %v4047, %v157
    %v4050 = vsub.f32 %v4038, %v4048
    %v4051 = vsub.f32 %v4039, %v4048
    %v4052 = vsub.f32 %v4040, %v4049
    %v4053 = vsub.f32 %v4041, %v4049
    %v4054 = vmul.f32 %v4050, %v4050
    %v4055 = vmul.f32 %v4051, %v4051
    %v4056 = vmul.f32 %v4052, %v4052
    %v4057 = vmul.f32 %v4053, %v4053
    %v4058 = vadd.f32 %v4054, %v4055
    %4059 = vadd.xlane.f32.xlu0 %v4058
    %v4060 = vpop.xlane.xlu0 %4059
    %v4061 = vadd.f32 %v4056, %v4057
    %4062 = vadd.xlane.f32.xlu0 %v4061
    %v4063 = vpop.xlane.xlu0 %4062
    %v4064 = vmul.f32 %v4060, %v157
    %v4065 = vmul.f32 %v4063, %v157
    %v4066 = vadd.f32 %v4064, 1e-05
    %v4067 = vadd.f32 %v4065, 1e-05
    %v4068 = vrsqrt.pop %v4066
    %v4069 = vmul.f32 %v4068, %v4066
    %v4070 = vmul.f32 %v4069, %v4068
    %v4071 = vmul.f32 0.5, %v4070
    %v4072 = vsub.f32 1.5, %v4071
    %v4073 = vmul.f32 %v4068, %v4072
    %vm4074 = vweird.f32 %v4066
    %vm4075 = vweird.f32 %v4068
    %vm4076 = vmor %vm4074, %vm4075
    %v4077 = vsel %vm4076, %v4068, %v4073
    %v4078 = vrsqrt.pop %v4067
    %v4079 = vmul.f32 %v4078, %v4067
    %v4080 = vmul.f32 %v4079, %v4078
    %v4081 = vmul.f32 0.5, %v4080
    %v4082 = vsub.f32 1.5, %v4081
    %v4083 = vmul.f32 %v4078, %v4082
    %vm4084 = vweird.f32 %v4067
    %vm4085 = vweird.f32 %v4078
    %vm4086 = vmor %vm4084, %vm4085
    %v4087 = vsel %vm4086, %v4078, %v4083
    %v4088 = vmul.f32 %v4050, %v4077
    %v4089 = vmul.f32 %v4051, %v4077
    %v4090 = vmul.f32 %v4052, %v4087
    %v4091 = vmul.f32 %v4053, %v4087
    %v4093 = vperm.slane %v2819, 0
    %v4094 = vperm.slane %v2819, 1
    %v4097 = vmul.f32 %v4088, %v4093
    %v4098 = vmul.f32 %v4089, %v4094
    %v4099 = vmul.f32 %v4090, %v4093
    %v4100 = vmul.f32 %v4091, %v4094
    %v4102 = vperm.slane %v2821, 0
    %v4103 = vperm.slane %v2821, 1
    %v4106 = vadd.f32 %v4097, %v4102
    %v4107 = vadd.f32 %v4098, %v4103
    %v4108 = vadd.f32 %v4099, %v4102
    %v4109 = vadd.f32 %v4100, %v4103
    %v4110 = vpack.c.bf16 %v4108, %v4106
    %v4111 = vpack.c.bf16 %v4109, %v4107
    %v4113 = vperm.slane %v2888, 0
    %v4114 = vperm.slane %v2888, 1
    %v4115 = vperm.slane %v2888, 2
    %v4116 = vperm.slane %v2888, 3
    %v4185 = vunpack.c.l.b16 %v2823
    %v4186 = vunpack.c.h.b16 %v2823
    %v4187 = vunpack.c.l.b16 %v2824
    %v4188 = vunpack.c.h.b16 %v2824
    %v4189 = vunpack.c.l.b16 %v2825
    %v4190 = vunpack.c.h.b16 %v2825
    %v4191 = vunpack.c.l.b16 %v2826
    %v4192 = vunpack.c.h.b16 %v2826
    %v4193 = vunpack.c.l.b16 %v2827
    %v4194 = vunpack.c.h.b16 %v2827
    %v4195 = vunpack.c.l.b16 %v2828
    %v4196 = vunpack.c.h.b16 %v2828
    %v4197 = vunpack.c.l.b16 %v2829
    %v4198 = vunpack.c.h.b16 %v2829
    %v4199 = vunpack.c.l.b16 %v2830
    %v4200 = vunpack.c.h.b16 %v2830
    %v4201 = vunpack.c.l.b16 %v2831
    %v4202 = vunpack.c.h.b16 %v2831
    %v4203 = vunpack.c.l.b16 %v2832
    %v4204 = vunpack.c.h.b16 %v2832
    %v4205 = vunpack.c.l.b16 %v2833
    %v4206 = vunpack.c.h.b16 %v2833
    %v4207 = vunpack.c.l.b16 %v2834
    %v4208 = vunpack.c.h.b16 %v2834
    %v4209 = vunpack.c.l.b16 %v2835
    %v4210 = vunpack.c.h.b16 %v2835
    %v4211 = vunpack.c.l.b16 %v2836
    %v4212 = vunpack.c.h.b16 %v2836
    %v4213 = vunpack.c.l.b16 %v2837
    %v4214 = vunpack.c.h.b16 %v2837
    %v4215 = vunpack.c.l.b16 %v2838
    %v4216 = vunpack.c.h.b16 %v2838
    %v4217 = vunpack.c.l.b16 %v2839
    %v4218 = vunpack.c.h.b16 %v2839
    %v4219 = vunpack.c.l.b16 %v2840
    %v4220 = vunpack.c.h.b16 %v2840
    %v4221 = vunpack.c.l.b16 %v2841
    %v4222 = vunpack.c.h.b16 %v2841
    %v4223 = vunpack.c.l.b16 %v2842
    %v4224 = vunpack.c.h.b16 %v2842
    %v4225 = vunpack.c.l.b16 %v2843
    %v4226 = vunpack.c.h.b16 %v2843
    %v4227 = vunpack.c.l.b16 %v2844
    %v4228 = vunpack.c.h.b16 %v2844
    %v4229 = vunpack.c.l.b16 %v2845
    %v4230 = vunpack.c.h.b16 %v2845
    %v4231 = vunpack.c.l.b16 %v2846
    %v4232 = vunpack.c.h.b16 %v2846
    %v4233 = vunpack.c.l.b16 %v2847
    %v4234 = vunpack.c.h.b16 %v2847
    %v4235 = vunpack.c.l.b16 %v2848
    %v4236 = vunpack.c.h.b16 %v2848
    %v4237 = vunpack.c.l.b16 %v2849
    %v4238 = vunpack.c.h.b16 %v2849
    %v4239 = vunpack.c.l.b16 %v2850
    %v4240 = vunpack.c.h.b16 %v2850
    %v4241 = vunpack.c.l.b16 %v2851
    %v4242 = vunpack.c.h.b16 %v2851
    %v4243 = vunpack.c.l.b16 %v2852
    %v4244 = vunpack.c.h.b16 %v2852
    %v4245 = vunpack.c.l.b16 %v2853
    %v4246 = vunpack.c.h.b16 %v2853
    %v4247 = vunpack.c.l.b16 %v2854
    %v4248 = vunpack.c.h.b16 %v2854
    %v4249 = vunpack.c.l.b16 %v2855
    %v4250 = vunpack.c.h.b16 %v2855
    %v4251 = vunpack.c.l.b16 %v2856
    %v4252 = vunpack.c.h.b16 %v2856
    %v4253 = vunpack.c.l.b16 %v2857
    %v4254 = vunpack.c.h.b16 %v2857
    %v4255 = vunpack.c.l.b16 %v2858
    %v4256 = vunpack.c.h.b16 %v2858
    %v4257 = vunpack.c.l.b16 %v2859
    %v4258 = vunpack.c.h.b16 %v2859
    %v4259 = vunpack.c.l.b16 %v2860
    %v4260 = vunpack.c.h.b16 %v2860
    %v4261 = vunpack.c.l.b16 %v2861
    %v4262 = vunpack.c.h.b16 %v2861
    %v4263 = vunpack.c.l.b16 %v2862
    %v4264 = vunpack.c.h.b16 %v2862
    %v4265 = vunpack.c.l.b16 %v2863
    %v4266 = vunpack.c.h.b16 %v2863
    %v4267 = vunpack.c.l.b16 %v2864
    %v4268 = vunpack.c.h.b16 %v2864
    %v4269 = vunpack.c.l.b16 %v2865
    %v4270 = vunpack.c.h.b16 %v2865
    %v4271 = vunpack.c.l.b16 %v2866
    %v4272 = vunpack.c.h.b16 %v2866
    %v4273 = vunpack.c.l.b16 %v2867
    %v4274 = vunpack.c.h.b16 %v2867
    %v4275 = vunpack.c.l.b16 %v2868
    %v4276 = vunpack.c.h.b16 %v2868
    %v4277 = vunpack.c.l.b16 %v2869
    %v4278 = vunpack.c.h.b16 %v2869
    %v4279 = vunpack.c.l.b16 %v2870
    %v4280 = vunpack.c.h.b16 %v2870
    %v4281 = vunpack.c.l.b16 %v2871
    %v4282 = vunpack.c.h.b16 %v2871
    %v4283 = vunpack.c.l.b16 %v2872
    %v4284 = vunpack.c.h.b16 %v2872
    %v4285 = vunpack.c.l.b16 %v2873
    %v4286 = vunpack.c.h.b16 %v2873
    %v4287 = vunpack.c.l.b16 %v2874
    %v4288 = vunpack.c.h.b16 %v2874
    %v4289 = vunpack.c.l.b16 %v2875
    %v4290 = vunpack.c.h.b16 %v2875
    %v4291 = vunpack.c.l.b16 %v2876
    %v4292 = vunpack.c.h.b16 %v2876
    %v4293 = vunpack.c.l.b16 %v2877
    %v4294 = vunpack.c.h.b16 %v2877
    %v4295 = vunpack.c.l.b16 %v2878
    %v4296 = vunpack.c.h.b16 %v2878
    %v4297 = vunpack.c.l.b16 %v2879
    %v4298 = vunpack.c.h.b16 %v2879
    %v4299 = vunpack.c.l.b16 %v2880
    %v4300 = vunpack.c.h.b16 %v2880
    %v4301 = vunpack.c.l.b16 %v2881
    %v4302 = vunpack.c.h.b16 %v2881
    %v4303 = vunpack.c.l.b16 %v2882
    %v4304 = vunpack.c.h.b16 %v2882
    %v4305 = vunpack.c.l.b16 %v2883
    %v4306 = vunpack.c.h.b16 %v2883
    %v4307 = vunpack.c.l.b16 %v2884
    %v4308 = vunpack.c.h.b16 %v2884
    %v4309 = vunpack.c.l.b16 %v2885
    %v4310 = vunpack.c.h.b16 %v2885
    %v4311 = vunpack.c.l.b16 %v2886
    %v4312 = vunpack.c.h.b16 %v2886
    %v4313 = vpack.c.b16 %v4189, %v4185
    %v4314 = vpack.c.b16 %v4190, %v4186
    %v4315 = vpack.c.b16 %v4191, %v4187
    %v4316 = vpack.c.b16 %v4192, %v4188
    %v4317 = vpack.c.b16 %v4197, %v4193
    %v4318 = vpack.c.b16 %v4198, %v4194
    %v4319 = vpack.c.b16 %v4199, %v4195
    %v4320 = vpack.c.b16 %v4200, %v4196
    %v4321 = vpack.c.b16 %v4205, %v4201
    %v4322 = vpack.c.b16 %v4206, %v4202
    %v4323 = vpack.c.b16 %v4207, %v4203
    %v4324 = vpack.c.b16 %v4208, %v4204
    %v4325 = vpack.c.b16 %v4213, %v4209
    %v4326 = vpack.c.b16 %v4214, %v4210
    %v4327 = vpack.c.b16 %v4215, %v4211
    %v4328 = vpack.c.b16 %v4216, %v4212
    %v4329 = vpack.c.b16 %v4221, %v4217
    %v4330 = vpack.c.b16 %v4222, %v4218
    %v4331 = vpack.c.b16 %v4223, %v4219
    %v4332 = vpack.c.b16 %v4224, %v4220
    %v4333 = vpack.c.b16 %v4229, %v4225
    %v4334 = vpack.c.b16 %v4230, %v4226
    %v4335 = vpack.c.b16 %v4231, %v4227
    %v4336 = vpack.c.b16 %v4232, %v4228
    %v4337 = vpack.c.b16 %v4237, %v4233
    %v4338 = vpack.c.b16 %v4238, %v4234
    %v4339 = vpack.c.b16 %v4239, %v4235
    %v4340 = vpack.c.b16 %v4240, %v4236
    %v4341 = vpack.c.b16 %v4245, %v4241
    %v4342 = vpack.c.b16 %v4246, %v4242
    %v4343 = vpack.c.b16 %v4247, %v4243
    %v4344 = vpack.c.b16 %v4248, %v4244
    %v4345 = vpack.c.b16 %v4253, %v4249
    %v4346 = vpack.c.b16 %v4254, %v4250
    %v4347 = vpack.c.b16 %v4255, %v4251
    %v4348 = vpack.c.b16 %v4256, %v4252
    %v4349 = vpack.c.b16 %v4261, %v4257
    %v4350 = vpack.c.b16 %v4262, %v4258
    %v4351 = vpack.c.b16 %v4263, %v4259
    %v4352 = vpack.c.b16 %v4264, %v4260
    %v4353 = vpack.c.b16 %v4269, %v4265
    %v4354 = vpack.c.b16 %v4270, %v4266
    %v4355 = vpack.c.b16 %v4271, %v4267
    %v4356 = vpack.c.b16 %v4272, %v4268
    %v4357 = vpack.c.b16 %v4277, %v4273
    %v4358 = vpack.c.b16 %v4278, %v4274
    %v4359 = vpack.c.b16 %v4279, %v4275
    %v4360 = vpack.c.b16 %v4280, %v4276
    %v4361 = vpack.c.b16 %v4285, %v4281
    %v4362 = vpack.c.b16 %v4286, %v4282
    %v4363 = vpack.c.b16 %v4287, %v4283
    %v4364 = vpack.c.b16 %v4288, %v4284
    %v4365 = vpack.c.b16 %v4293, %v4289
    %v4366 = vpack.c.b16 %v4294, %v4290
    %v4367 = vpack.c.b16 %v4295, %v4291
    %v4368 = vpack.c.b16 %v4296, %v4292
    %v4369 = vpack.c.b16 %v4301, %v4297
    %v4370 = vpack.c.b16 %v4302, %v4298
    %v4371 = vpack.c.b16 %v4303, %v4299
    %v4372 = vpack.c.b16 %v4304, %v4300
    %v4373 = vpack.c.b16 %v4309, %v4305
    %v4374 = vpack.c.b16 %v4310, %v4306
    %v4375 = vpack.c.b16 %v4311, %v4307
    %v4376 = vpack.c.b16 %v4312, %v4308
    %4441 = vmatpush.bf16.msra.mxu0 %v4341
    %4442 = vmatpush.bf16.msra.mxu0 %v4337
    %4443 = vmatpush.bf16.msra.mxu0 %v4333
    %4444 = vmatpush.bf16.msra.mxu0 %v4329
    %4445 = vmatpush.bf16.msra.mxu0 %v4325
    %4446 = vmatpush.bf16.msra.mxu0 %v4321
    %4447 = vmatpush.bf16.msra.mxu0 %v4317
    %4448 = vmatpush.bf16.msra.mxu0 %v4313
    %4449 = vmatmul.bf16.gmra.mxu0 %v4110
    %v4450 = vpop.f32.mrf.mxu0
    %v4451 = vadd.f32 %v4113, %v4450
    %v4452 = vpop.f32.mrf.mxu0
    %v4453 = vadd.f32 %v4113, %v4452
    %4454 = vdwg.mxu0
    %4455 = vmatpush.bf16.msra.mxu0 %v4373
    %4456 = vmatpush.bf16.msra.mxu0 %v4369
    %4457 = vmatpush.bf16.msra.mxu0 %v4365
    %4458 = vmatpush.bf16.msra.mxu0 %v4361
    %4459 = vmatpush.bf16.msra.mxu0 %v4357
    %4460 = vmatpush.bf16.msra.mxu0 %v4353
    %4461 = vmatpush.bf16.msra.mxu0 %v4349
    %4462 = vmatpush.bf16.msra.mxu0 %v4345
    %4463 = vmatmul.bf16.gmra.mxu0 %v4111
    %v4464 = vpop.f32.mrf.mxu0
    %v4465 = vadd.f32 %v4451, %v4464
    %v4466 = vpop.f32.mrf.mxu0
    %v4467 = vadd.f32 %v4453, %v4466
    %4468 = vdwg.mxu0
    %4469 = vmatpush.bf16.msra.mxu0 %v4342
    %4470 = vmatpush.bf16.msra.mxu0 %v4338
    %4471 = vmatpush.bf16.msra.mxu0 %v4334
    %4472 = vmatpush.bf16.msra.mxu0 %v4330
    %4473 = vmatpush.bf16.msra.mxu0 %v4326
    %4474 = vmatpush.bf16.msra.mxu0 %v4322
    %4475 = vmatpush.bf16.msra.mxu0 %v4318
    %4476 = vmatpush.bf16.msra.mxu0 %v4314
    %4477 = vmatmul.bf16.gmra.mxu0 %v4110
    %v4478 = vpop.f32.mrf.mxu0
    %v4479 = vadd.f32 %v4114, %v4478
    %v4480 = vpop.f32.mrf.mxu0
    %v4481 = vadd.f32 %v4114, %v4480
    %4482 = vdwg.mxu0
    %4483 = vmatpush.bf16.msra.mxu0 %v4374
    %4484 = vmatpush.bf16.msra.mxu0 %v4370
    %4485 = vmatpush.bf16.msra.mxu0 %v4366
    %4486 = vmatpush.bf16.msra.mxu0 %v4362
    %4487 = vmatpush.bf16.msra.mxu0 %v4358
    %4488 = vmatpush.bf16.msra.mxu0 %v4354
    %4489 = vmatpush.bf16.msra.mxu0 %v4350
    %4490 = vmatpush.bf16.msra.mxu0 %v4346
    %4491 = vmatmul.bf16.gmra.mxu0 %v4111
    %v4492 = vpop.f32.mrf.mxu0
    %v4493 = vadd.f32 %v4479, %v4492
    %v4494 = vpop.f32.mrf.mxu0
    %v4495 = vadd.f32 %v4481, %v4494
    %4496 = vdwg.mxu0
    %4497 = vmatpush.bf16.msra.mxu0 %v4343
    %4498 = vmatpush.bf16.msra.mxu0 %v4339
    %4499 = vmatpush.bf16.msra.mxu0 %v4335
    %4500 = vmatpush.bf16.msra.mxu0 %v4331
    %4501 = vmatpush.bf16.msra.mxu0 %v4327
    %4502 = vmatpush.bf16.msra.mxu0 %v4323
    %4503 = vmatpush.bf16.msra.mxu0 %v4319
    %4504 = vmatpush.bf16.msra.mxu0 %v4315
    %4505 = vmatmul.bf16.gmra.mxu0 %v4110
    %v4506 = vpop.f32.mrf.mxu0
    %v4507 = vadd.f32 %v4115, %v4506
    %v4508 = vpop.f32.mrf.mxu0
    %v4509 = vadd.f32 %v4115, %v4508
    %4510 = vdwg.mxu0
    %4511 = vmatpush.bf16.msra.mxu0 %v4375
    %4512 = vmatpush.bf16.msra.mxu0 %v4371
    %4513 = vmatpush.bf16.msra.mxu0 %v4367
    %4514 = vmatpush.bf16.msra.mxu0 %v4363
    %4515 = vmatpush.bf16.msra.mxu0 %v4359
    %4516 = vmatpush.bf16.msra.mxu0 %v4355
    %4517 = vmatpush.bf16.msra.mxu0 %v4351
    %4518 = vmatpush.bf16.msra.mxu0 %v4347
    %4519 = vmatmul.bf16.gmra.mxu0 %v4111
    %v4520 = vpop.f32.mrf.mxu0
    %v4521 = vadd.f32 %v4507, %v4520
    %v4522 = vpop.f32.mrf.mxu0
    %v4523 = vadd.f32 %v4509, %v4522
    %4524 = vdwg.mxu0
    %4525 = vmatpush.bf16.msra.mxu0 %v4344
    %4526 = vmatpush.bf16.msra.mxu0 %v4340
    %4527 = vmatpush.bf16.msra.mxu0 %v4336
    %4528 = vmatpush.bf16.msra.mxu0 %v4332
    %4529 = vmatpush.bf16.msra.mxu0 %v4328
    %4530 = vmatpush.bf16.msra.mxu0 %v4324
    %4531 = vmatpush.bf16.msra.mxu0 %v4320
    %4532 = vmatpush.bf16.msra.mxu0 %v4316
    %4533 = vmatmul.bf16.gmra.mxu0 %v4110
    %v4534 = vpop.f32.mrf.mxu0
    %v4535 = vadd.f32 %v4116, %v4534
    %v4536 = vpop.f32.mrf.mxu0
    %v4537 = vadd.f32 %v4116, %v4536
    %4538 = vdwg.mxu0
    %4539 = vmatpush.bf16.msra.mxu0 %v4376
    %4540 = vmatpush.bf16.msra.mxu0 %v4372
    %4541 = vmatpush.bf16.msra.mxu0 %v4368
    %4542 = vmatpush.bf16.msra.mxu0 %v4364
    %4543 = vmatpush.bf16.msra.mxu0 %v4360
    %4544 = vmatpush.bf16.msra.mxu0 %v4356
    %4545 = vmatpush.bf16.msra.mxu0 %v4352
    %4546 = vmatpush.bf16.msra.mxu0 %v4348
    %4547 = vmatmul.bf16.gmra.mxu0 %v4111
    %v4548 = vpop.f32.mrf.mxu0
    %v4549 = vadd.f32 %v4535, %v4548
    %v4550 = vpop.f32.mrf.mxu0
    %v4551 = vadd.f32 %v4537, %v4550
    %4552 = vdwg.mxu0
    %v4553 = vmul.f32 %v4465, 0.5
    %v4554 = vmul.f32 %v4493, 0.5
    %v4555 = vmul.f32 %v4521, 0.5
    %v4556 = vmul.f32 %v4549, 0.5
    %v4557 = vmul.f32 %v4467, 0.5
    %v4558 = vmul.f32 %v4495, 0.5
    %v4559 = vmul.f32 %v4523, 0.5
    %v4560 = vmul.f32 %v4551, 0.5
    %v4561 = vmul.f32 %v4465, 0.044715
    %v4562 = vmul.f32 %v4493, 0.044715
    %v4563 = vmul.f32 %v4521, 0.044715
    %v4564 = vmul.f32 %v4549, 0.044715
    %v4565 = vmul.f32 %v4467, 0.044715
    %v4566 = vmul.f32 %v4495, 0.044715
    %v4567 = vmul.f32 %v4523, 0.044715
    %v4568 = vmul.f32 %v4551, 0.044715
    %v4569 = vmul.f32 %v4561, %v4465
    %v4570 = vmul.f32 %v4562, %v4493
    %v4571 = vmul.f32 %v4563, %v4521
    %v4572 = vmul.f32 %v4564, %v4549
    %v4573 = vmul.f32 %v4565, %v4467
    %v4574 = vmul.f32 %v4566, %v4495
    %v4575 = vmul.f32 %v4567, %v4523
    %v4576 = vmul.f32 %v4568, %v4551
    %v4577 = vmul.f32 %v4569, %v4465
    %v4578 = vmul.f32 %v4570, %v4493
    %v4579 = vmul.f32 %v4571, %v4521
    %v4580 = vmul.f32 %v4572, %v4549
    %v4581 = vmul.f32 %v4573, %v4467
    %v4582 = vmul.f32 %v4574, %v4495
    %v4583 = vmul.f32 %v4575, %v4523
    %v4584 = vmul.f32 %v4576, %v4551
    %v4585 = vadd.f32 %v4465, %v4577
    %v4586 = vadd.f32 %v4493, %v4578
    %v4587 = vadd.f32 %v4521, %v4579
    %v4588 = vadd.f32 %v4549, %v4580
    %v4589 = vadd.f32 %v4467, %v4581
    %v4590 = vadd.f32 %v4495, %v4582
    %v4591 = vadd.f32 %v4523, %v4583
    %v4592 = vadd.f32 %v4551, %v4584
    %v4593 = vmul.f32 %v4585, 0.7978846
    %v4594 = vmul.f32 %v4586, 0.7978846
    %v4595 = vmul.f32 %v4587, 0.7978846
    %v4596 = vmul.f32 %v4588, 0.7978846
    %v4597 = vmul.f32 %v4589, 0.7978846
    %v4598 = vmul.f32 %v4590, 0.7978846
    %v4599 = vmul.f32 %v4591, 0.7978846
    %v4600 = vmul.f32 %v4592, 0.7978846
    %v4601 = vtanh.pop %v4593
    %v4602 = vtanh.pop %v4594
    %v4603 = vtanh.pop %v4595
    %v4604 = vtanh.pop %v4596
    %v4605 = vtanh.pop %v4597
    %v4606 = vtanh.pop %v4598
    %v4607 = vtanh.pop %v4599
    %v4608 = vtanh.pop %v4600
    %v4609 = vadd.f32 %v4601, 1.0
    %v4610 = vadd.f32 %v4602, 1.0
    %v4611 = vadd.f32 %v4603, 1.0
    %v4612 = vadd.f32 %v4604, 1.0
    %v4613 = vadd.f32 %v4605, 1.0
    %v4614 = vadd.f32 %v4606, 1.0
    %v4615 = vadd.f32 %v4607, 1.0
    %v4616 = vadd.f32 %v4608, 1.0
    %v4617 = vmul.f32 %v4553, %v4609
    %v4618 = vmul.f32 %v4554, %v4610
    %v4619 = vmul.f32 %v4555, %v4611
    %v4620 = vmul.f32 %v4556, %v4612
    %v4621 = vmul.f32 %v4557, %v4613
    %v4622 = vmul.f32 %v4558, %v4614
    %v4623 = vmul.f32 %v4559, %v4615
    %v4624 = vmul.f32 %v4560, %v4616
    %v4625 = vpack.c.bf16 %v4621, %v4617
    %v4626 = vpack.c.bf16 %v4622, %v4618
    %v4627 = vpack.c.bf16 %v4623, %v4619
    %v4628 = vpack.c.bf16 %v4624, %v4620
    %v4693 = vunpack.c.l.b16 %v2890
    %v4694 = vunpack.c.h.b16 %v2890
    %v4695 = vunpack.c.l.b16 %v2891
    %v4696 = vunpack.c.h.b16 %v2891
    %v4697 = vunpack.c.l.b16 %v2892
    %v4698 = vunpack.c.h.b16 %v2892
    %v4699 = vunpack.c.l.b16 %v2893
    %v4700 = vunpack.c.h.b16 %v2893
    %v4701 = vunpack.c.l.b16 %v2894
    %v4702 = vunpack.c.h.b16 %v2894
    %v4703 = vunpack.c.l.b16 %v2895
    %v4704 = vunpack.c.h.b16 %v2895
    %v4705 = vunpack.c.l.b16 %v2896
    %v4706 = vunpack.c.h.b16 %v2896
    %v4707 = vunpack.c.l.b16 %v2897
    %v4708 = vunpack.c.h.b16 %v2897
    %v4709 = vunpack.c.l.b16 %v2898
    %v4710 = vunpack.c.h.b16 %v2898
    %v4711 = vunpack.c.l.b16 %v2899
    %v4712 = vunpack.c.h.b16 %v2899
    %v4713 = vunpack.c.l.b16 %v2900
    %v4714 = vunpack.c.h.b16 %v2900
    %v4715 = vunpack.c.l.b16 %v2901
    %v4716 = vunpack.c.h.b16 %v2901
    %v4717 = vunpack.c.l.b16 %v2902
    %v4718 = vunpack.c.h.b16 %v2902
    %v4719 = vunpack.c.l.b16 %v2903
    %v4720 = vunpack.c.h.b16 %v2903
    %v4721 = vunpack.c.l.b16 %v2904
    %v4722 = vunpack.c.h.b16 %v2904
    %v4723 = vunpack.c.l.b16 %v2905
    %v4724 = vunpack.c.h.b16 %v2905
    %v4725 = vunpack.c.l.b16 %v2906
    %v4726 = vunpack.c.h.b16 %v2906
    %v4727 = vunpack.c.l.b16 %v2907
    %v4728 = vunpack.c.h.b16 %v2907
    %v4729 = vunpack.c.l.b16 %v2908
    %v4730 = vunpack.c.h.b16 %v2908
    %v4731 = vunpack.c.l.b16 %v2909
    %v4732 = vunpack.c.h.b16 %v2909
    %v4733 = vunpack.c.l.b16 %v2910
    %v4734 = vunpack.c.h.b16 %v2910
    %v4735 = vunpack.c.l.b16 %v2911
    %v4736 = vunpack.c.h.b16 %v2911
    %v4737 = vunpack.c.l.b16 %v2912
    %v4738 = vunpack.c.h.b16 %v2912
    %v4739 = vunpack.c.l.b16 %v2913
    %v4740 = vunpack.c.h.b16 %v2913
    %v4741 = vunpack.c.l.b16 %v2914
    %v4742 = vunpack.c.h.b16 %v2914
    %v4743 = vunpack.c.l.b16 %v2915
    %v4744 = vunpack.c.h.b16 %v2915
    %v4745 = vunpack.c.l.b16 %v2916
    %v4746 = vunpack.c.h.b16 %v2916
    %v4747 = vunpack.c.l.b16 %v2917
    %v4748 = vunpack.c.h.b16 %v2917
    %v4749 = vunpack.c.l.b16 %v2918
    %v4750 = vunpack.c.h.b16 %v2918
    %v4751 = vunpack.c.l.b16 %v2919
    %v4752 = vunpack.c.h.b16 %v2919
    %v4753 = vunpack.c.l.b16 %v2920
    %v4754 = vunpack.c.h.b16 %v2920
    %v4755 = vunpack.c.l.b16 %v2921
    %v4756 = vunpack.c.h.b16 %v2921
    %v4757 = vunpack.c.l.b16 %v2922
    %v4758 = vunpack.c.h.b16 %v2922
    %v4759 = vunpack.c.l.b16 %v2923
    %v4760 = vunpack.c.h.b16 %v2923
    %v4761 = vunpack.c.l.b16 %v2924
    %v4762 = vunpack.c.h.b16 %v2924
    %v4763 = vunpack.c.l.b16 %v2925
    %v4764 = vunpack.c.h.b16 %v2925
    %v4765 = vunpack.c.l.b16 %v2926
    %v4766 = vunpack.c.h.b16 %v2926
    %v4767 = vunpack.c.l.b16 %v2927
    %v4768 = vunpack.c.h.b16 %v2927
    %v4769 = vunpack.c.l.b16 %v2928
    %v4770 = vunpack.c.h.b16 %v2928
    %v4771 = vunpack.c.l.b16 %v2929
    %v4772 = vunpack.c.h.b16 %v2929
    %v4773 = vunpack.c.l.b16 %v2930
    %v4774 = vunpack.c.h.b16 %v2930
    %v4775 = vunpack.c.l.b16 %v2931
    %v4776 = vunpack.c.h.b16 %v2931
    %v4777 = vunpack.c.l.b16 %v2932
    %v4778 = vunpack.c.h.b16 %v2932
    %v4779 = vunpack.c.l.b16 %v2933
    %v4780 = vunpack.c.h.b16 %v2933
    %v4781 = vunpack.c.l.b16 %v2934
    %v4782 = vunpack.c.h.b16 %v2934
    %v4783 = vunpack.c.l.b16 %v2935
    %v4784 = vunpack.c.h.b16 %v2935
    %v4785 = vunpack.c.l.b16 %v2936
    %v4786 = vunpack.c.h.b16 %v2936
    %v4787 = vunpack.c.l.b16 %v2937
    %v4788 = vunpack.c.h.b16 %v2937
    %v4789 = vunpack.c.l.b16 %v2938
    %v4790 = vunpack.c.h.b16 %v2938
    %v4791 = vunpack.c.l.b16 %v2939
    %v4792 = vunpack.c.h.b16 %v2939
    %v4793 = vunpack.c.l.b16 %v2940
    %v4794 = vunpack.c.h.b16 %v2940
    %v4795 = vunpack.c.l.b16 %v2941
    %v4796 = vunpack.c.h.b16 %v2941
    %v4797 = vunpack.c.l.b16 %v2942
    %v4798 = vunpack.c.h.b16 %v2942
    %v4799 = vunpack.c.l.b16 %v2943
    %v4800 = vunpack.c.h.b16 %v2943
    %v4801 = vunpack.c.l.b16 %v2944
    %v4802 = vunpack.c.h.b16 %v2944
    %v4803 = vunpack.c.l.b16 %v2945
    %v4804 = vunpack.c.h.b16 %v2945
    %v4805 = vunpack.c.l.b16 %v2946
    %v4806 = vunpack.c.h.b16 %v2946
    %v4807 = vunpack.c.l.b16 %v2947
    %v4808 = vunpack.c.h.b16 %v2947
    %v4809 = vunpack.c.l.b16 %v2948
    %v4810 = vunpack.c.h.b16 %v2948
    %v4811 = vunpack.c.l.b16 %v2949
    %v4812 = vunpack.c.h.b16 %v2949
    %v4813 = vunpack.c.l.b16 %v2950
    %v4814 = vunpack.c.h.b16 %v2950
    %v4815 = vunpack.c.l.b16 %v2951
    %v4816 = vunpack.c.h.b16 %v2951
    %v4817 = vunpack.c.l.b16 %v2952
    %v4818 = vunpack.c.h.b16 %v2952
    %v4819 = vunpack.c.l.b16 %v2953
    %v4820 = vunpack.c.h.b16 %v2953
    %v4821 = vpack.c.b16 %v4695, %v4693
    %v4822 = vpack.c.b16 %v4696, %v4694
    %v4823 = vpack.c.b16 %v4699, %v4697
    %v4824 = vpack.c.b16 %v4700, %v4698
    %v4825 = vpack.c.b16 %v4703, %v4701
    %v4826 = vpack.c.b16 %v4704, %v4702
    %v4827 = vpack.c.b16 %v4707, %v4705
    %v4828 = vpack.c.b16 %v4708, %v4706
    %v4829 = vpack.c.b16 %v4711, %v4709
    %v4830 = vpack.c.b16 %v4712, %v4710
    %v4831 = vpack.c.b16 %v4715, %v4713
    %v4832 = vpack.c.b16 %v4716, %v4714
    %v4833 = vpack.c.b16 %v4719, %v4717
    %v4834 = vpack.c.b16 %v4720, %v4718
    %v4835 = vpack.c.b16 %v4723, %v4721
    %v4836 = vpack.c.b16 %v4724, %v4722
    %v4837 = vpack.c.b16 %v4727, %v4725
    %v4838 = vpack.c.b16 %v4728, %v4726
    %v4839 = vpack.c.b16 %v4731, %v4729
    %v4840 = vpack.c.b16 %v4732, %v4730
    %v4841 = vpack.c.b16 %v4735, %v4733
    %v4842 = vpack.c.b16 %v4736, %v4734
    %v4843 = vpack.c.b16 %v4739, %v4737
    %v4844 = vpack.c.b16 %v4740, %v4738
    %v4845 = vpack.c.b16 %v4743, %v4741
    %v4846 = vpack.c.b16 %v4744, %v4742
    %v4847 = vpack.c.b16 %v4747, %v4745
    %v4848 = vpack.c.b16 %v4748, %v4746
    %v4849 = vpack.c.b16 %v4751, %v4749
    %v4850 = vpack.c.b16 %v4752, %v4750
    %v4851 = vpack.c.b16 %v4755, %v4753
    %v4852 = vpack.c.b16 %v4756, %v4754
    %v4853 = vpack.c.b16 %v4759, %v4757
    %v4854 = vpack.c.b16 %v4760, %v4758
    %v4855 = vpack.c.b16 %v4763, %v4761
    %v4856 = vpack.c.b16 %v4764, %v4762
    %v4857 = vpack.c.b16 %v4767, %v4765
    %v4858 = vpack.c.b16 %v4768, %v4766
    %v4859 = vpack.c.b16 %v4771, %v4769
    %v4860 = vpack.c.b16 %v4772, %v4770
    %v4861 = vpack.c.b16 %v4775, %v4773
    %v4862 = vpack.c.b16 %v4776, %v4774
    %v4863 = vpack.c.b16 %v4779, %v4777
    %v4864 = vpack.c.b16 %v4780, %v4778
    %v4865 = vpack.c.b16 %v4783, %v4781
    %v4866 = vpack.c.b16 %v4784, %v4782
    %v4867 = vpack.c.b16 %v4787, %v4785
    %v4868 = vpack.c.b16 %v4788, %v4786
    %v4869 = vpack.c.b16 %v4791, %v4789
    %v4870 = vpack.c.b16 %v4792, %v4790
    %v4871 = vpack.c.b16 %v4795, %v4793
    %v4872 = vpack.c.b16 %v4796, %v4794
    %v4873 = vpack.c.b16 %v4799, %v4797
    %v4874 = vpack.c.b16 %v4800, %v4798
    %v4875 = vpack.c.b16 %v4803, %v4801
    %v4876 = vpack.c.b16 %v4804, %v4802
    %v4877 = vpack.c.b16 %v4807, %v4805
    %v4878 = vpack.c.b16 %v4808, %v4806
    %v4879 = vpack.c.b16 %v4811, %v4809
    %v4880 = vpack.c.b16 %v4812, %v4810
    %v4881 = vpack.c.b16 %v4815, %v4813
    %v4882 = vpack.c.b16 %v4816, %v4814
    %v4883 = vpack.c.b16 %v4819, %v4817
    %v4884 = vpack.c.b16 %v4820, %v4818
    %4949 = vmatpush.bf16.msra.mxu0 %v4835
    %4950 = vmatpush.bf16.msra.mxu0 %v4833
    %4951 = vmatpush.bf16.msra.mxu0 %v4831
    %4952 = vmatpush.bf16.msra.mxu0 %v4829
    %4953 = vmatpush.bf16.msra.mxu0 %v4827
    %4954 = vmatpush.bf16.msra.mxu0 %v4825
    %4955 = vmatpush.bf16.msra.mxu0 %v4823
    %4956 = vmatpush.bf16.msra.mxu0 %v4821
    %4957 = vmatmul.bf16.gmra.mxu0 %v4625
    %v4958 = vpop.f32.mrf.mxu0
    %v4959 = vadd.f32 0.0, %v4958
    %v4960 = vpop.f32.mrf.mxu0
    %v4961 = vadd.f32 0.0, %v4960
    %4962 = vdwg.mxu0
    %4963 = vmatpush.bf16.msra.mxu0 %v4851
    %4964 = vmatpush.bf16.msra.mxu0 %v4849
    %4965 = vmatpush.bf16.msra.mxu0 %v4847
    %4966 = vmatpush.bf16.msra.mxu0 %v4845
    %4967 = vmatpush.bf16.msra.mxu0 %v4843
    %4968 = vmatpush.bf16.msra.mxu0 %v4841
    %4969 = vmatpush.bf16.msra.mxu0 %v4839
    %4970 = vmatpush.bf16.msra.mxu0 %v4837
    %4971 = vmatmul.bf16.gmra.mxu0 %v4626
    %v4972 = vpop.f32.mrf.mxu0
    %v4973 = vadd.f32 %v4959, %v4972
    %v4974 = vpop.f32.mrf.mxu0
    %v4975 = vadd.f32 %v4961, %v4974
    %4976 = vdwg.mxu0
    %4977 = vmatpush.bf16.msra.mxu0 %v4867
    %4978 = vmatpush.bf16.msra.mxu0 %v4865
    %4979 = vmatpush.bf16.msra.mxu0 %v4863
    %4980 = vmatpush.bf16.msra.mxu0 %v4861
    %4981 = vmatpush.bf16.msra.mxu0 %v4859
    %4982 = vmatpush.bf16.msra.mxu0 %v4857
    %4983 = vmatpush.bf16.msra.mxu0 %v4855
    %4984 = vmatpush.bf16.msra.mxu0 %v4853
    %4985 = vmatmul.bf16.gmra.mxu0 %v4627
    %v4986 = vpop.f32.mrf.mxu0
    %v4987 = vadd.f32 %v4973, %v4986
    %v4988 = vpop.f32.mrf.mxu0
    %v4989 = vadd.f32 %v4975, %v4988
    %4990 = vdwg.mxu0
    %4991 = vmatpush.bf16.msra.mxu0 %v4883
    %4992 = vmatpush.bf16.msra.mxu0 %v4881
    %4993 = vmatpush.bf16.msra.mxu0 %v4879
    %4994 = vmatpush.bf16.msra.mxu0 %v4877
    %4995 = vmatpush.bf16.msra.mxu0 %v4875
    %4996 = vmatpush.bf16.msra.mxu0 %v4873
    %4997 = vmatpush.bf16.msra.mxu0 %v4871
    %4998 = vmatpush.bf16.msra.mxu0 %v4869
    %4999 = vmatmul.bf16.gmra.mxu0 %v4628
    %v5000 = vpop.f32.mrf.mxu0
    %v5001 = vadd.f32 %v4987, %v5000
    %v5002 = vpop.f32.mrf.mxu0
    %v5003 = vadd.f32 %v4989, %v5002
    %5004 = vdwg.mxu0
    %5005 = vmatpush.bf16.msra.mxu0 %v4836
    %5006 = vmatpush.bf16.msra.mxu0 %v4834
    %5007 = vmatpush.bf16.msra.mxu0 %v4832
    %5008 = vmatpush.bf16.msra.mxu0 %v4830
    %5009 = vmatpush.bf16.msra.mxu0 %v4828
    %5010 = vmatpush.bf16.msra.mxu0 %v4826
    %5011 = vmatpush.bf16.msra.mxu0 %v4824
    %5012 = vmatpush.bf16.msra.mxu0 %v4822
    %5013 = vmatmul.bf16.gmra.mxu0 %v4625
    %v5014 = vpop.f32.mrf.mxu0
    %v5015 = vadd.f32 0.0, %v5014
    %v5016 = vpop.f32.mrf.mxu0
    %v5017 = vadd.f32 0.0, %v5016
    %5018 = vdwg.mxu0
    %5019 = vmatpush.bf16.msra.mxu0 %v4852
    %5020 = vmatpush.bf16.msra.mxu0 %v4850
    %5021 = vmatpush.bf16.msra.mxu0 %v4848
    %5022 = vmatpush.bf16.msra.mxu0 %v4846
    %5023 = vmatpush.bf16.msra.mxu0 %v4844
    %5024 = vmatpush.bf16.msra.mxu0 %v4842
    %5025 = vmatpush.bf16.msra.mxu0 %v4840
    %5026 = vmatpush.bf16.msra.mxu0 %v4838
    %5027 = vmatmul.bf16.gmra.mxu0 %v4626
    %v5028 = vpop.f32.mrf.mxu0
    %v5029 = vadd.f32 %v5015, %v5028
    %v5030 = vpop.f32.mrf.mxu0
    %v5031 = vadd.f32 %v5017, %v5030
    %5032 = vdwg.mxu0
    %5033 = vmatpush.bf16.msra.mxu0 %v4868
    %5034 = vmatpush.bf16.msra.mxu0 %v4866
    %5035 = vmatpush.bf16.msra.mxu0 %v4864
    %5036 = vmatpush.bf16.msra.mxu0 %v4862
    %5037 = vmatpush.bf16.msra.mxu0 %v4860
    %5038 = vmatpush.bf16.msra.mxu0 %v4858
    %5039 = vmatpush.bf16.msra.mxu0 %v4856
    %5040 = vmatpush.bf16.msra.mxu0 %v4854
    %5041 = vmatmul.bf16.gmra.mxu0 %v4627
    %v5042 = vpop.f32.mrf.mxu0
    %v5043 = vadd.f32 %v5029, %v5042
    %v5044 = vpop.f32.mrf.mxu0
    %v5045 = vadd.f32 %v5031, %v5044
    %5046 = vdwg.mxu0
    %5047 = vmatpush.bf16.msra.mxu0 %v4884
    %5048 = vmatpush.bf16.msra.mxu0 %v4882
    %5049 = vmatpush.bf16.msra.mxu0 %v4880
    %5050 = vmatpush.bf16.msra.mxu0 %v4878
    %5051 = vmatpush.bf16.msra.mxu0 %v4876
    %5052 = vmatpush.bf16.msra.mxu0 %v4874
    %5053 = vmatpush.bf16.msra.mxu0 %v4872
    %5054 = vmatpush.bf16.msra.mxu0 %v4870
    %5055 = vmatmul.bf16.gmra.mxu0 %v4628
    %v5056 = vpop.f32.mrf.mxu0
    %v5057 = vadd.f32 %v5043, %v5056
    %v5058 = vpop.f32.mrf.mxu0
    %v5059 = vadd.f32 %v5045, %v5058
    %5060 = vdwg.mxu0
    %v5061 = vadd.f32 %v4106, %v5001
    %v5062 = vadd.f32 %v4107, %v5057
    %v5063 = vadd.f32 %v4108, %v5003
    %v5064 = vadd.f32 %v4109, %v5059
    %v5066 = vperm.slane %v2955, 0
    %v5067 = vperm.slane %v2955, 1
    %v5070 = vadd.f32 %v5061, %v5066
    %v5071 = vadd.f32 %v5062, %v5067
    %v5072 = vadd.f32 %v5063, %v5066
    %v5073 = vadd.f32 %v5064, %v5067
    %v5074 = vadd.f32 %v5070, %v5071
    %5075 = vadd.xlane.f32.xlu0 %v5074
    %v5076 = vpop.xlane.xlu0 %5075
    %v5077 = vadd.f32 %v5072, %v5073
    %5078 = vadd.xlane.f32.xlu0 %v5077
    %v5079 = vpop.xlane.xlu0 %5078
    %v5080 = vmul.f32 %v5076, %v157
    %v5081 = vmul.f32 %v5079, %v157
    %v5082 = vsub.f32 %v5070, %v5080
    %v5083 = vsub.f32 %v5071, %v5080
    %v5084 = vsub.f32 %v5072, %v5081
    %v5085 = vsub.f32 %v5073, %v5081
    %v5086 = vmul.f32 %v5082, %v5082
    %v5087 = vmul.f32 %v5083, %v5083
    %v5088 = vmul.f32 %v5084, %v5084
    %v5089 = vmul.f32 %v5085, %v5085
    %v5090 = vadd.f32 %v5086, %v5087
    %5091 = vadd.xlane.f32.xlu0 %v5090
    %v5092 = vpop.xlane.xlu0 %5091
    %v5093 = vadd.f32 %v5088, %v5089
    %5094 = vadd.xlane.f32.xlu0 %v5093
    %v5095 = vpop.xlane.xlu0 %5094
    %v5096 = vmul.f32 %v5092, %v157
    %v5097 = vmul.f32 %v5095, %v157
    %v5098 = vadd.f32 %v5096, 1e-05
    %v5099 = vadd.f32 %v5097, 1e-05
    %v5100 = vrsqrt.pop %v5098
    %v5101 = vmul.f32 %v5100, %v5098
    %v5102 = vmul.f32 %v5101, %v5100
    %v5103 = vmul.f32 0.5, %v5102
    %v5104 = vsub.f32 1.5, %v5103
    %v5105 = vmul.f32 %v5100, %v5104
    %vm5106 = vweird.f32 %v5098
    %vm5107 = vweird.f32 %v5100
    %vm5108 = vmor %vm5106, %vm5107
    %v5109 = vsel %vm5108, %v5100, %v5105
    %v5110 = vrsqrt.pop %v5099
    %v5111 = vmul.f32 %v5110, %v5099
    %v5112 = vmul.f32 %v5111, %v5110
    %v5113 = vmul.f32 0.5, %v5112
    %v5114 = vsub.f32 1.5, %v5113
    %v5115 = vmul.f32 %v5110, %v5114
    %vm5116 = vweird.f32 %v5099
    %vm5117 = vweird.f32 %v5110
    %vm5118 = vmor %vm5116, %vm5117
    %v5119 = vsel %vm5118, %v5110, %v5115
    %v5120 = vmul.f32 %v5082, %v5109
    %v5121 = vmul.f32 %v5083, %v5109
    %v5122 = vmul.f32 %v5084, %v5119
    %v5123 = vmul.f32 %v5085, %v5119
    %v5125 = vperm.slane %v2957, 0
    %v5126 = vperm.slane %v2957, 1
    %v5129 = vmul.f32 %v5120, %v5125
    %v5130 = vmul.f32 %v5121, %v5126
    %v5131 = vmul.f32 %v5122, %v5125
    %v5132 = vmul.f32 %v5123, %v5126
    %v5134 = vperm.slane %v2959, 0
    %v5135 = vperm.slane %v2959, 1
    %v5138 = vadd.f32 %v5129, %v5134
    %v5139 = vadd.f32 %v5130, %v5135
    %v5140 = vadd.f32 %v5131, %v5134
    %v5141 = vadd.f32 %v5132, %v5135
    %v5142 = vld [vmem:[%s2] sm:$0x3]
    %v5143 = vld [vmem:[#allocation10] sm:$0xff]
    %v5144 = vld [vmem:[#allocation10 + $0x8] sm:$0xff]
    %v5145 = vld [vmem:[#allocation10 + $0x10] sm:$0xff]
    %v5146 = vld [vmem:[#allocation10 + $0x18] sm:$0xff]
    %v5147 = vld [vmem:[#allocation10 + $0x20] sm:$0xff]
    %v5148 = vld [vmem:[#allocation10 + $0x28] sm:$0xff]
    %v5149 = vld [vmem:[#allocation10 + $0x30] sm:$0xff]
    %v5150 = vld [vmem:[#allocation10 + $0x38] sm:$0xff]
    %v5151 = vld [vmem:[#allocation10 + $0x40] sm:$0xff]
    %v5152 = vld [vmem:[#allocation10 + $0x48] sm:$0xff]
    %v5153 = vld [vmem:[#allocation10 + $0x50] sm:$0xff]
    %v5154 = vld [vmem:[#allocation10 + $0x58] sm:$0xff]
    %v5155 = vld [vmem:[#allocation10 + $0x60] sm:$0xff]
    %v5156 = vld [vmem:[#allocation10 + $0x68] sm:$0xff]
    %v5157 = vld [vmem:[#allocation10 + $0x70] sm:$0xff]
    %v5158 = vld [vmem:[#allocation10 + $0x78] sm:$0xff]
    %v5159 = vld [vmem:[#allocation10 + $0x80] sm:$0xff]
    %v5160 = vld [vmem:[#allocation10 + $0x88] sm:$0xff]
    %v5161 = vld [vmem:[#allocation10 + $0x90] sm:$0xff]
    %v5162 = vld [vmem:[#allocation10 + $0x98] sm:$0xff]
    %v5163 = vld [vmem:[#allocation10 + $0xa0] sm:$0xff]
    %v5164 = vld [vmem:[#allocation10 + $0xa8] sm:$0xff]
    %v5165 = vld [vmem:[#allocation10 + $0xb0] sm:$0xff]
    %v5166 = vld [vmem:[#allocation10 + $0xb8] sm:$0xff]
    %v5167 = vld [vmem:[#allocation10 + $0xc0] sm:$0xff]
    %v5168 = vld [vmem:[#allocation10 + $0xc8] sm:$0xff]
    %v5169 = vld [vmem:[#allocation10 + $0xd0] sm:$0xff]
    %v5170 = vld [vmem:[#allocation10 + $0xd8] sm:$0xff]
    %v5171 = vld [vmem:[#allocation10 + $0xe0] sm:$0xff]
    %v5172 = vld [vmem:[#allocation10 + $0xe8] sm:$0xff]
    %v5173 = vld [vmem:[#allocation10 + $0xf0] sm:$0xff]
    %v5174 = vld [vmem:[#allocation10 + $0xf8] sm:$0xff]
    %v5175 = vpack.c.bf16 %v5142, %v5142
    %v5176 = vpack.c.bf16 %v5140, %v5138
    %v5177 = vpack.c.bf16 %v5141, %v5139
    %vm5178 = vcmask 130048
    %v5180 = vsel %vm5178, %v5175, 0
    %5182 = vmatpush.bf16.msra.mxu0 0
    %5183 = vmatpush.bf16.msra.mxu0 0
    %5184 = vmatpush.bf16.msra.mxu0 0
    %5185 = vmatpush.bf16.msra.mxu0 0
    %5186 = vmatpush.bf16.msra.mxu0 0
    %5187 = vmatpush.bf16.msra.mxu0 0
    %5188 = vmatpush.bf16.msra.mxu0 0
    %5189 = vmatpush.bf16.msra.mxu0 %v5176
    %5190 = vmatmul.bf16.gmra.mxu0 %v5180
    %v5191 = vpop.f32.mrf.mxu0
    %v5192 = vadd.f32 0.0, %v5191
    %v5193 = vpop.f32.mrf.mxu0
    %5194 = vdwg.mxu0
    %5195 = vmatpush.bf16.msra.mxu0 0
    %5196 = vmatpush.bf16.msra.mxu0 0
    %5197 = vmatpush.bf16.msra.mxu0 0
    %5198 = vmatpush.bf16.msra.mxu0 0
    %5199 = vmatpush.bf16.msra.mxu0 0
    %5200 = vmatpush.bf16.msra.mxu0 0
    %5201 = vmatpush.bf16.msra.mxu0 0
    %5202 = vmatpush.bf16.msra.mxu0 %v5177
    %5203 = vmatmul.bf16.gmra.mxu0 %v5180
    %v5204 = vpop.f32.mrf.mxu0
    %v5205 = vadd.f32 0.0, %v5204
    %v5206 = vpop.f32.mrf.mxu0
    %5207 = vdwg.mxu0
    %vm5208 = vcmask 123904
    %v5209 = vsel %vm5208, %v5142, 0.0
    %5210 = vadd.xlane.f32.xlu0 %v5209
    %v5211 = vpop.xlane.xlu0 %5210
    %v5212 = vmax.f32 %v5211, 1.0
    %v5213 = vrcp.pop %v5212
    %v5214 = vmul.f32 %v5192, %v5213
    %v5215 = vmul.f32 %v5205, %v5213
    %v5216 = vpack.c.bf16 %v5214, %v5214
    %v5217 = vpack.c.bf16 %v5215, %v5215
    %v5250 = vunpack.c.l.b16 %v5143
    %v5251 = vunpack.c.h.b16 %v5143
    %v5252 = vunpack.c.l.b16 %v5144
    %v5253 = vunpack.c.h.b16 %v5144
    %v5254 = vunpack.c.l.b16 %v5145
    %v5255 = vunpack.c.h.b16 %v5145
    %v5256 = vunpack.c.l.b16 %v5146
    %v5257 = vunpack.c.h.b16 %v5146
    %v5258 = vunpack.c.l.b16 %v5147
    %v5259 = vunpack.c.h.b16 %v5147
    %v5260 = vunpack.c.l.b16 %v5148
    %v5261 = vunpack.c.h.b16 %v5148
    %v5262 = vunpack.c.l.b16 %v5149
    %v5263 = vunpack.c.h.b16 %v5149
    %v5264 = vunpack.c.l.b16 %v5150
    %v5265 = vunpack.c.h.b16 %v5150
    %v5266 = vunpack.c.l.b16 %v5151
    %v5267 = vunpack.c.h.b16 %v5151
    %v5268 = vunpack.c.l.b16 %v5152
    %v5269 = vunpack.c.h.b16 %v5152
    %v5270 = vunpack.c.l.b16 %v5153
    %v5271 = vunpack.c.h.b16 %v5153
    %v5272 = vunpack.c.l.b16 %v5154
    %v5273 = vunpack.c.h.b16 %v5154
    %v5274 = vunpack.c.l.b16 %v5155
    %v5275 = vunpack.c.h.b16 %v5155
    %v5276 = vunpack.c.l.b16 %v5156
    %v5277 = vunpack.c.h.b16 %v5156
    %v5278 = vunpack.c.l.b16 %v5157
    %v5279 = vunpack.c.h.b16 %v5157
    %v5280 = vunpack.c.l.b16 %v5158
    %v5281 = vunpack.c.h.b16 %v5158
    %v5282 = vunpack.c.l.b16 %v5159
    %v5283 = vunpack.c.h.b16 %v5159
    %v5284 = vunpack.c.l.b16 %v5160
    %v5285 = vunpack.c.h.b16 %v5160
    %v5286 = vunpack.c.l.b16 %v5161
    %v5287 = vunpack.c.h.b16 %v5161
    %v5288 = vunpack.c.l.b16 %v5162
    %v5289 = vunpack.c.h.b16 %v5162
    %v5290 = vunpack.c.l.b16 %v5163
    %v5291 = vunpack.c.h.b16 %v5163
    %v5292 = vunpack.c.l.b16 %v5164
    %v5293 = vunpack.c.h.b16 %v5164
    %v5294 = vunpack.c.l.b16 %v5165
    %v5295 = vunpack.c.h.b16 %v5165
    %v5296 = vunpack.c.l.b16 %v5166
    %v5297 = vunpack.c.h.b16 %v5166
    %v5298 = vunpack.c.l.b16 %v5167
    %v5299 = vunpack.c.h.b16 %v5167
    %v5300 = vunpack.c.l.b16 %v5168
    %v5301 = vunpack.c.h.b16 %v5168
    %v5302 = vunpack.c.l.b16 %v5169
    %v5303 = vunpack.c.h.b16 %v5169
    %v5304 = vunpack.c.l.b16 %v5170
    %v5305 = vunpack.c.h.b16 %v5170
    %v5306 = vunpack.c.l.b16 %v5171
    %v5307 = vunpack.c.h.b16 %v5171
    %v5308 = vunpack.c.l.b16 %v5172
    %v5309 = vunpack.c.h.b16 %v5172
    %v5310 = vunpack.c.l.b16 %v5173
    %v5311 = vunpack.c.h.b16 %v5173
    %v5312 = vunpack.c.l.b16 %v5174
    %v5313 = vunpack.c.h.b16 %v5174
    %v5314 = vpack.c.b16 %v5252, %v5250
    %v5315 = vpack.c.b16 %v5253, %v5251
    %v5316 = vpack.c.b16 %v5256, %v5254
    %v5317 = vpack.c.b16 %v5257, %v5255
    %v5318 = vpack.c.b16 %v5260, %v5258
    %v5319 = vpack.c.b16 %v5261, %v5259
    %v5320 = vpack.c.b16 %v5264, %v5262
    %v5321 = vpack.c.b16 %v5265, %v5263
    %v5322 = vpack.c.b16 %v5268, %v5266
    %v5323 = vpack.c.b16 %v5269, %v5267
    %v5324 = vpack.c.b16 %v5272, %v5270
    %v5325 = vpack.c.b16 %v5273, %v5271
    %v5326 = vpack.c.b16 %v5276, %v5274
    %v5327 = vpack.c.b16 %v5277, %v5275
    %v5328 = vpack.c.b16 %v5280, %v5278
    %v5329 = vpack.c.b16 %v5281, %v5279
    %v5330 = vpack.c.b16 %v5284, %v5282
    %v5331 = vpack.c.b16 %v5285, %v5283
    %v5332 = vpack.c.b16 %v5288, %v5286
    %v5333 = vpack.c.b16 %v5289, %v5287
    %v5334 = vpack.c.b16 %v5292, %v5290
    %v5335 = vpack.c.b16 %v5293, %v5291
    %v5336 = vpack.c.b16 %v5296, %v5294
    %v5337 = vpack.c.b16 %v5297, %v5295
    %v5338 = vpack.c.b16 %v5300, %v5298
    %v5339 = vpack.c.b16 %v5301, %v5299
    %v5340 = vpack.c.b16 %v5304, %v5302
    %v5341 = vpack.c.b16 %v5305, %v5303
    %v5342 = vpack.c.b16 %v5308, %v5306
    %v5343 = vpack.c.b16 %v5309, %v5307
    %v5344 = vpack.c.b16 %v5312, %v5310
    %v5345 = vpack.c.b16 %v5313, %v5311
    %5378 = vmatpush.bf16.msra.mxu0 %v5328
    %5379 = vmatpush.bf16.msra.mxu0 %v5326
    %5380 = vmatpush.bf16.msra.mxu0 %v5324
    %5381 = vmatpush.bf16.msra.mxu0 %v5322
    %5382 = vmatpush.bf16.msra.mxu0 %v5320
    %5383 = vmatpush.bf16.msra.mxu0 %v5318
    %5384 = vmatpush.bf16.msra.mxu0 %v5316
    %5385 = vmatpush.bf16.msra.mxu0 %v5314
    %5386 = vmatmul.bf16.gmra.mxu0 %v5216
    %v5387 = vpop.f32.mrf.mxu0
    %v5388 = vadd.f32 0.0, %v5387
    %v5389 = vpop.f32.mrf.mxu0
    %5390 = vdwg.mxu0
    %5391 = vmatpush.bf16.msra.mxu0 %v5344
    %5392 = vmatpush.bf16.msra.mxu0 %v5342
    %5393 = vmatpush.bf16.msra.mxu0 %v5340
    %5394 = vmatpush.bf16.msra.mxu0 %v5338
    %5395 = vmatpush.bf16.msra.mxu0 %v5336
    %5396 = vmatpush.bf16.msra.mxu0 %v5334
    %5397 = vmatpush.bf16.msra.mxu0 %v5332
    %5398 = vmatpush.bf16.msra.mxu0 %v5330
    %5399 = vmatmul.bf16.gmra.mxu0 %v5217
    %v5400 = vpop.f32.mrf.mxu0
    %v5401 = vadd.f32 %v5388, %v5400
    %v5402 = vpop.f32.mrf.mxu0
    %5403 = vdwg.mxu0
    %5404 = vmatpush.bf16.msra.mxu0 %v5329
    %5405 = vmatpush.bf16.msra.mxu0 %v5327
    %5406 = vmatpush.bf16.msra.mxu0 %v5325
    %5407 = vmatpush.bf16.msra.mxu0 %v5323
    %5408 = vmatpush.bf16.msra.mxu0 %v5321
    %5409 = vmatpush.bf16.msra.mxu0 %v5319
    %5410 = vmatpush.bf16.msra.mxu0 %v5317
    %5411 = vmatpush.bf16.msra.mxu0 %v5315
    %5412 = vmatmul.bf16.gmra.mxu0 %v5216
    %v5413 = vpop.f32.mrf.mxu0
    %v5414 = vadd.f32 0.0, %v5413
    %v5415 = vpop.f32.mrf.mxu0
    %5416 = vdwg.mxu0
    %5417 = vmatpush.bf16.msra.mxu0 %v5345
    %5418 = vmatpush.bf16.msra.mxu0 %v5343
    %5419 = vmatpush.bf16.msra.mxu0 %v5341
    %5420 = vmatpush.bf16.msra.mxu0 %v5339
    %5421 = vmatpush.bf16.msra.mxu0 %v5337
    %5422 = vmatpush.bf16.msra.mxu0 %v5335
    %5423 = vmatpush.bf16.msra.mxu0 %v5333
    %5424 = vmatpush.bf16.msra.mxu0 %v5331
    %5425 = vmatmul.bf16.gmra.mxu0 %v5217
    %v5426 = vpop.f32.mrf.mxu0
    %v5427 = vadd.f32 %v5414, %v5426
    %v5428 = vpop.f32.mrf.mxu0
    %5429 = vdwg.mxu0
    %v5432 = vrot.slane %v5427, 6
    %vm5433 = vcmask 1041408
    %v5434 = vsel %vm5433, %v5401, %v5432
    %5436 = vst [vmem:[#allocation11] sm:$0xf] %v5434
    // Predicated region
    $region94: #{lmodel_forward_pallas.1} parent=1 // pred_check
      _
    $region95: #{lmodel_forward_pallas.1} parent=1 // pred_check_branch
      %5438 = sbr.rel (0) target = $region97
    $region96: #{lmodel_forward_pallas.1} parent=1 // pred_region
      %5440 = vsyncadd [#allocation4], 0
      %s5442 = sshll.u32 [#allocation11], 4
      %s5443 = int_to_ptr.vmem [resolvable:$true] %s5442
      %s5444 = sshll.u32 %s18, 4
      %s5445 = int_to_ptr.hbm [resolvable:$true] %s5444
      %5447 = dma.vmem_to_hbm [thread:$0]  %s5443, 64, %s5445, [#allocation4]
    $region97: #{lmodel_forward_pallas.1} parent=1 // pred_fallthru
      _
    // Predicated region
    $region98: #{lmodel_forward_pallas.1} parent=1 // pred_check
      _
    $region99: #{lmodel_forward_pallas.1} parent=1 // pred_check_branch
      %5449 = sbr.rel (0) target = $region101
    $region100: #{lmodel_forward_pallas.1} parent=1 // pred_region
      %5451 = dma.done [#allocation4], 64
    $region101: #{lmodel_forward_pallas.1} parent=1 // pred_fallthru
      _
    %5452 = vsyncpa [#allocation3], 1
    %5453 = vsyncpa [#allocation6], 1
    %5454 = vsyncpa [#allocation9], 1
    %5455 = vsyncpa [#allocation4], 1

</llo_original>
